<compile_context>
chip_gen: v7x
topology: tpu7x:2x2x1
jax: 0.10.0
libtpu: 0.0.40
codegen_flags: <defaults>
</compile_context>

<pallas_src>
import functools
import math

import jax
import jax.numpy as jnp
from jax.experimental import pallas as pl
from jax.experimental.pallas import tpu as pltpu

# ----------------------------- model hyper-params (module defaults) ----------
IN_DIM = 11
OUT_DIM = 1
NODE_DIMS = (128, 16)
EDGE_DIMS = (16, 1)
DEPTH = 3
N_MESSAGE = 3
N_FEEDFORWARD = 2
R_CUTOFF = 10.0

NS, NV = NODE_DIMS          # node scalar / vector channels
ES, EV = EDGE_DIMS          # edge scalar / vector channels

W_DTYPE = jnp.bfloat16      # MXU weight dtype (f32 accumulation via preferred_element_type)

# Row-tile caps.  Sized so (inputs + outputs) x double-buffering + weights + live
# intermediates stay well under v7x's 32 MiB scoped-VMEM default; v5e/v6e (128 MiB
# VMEM) could use 2-4x larger tiles.
EDGE_FEAT_TILE = 512        # rows per block in the fused RBF + W_e kernel
MSG_TILE = 256              # edge rows per block in the fused 3-GVP message kernel
NODE_TILE = 256             # node rows per block in the fused feed-forward kernel
AGG_TJ = 128                # source-tile width in the aggregation kernel
AGG_TI_CANDIDATES = (32, 16, 8)

GVP_KEYS = ("wh", "ws_s", "ws_v", "b", "wsv_w", "wsv_b", "wv")


# ----------------------------- small helpers ---------------------------------
def _pick_tile(n, cap):
    """Largest divisor of n that is <= cap (prefer multiples of 8 for sublanes)."""
    if n <= cap:
        return n
    for t in range(cap, 0, -1):
        if n % t == 0 and t % 8 == 0:
            return t
    for t in range(cap, 0, -1):
        if n % t == 0:
            return t
    return n


def _full_spec(a):
    """Whole-array (un-tiled) block for a 1-D grid (weights / biases)."""
    nd = a.ndim
    return pl.BlockSpec(a.shape, lambda i, _nd=nd: (0,) * _nd)


def _dot(a, w):
    """MXU matmul: cast the activation to the (bf16) weight dtype, accumulate in f32."""
    return jnp.dot(a.astype(w.dtype), w, preferred_element_type=jnp.float32)


def _load_gvp(ref_iter):
    """Pop the 7 weight refs of one GVP (in GVP_KEYS order) and load them."""
    return {k: next(ref_iter)[...] for k in GVP_KEYS}


def _gvp_packed(s, v, p, relu):
    """One GVP (vi>0, vo>0, vector_gate=True, vector_act=None) on packed values.

    s: (R, si) f32; v: (R, 3*vi) packed [x|y|z]; weights wh/wv are kron(I3, W)."""
    h = p["wh"].shape[1] // 3
    vh = _dot(v, p["wh"])                                          # (R, 3h) f32
    vx, vy, vz = vh[:, :h], vh[:, h:2 * h], vh[:, 2 * h:]
    vn = jnp.sqrt(jnp.maximum(vx * vx + vy * vy + vz * vz, 1e-8))  # _norm_no_nan
    # ws pre-split into scalar / vnorm halves -> no in-kernel concat copy
    s_new = _dot(s, p["ws_s"]) + _dot(vn, p["ws_v"]) + p["b"]
    gate = jax.nn.sigmoid(_dot(s_new, p["wsv_w"]) + p["wsv_b"])    # gate from pre-act s
    v_new = _dot(vh, p["wv"]) * jnp.concatenate([gate, gate, gate], axis=-1)
    if relu:
        s_new = jax.nn.relu(s_new)
    return s_new, v_new


def _ln_tuple(s, v, gamma, beta):
    """LayerNorm of the (scalar, packed-vector) tuple (matches gvp LayerNorm)."""
    mu = jnp.mean(s, axis=-1, keepdims=True)
    var = jnp.mean(jnp.square(s - mu), axis=-1, keepdims=True)
    s_out = (s - mu) * jax.lax.rsqrt(var + 1e-5) * gamma + beta
    c = v.shape[-1] // 3
    vn2 = jnp.maximum(v[:, :c] ** 2 + v[:, c:2 * c] ** 2 + v[:, 2 * c:] ** 2, 1e-8)
    inv = jax.lax.rsqrt(jnp.mean(vn2, axis=-1, keepdims=True))
    return s_out, v * inv


# ----------------------------- Pallas kernels --------------------------------
def _edge_feat_kernel(d_ref, u_ref, off_ref, wh_ref, ws_s_ref, ws_v_ref, b_ref,
                      wsv_w_ref, wsv_b_ref, wv_ref, es_ref, ev_ref, *, coeff):
    """Fused Gaussian RBF expansion + W_e GVP ((16,1)->(16,1), no activations)."""
    d = d_ref[...]                                   # (TE, 1)
    diff = d - off_ref[...]                          # (TE, 16)
    rbf = jnp.exp(coeff * (diff * diff))
    u = u_ref[...]                                   # (TE, 3) unit rel-pos [x|y|z]
    vh = u * wh_ref[...]                             # W_h with vi=h=1  ((1,1) weight)
    vn = jnp.sqrt(jnp.maximum(jnp.sum(vh * vh, axis=-1, keepdims=True), 1e-8))
    s = (jnp.dot(rbf, ws_s_ref[...], preferred_element_type=jnp.float32)
         + vn * ws_v_ref[...] + b_ref[...])
    gate = jax.nn.sigmoid(
        jnp.dot(s, wsv_w_ref[...], preferred_element_type=jnp.float32) + wsv_b_ref[...])
    es_ref[...] = s                                  # activations=(None, None)
    ev_ref[...] = vh * wv_ref[...] * gate            # (TE, 3) packed edge vector


def _linear_kernel(x_ref, w_ref, b_ref, o_ref):
    """W_v: GVP((128,0)->(128,16)) degenerates to Linear on scalars (vectors start 0)."""
    o_ref[...] = _dot(x_ref[...], w_ref[...]) + b_ref[...]


def _message_kernel(ms_ref, mv_ref, mask_ref, *rest):
    """Fused 3-GVP message stack + per-edge validity mask (one edge-row tile)."""
    n_w = N_MESSAGE * len(GVP_KEYS)
    wrefs = iter(rest[:n_w])
    s_out_ref, v_out_ref = rest[n_w], rest[n_w + 1]
    s = ms_ref[...]                                  # (TE, 272) bf16
    v = mv_ref[...]                                  # (TE, 99)  bf16, packed [x|y|z]
    for gi in range(N_MESSAGE):
        gp = _load_gvp(wrefs)
        s, v = _gvp_packed(s, v, gp, relu=(gi < N_MESSAGE - 1))
    m = mask_ref[...]                                # (TE, 1) -> invalid edges zeroed here
    s_out_ref[...] = s * m
    v_out_ref[...] = v * m


def _aggregate_ln_kernel(ms_ref, mv_ref, inv_ref, s_ref, v_ref, g_ref, b_ref,
                         s_out_ref, v_out_ref, acc_s, acc_v):
    """Mean-aggregate masked messages over sources + residual + LayerNorm.

    Grid = (target tiles [parallel], source tiles [arbitrary/reduction]).
    Message blocks are (TI, TJ, C) views of the (N, N, C) target-major tensor."""
    j = pl.program_id(1)

    @pl.when(j == 0)
    def _():
        acc_s[...] = jnp.zeros_like(acc_s)
        acc_v[...] = jnp.zeros_like(acc_v)

    ti = acc_s.shape[0]
    # Per-target 2-D sublane reductions over the source tile (kept 2-D for robust lowering).
    acc_s[...] += jnp.concatenate(
        [jnp.sum(ms_ref[t], axis=0, keepdims=True) for t in range(ti)], axis=0)
    acc_v[...] += jnp.concatenate(
        [jnp.sum(mv_ref[t], axis=0, keepdims=True) for t in range(ti)], axis=0)

    @pl.when(j == pl.num_programs(1) - 1)
    def _():
        inv = inv_ref[...]                            # (TI, 1) precomputed 1/degree
        s = s_ref[...] + acc_s[...] * inv             # residual + mean aggregation
        v = v_ref[...] + acc_v[...] * inv
        s_out, v_out = _ln_tuple(s, v, g_ref[...], b_ref[...])
        s_out_ref[...] = s_out
        v_out_ref[...] = v_out


def _ff_ln_kernel(s_ref, v_ref, g_ref, b_ref, *rest):
    """Fused 2-GVP feed-forward stack + residual + LayerNorm (one node-row tile)."""
    n_w = N_FEEDFORWARD * len(GVP_KEYS)
    wrefs = iter(rest[:n_w])
    s_out_ref, v_out_ref = rest[n_w], rest[n_w + 1]
    s_in = s_ref[...]
    v_in = v_ref[...]
    s, v = s_in, v_in
    for gi in range(N_FEEDFORWARD):
        gp = _load_gvp(wrefs)
        s, v = _gvp_packed(s, v, gp, relu=(gi < N_FEEDFORWARD - 1))
    s_out, v_out = _ln_tuple(s_in + s, v_in + v, g_ref[...], b_ref[...])
    s_out_ref[...] = s_out
    v_out_ref[...] = v_out


def _readout_kernel(oh_ref, inv_ref, s_ref, w1_ref, b1_ref, w2_ref, b2_ref, o_ref):
    """Graph scatter-mean readout + downstream MLP (tiny epilogue, single block)."""
    g = jnp.dot(oh_ref[...], s_ref[...], preferred_element_type=jnp.float32) * inv_ref[...]
    h = jax.nn.relu(_dot(g, w1_ref[...]) + b1_ref[...])
    o_ref[...] = _dot(h, w2_ref[...]) + b2_ref[...]


# ----------------------------- pallas_call wrappers --------------------------
def _edge_feat_call(we, offsets, d, u):
    e = d.shape[0]
    te = _pick_tile(e, EDGE_FEAT_TILE)
    spacing = R_CUTOFF / (ES - 1)
    coeff = -0.5 / (spacing ** 2)
    flat = [we[k] for k in ("wh", "ws_s", "ws_v", "b", "wsv_w", "wsv_b", "wv")]
    in_specs = ([pl.BlockSpec((te, 1), lambda i: (i, 0)),
                 pl.BlockSpec((te, 3), lambda i: (i, 0)),
                 _full_spec(offsets)]
                + [_full_spec(w) for w in flat])
    out_specs = (pl.BlockSpec((te, ES), lambda i: (i, 0)),
                 pl.BlockSpec((te, 3), lambda i: (i, 0)))
    out_shape = (jax.ShapeDtypeStruct((e, ES), jnp.float32),
                 jax.ShapeDtypeStruct((e, 3), jnp.float32))
    return pl.pallas_call(
        functools.partial(_edge_feat_kernel, coeff=coeff),
        grid=(e // te,), in_specs=in_specs, out_specs=out_specs, out_shape=out_shape,
        compiler_params=pltpu.CompilerParams(dimension_semantics=("parallel",)),
    )(d, u, offsets, *flat)


def _node_embed_call(wv_w, wv_b, s_emb):
    n, ns = s_emb.shape
    tn = _pick_tile(n, NODE_TILE)
    return pl.pallas_call(
        _linear_kernel, grid=(n // tn,),
        in_specs=[pl.BlockSpec((tn, ns), lambda i: (i, 0)),
                  _full_spec(wv_w), _full_spec(wv_b)],
        out_specs=pl.BlockSpec((tn, wv_w.shape[1]), lambda i: (i, 0)),
        out_shape=jax.ShapeDtypeStruct((n, wv_w.shape[1]), jnp.float32),
        compiler_params=pltpu.CompilerParams(dimension_semantics=("parallel",)),
    )(s_emb, wv_w, wv_b)


def _flatten_gvps(gvp_list):
    flat = []
    for gp in gvp_list:
        flat += [gp[k] for k in GVP_KEYS]
    return flat


def _message_call(msg_params, ms, mv, mask):
    e, si = ms.shape
    vi3 = mv.shape[1]
    te = _pick_tile(e, MSG_TILE)
    flat_w = _flatten_gvps(msg_params)
    in_specs = ([pl.BlockSpec((te, si), lambda i: (i, 0)),
                 pl.BlockSpec((te, vi3), lambda i: (i, 0)),
                 pl.BlockSpec((te, 1), lambda i: (i, 0))]
                + [_full_spec(w) for w in flat_w])
    out_specs = (pl.BlockSpec((te, NS), lambda i: (i, 0)),
                 pl.BlockSpec((te, 3 * NV), lambda i: (i, 0)))
    out_shape = (jax.ShapeDtypeStruct((e, NS), jnp.float32),
                 jax.ShapeDtypeStruct((e, 3 * NV), jnp.float32))
    return pl.pallas_call(
        _message_kernel, grid=(e // te,), in_specs=in_specs,
        out_specs=out_specs, out_shape=out_shape,
        compiler_params=pltpu.CompilerParams(dimension_semantics=("parallel",)),
    )(ms, mv, mask, *flat_w)


def _aggregate_call(msg_s, msg_v, inv_deg, s, v, gamma, beta):
    n, ns = s.shape
    v3 = v.shape[1]
    ti = next((t for t in AGG_TI_CANDIDATES if n % t == 0), n)
    tj = _pick_tile(n, AGG_TJ)
    ms3 = msg_s.reshape(n, n, ns)       # target-major: [target, source, channels]
    mv3 = msg_v.reshape(n, n, v3)
    in_specs = [
        pl.BlockSpec((ti, tj, ns), lambda i, j: (i, j, 0)),
        pl.BlockSpec((ti, tj, v3), lambda i, j: (i, j, 0)),
        pl.BlockSpec((ti, 1), lambda i, j: (i, 0)),
        pl.BlockSpec((ti, ns), lambda i, j: (i, 0)),
        pl.BlockSpec((ti, v3), lambda i, j: (i, 0)),
        pl.BlockSpec((1, ns), lambda i, j: (0, 0)),
        pl.BlockSpec((1, ns), lambda i, j: (0, 0)),
    ]
    out_specs = (pl.BlockSpec((ti, ns), lambda i, j: (i, 0)),
                 pl.BlockSpec((ti, v3), lambda i, j: (i, 0)))
    out_shape = (jax.ShapeDtypeStruct((n, ns), jnp.float32),
                 jax.ShapeDtypeStruct((n, v3), jnp.float32))
    return pl.pallas_call(
        _aggregate_ln_kernel, grid=(n // ti, n // tj),
        in_specs=in_specs, out_specs=out_specs, out_shape=out_shape,
        scratch_shapes=[pltpu.VMEM((ti, ns), jnp.float32),
                        pltpu.VMEM((ti, v3), jnp.float32)],
        compiler_params=pltpu.CompilerParams(
            dimension_semantics=("parallel", "arbitrary")),
    )(ms3, mv3, inv_deg, s, v, gamma, beta)


def _ff_call(ff_params, s, v, gamma, beta):
    n, ns = s.shape
    v3 = v.shape[1]
    tn = _pick_tile(n, NODE_TILE)
    flat_w = _flatten_gvps(ff_params)
    in_specs = ([pl.BlockSpec((tn, ns), lambda i: (i, 0)),
                 pl.BlockSpec((tn, v3), lambda i: (i, 0)),
                 _full_spec(gamma), _full_spec(beta)]
                + [_full_spec(w) for w in flat_w])
    out_specs = (pl.BlockSpec((tn, ns), lambda i: (i, 0)),
                 pl.BlockSpec((tn, v3), lambda i: (i, 0)))
    out_shape = (jax.ShapeDtypeStruct((n, ns), jnp.float32),
                 jax.ShapeDtypeStruct((n, v3), jnp.float32))
    return pl.pallas_call(
        _ff_ln_kernel, grid=(n // tn,), in_specs=in_specs,
        out_specs=out_specs, out_shape=out_shape,
        compiler_params=pltpu.CompilerParams(dimension_semantics=("parallel",)),
    )(s, v, gamma, beta, *flat_w)


def _readout_call(p, s, graph_oh, graph_inv):
    b = graph_oh.shape[0]
    ins = (graph_oh, graph_inv, s, p["down_w1"], p["down_b1"], p["down_w2"], p["down_b2"])
    return pl.pallas_call(
        _readout_kernel, grid=(1,),
        in_specs=[_full_spec(x) for x in ins],
        out_specs=pl.BlockSpec((b, OUT_DIM), lambda i: (0, 0)),
        out_shape=jax.ShapeDtypeStruct((b, OUT_DIM), jnp.float32),
        compiler_params=pltpu.CompilerParams(dimension_semantics=("arbitrary",)),
    )(*ins)


# ----------------------------- parameter init (deterministic) ----------------
def _uniform(key, shape, scale):
    return jax.random.uniform(key, shape, jnp.float32, -scale, scale)


def init_linear(key, fan_in, fan_out, w_dtype=jnp.float32):
    kw, kb = jax.random.split(key)
    s = 1.0 / math.sqrt(fan_in)
    return _uniform(kw, (fan_in, fan_out), s).astype(w_dtype), _uniform(kb, (1, fan_out), s)


def init_gvp_packed(key, in_dims, out_dims):
    """GVP weights in packed form: wh/wv stored as kron(I3, W); ws split in halves."""
    si, vi = in_dims
    so, vo = out_dims
    h = max(vi, vo)
    k1, k2, k3, k4 = jax.random.split(key, 4)
    wh = _uniform(k1, (vi, h), 1.0 / math.sqrt(vi))
    wv = _uniform(k3, (h, vo), 1.0 / math.sqrt(h))
    ws, b = init_linear(k2, si + h, so)               # ws rows: [scalars | vnorm]
    wsv_w, wsv_b = init_linear(k4, so, vo)
    eye3 = jnp.eye(3, dtype=jnp.float32)
    return {
        "wh": jnp.kron(eye3, wh).astype(W_DTYPE),     # (3*vi, 3*h) block-diagonal
        "ws_s": ws[:si].astype(W_DTYPE),
        "ws_v": ws[si:].astype(W_DTYPE),
        "b": b,
        "wsv_w": wsv_w.astype(W_DTYPE),
        "wsv_b": wsv_b,
        "wv": jnp.kron(eye3, wv).astype(W_DTYPE),     # (3*h, 3*vo)
    }


def init_we(key):
    """W_e: GVP((16,1) -> (16,1)), activations=(None,None), vector_gate (vi=h=vo=1)."""
    k1, k2, k3, k4 = jax.random.split(key, 4)
    ws, b = init_linear(k2, ES + 1, ES)
    wsv_w, wsv_b = init_linear(k4, ES, 1)
    return {
        "wh": _uniform(k1, (1, 1), 1.0),
        "wv": _uniform(k3, (1, 1), 1.0),
        "ws_s": ws[:ES], "ws_v": ws[ES:], "b": b,
        "wsv_w": wsv_w, "wsv_b": wsv_b,
    }


def init_params(key):
    keys = jax.random.split(key, 6 + DEPTH)
    p = {}
    p["embed"] = jax.random.normal(keys[0], (IN_DIM, NS), jnp.float32)
    # W_v: GVP((128,0)->(128,16)) with vi=0 -> Linear on scalars, vectors start at 0
    p["wv_w"], p["wv_b"] = init_linear(keys[1], NS, NS, W_DTYPE)
    p["we"] = init_we(keys[2])
    p["rbf_offset"] = jnp.linspace(0.0, R_CUTOFF, ES, dtype=jnp.float32)[None, :]
    layers = []
    for d in range(DEPTH):
        lk = jax.random.split(keys[3 + d], N_MESSAGE + N_FEEDFORWARD)
        msg = []
        in_dims = (2 * NS + ES, 2 * NV + EV)
        for m in range(N_MESSAGE):
            msg.append(init_gvp_packed(lk[m], in_dims, NODE_DIMS))
            in_dims = NODE_DIMS
        hid = (4 * NS, 2 * NV)
        ff = [init_gvp_packed(lk[N_MESSAGE], NODE_DIMS, hid),
              init_gvp_packed(lk[N_MESSAGE + 1], hid, NODE_DIMS)]
        layers.append({
            "msg": msg, "ff": ff,
            "ln0_g": jnp.ones((1, NS), jnp.float32), "ln0_b": jnp.zeros((1, NS), jnp.float32),
            "ln1_g": jnp.ones((1, NS), jnp.float32), "ln1_b": jnp.zeros((1, NS), jnp.float32),
        })
    p["layers"] = layers
    p["down_w1"], p["down_b1"] = init_linear(keys[3 + DEPTH], NS, NS, W_DTYPE)
    p["down_w2"], p["down_b2"] = init_linear(keys[4 + DEPTH], NS, OUT_DIM, W_DTYPE)
    return p


# ----------------------------- forward pass ----------------------------------
def gvp_network_forward(params, x_types, pos, batch, num_graphs=1):
    n = pos.shape[0]

    # ---- radius_graph (glue): dense ordered pairs, target-major (edge e = i*n + j) ----
    ii = jnp.arange(n)
    col = jnp.repeat(ii, n)          # target i (aggregation index)
    row = jnp.tile(ii, n)            # source j
    rel = pos[row] - pos[col]
    dist = jnp.sqrt(jnp.sum(rel * rel, axis=-1))
    valid = (row != col) & (dist <= R_CUTOFF) & (batch[row] == batch[col])
    unit = rel / jnp.maximum(dist, 1e-12)[:, None]               # F.normalize (eps=1e-12)
    mask_e = valid.astype(jnp.float32)[:, None]                  # (E, 1)
    # per-target degree / inverse, hoisted out of the layer loop (clamp empty at 1)
    deg = jnp.sum(valid.reshape(n, n).astype(jnp.float32), axis=1)
    inv_deg = (1.0 / jnp.maximum(deg, 1.0))[:, None]             # (N, 1)
    # TODO(synk): radius_graph's max_num_neighbors=32 truncation is not implemented
    # (it can never trigger at these node counts).

    # ---- fused RBF expansion + W_e edge featurizer (Pallas) ----
    es, ev = _edge_feat_call(params["we"], params["rbf_offset"], dist[:, None], unit)

    # ---- node featurizer: embedding lookup (glue) + W_v (GVP with vi=0) ----
    s = _node_embed_call(params["wv_w"], params["wv_b"],
                         jnp.take(params["embed"], x_types, axis=0))
    v = jnp.zeros((n, 3 * NV), jnp.float32)                      # packed [x|y|z]

    # ---- GVP-GNN backbone ----
    for lp in params["layers"]:
        # per-edge GVP inputs (gather + concat, XLA glue), stored bf16 — the first
        # message GVP would cast them to bf16 at the MXU anyway.
        # TODO(synk): stream node tiles through a 2-D (target, source) grid inside the
        # message kernel instead of materializing the (E, 272)/(E, 99) tensors.
        ms_in = jnp.concatenate([s[row], es, s[col]], axis=-1).astype(jnp.bfloat16)
        vj, vi_ = v[row], v[col]
        mv_in = jnp.concatenate(
            [vj[:, :NV], ev[:, 0:1], vi_[:, :NV],
             vj[:, NV:2 * NV], ev[:, 1:2], vi_[:, NV:2 * NV],
             vj[:, 2 * NV:], ev[:, 2:3], vi_[:, 2 * NV:]],
            axis=-1).astype(jnp.bfloat16)

        msg_s, msg_v = _message_call(lp["msg"], ms_in, mv_in, mask_e)
        s, v = _aggregate_call(msg_s, msg_v, inv_deg, s, v, lp["ln0_g"], lp["ln0_b"])
        s, v = _ff_call(lp["ff"], s, v, lp["ln1_g"], lp["ln1_b"])

    # ---- graph readout (scatter mean over batch) + downstream MLP ----
    graph_oh = (batch[None, :] == jnp.arange(num_graphs)[:, None]).astype(jnp.float32)
    graph_inv = 1.0 / jnp.maximum(jnp.sum(graph_oh, axis=-1, keepdims=True), 1.0)
    return _readout_call(params, s, graph_oh, graph_inv)


# ----------------------------- demo -------------------------------------------
if __name__ == "__main__":
    key = jax.random.PRNGKey(0)
    k_x, k_pos, k_par = jax.random.split(key, 3)

    N = 32                                            # nodes (multiple of 8 for tiling)
    G = 2                                             # graphs in the batch
    x_types = jax.random.randint(k_x, (N,), 0, IN_DIM)
    pos = jax.random.normal(k_pos, (N, 3), jnp.float32) * 3.0
    batch = jnp.repeat(jnp.arange(G, dtype=jnp.int32), N // G)

    params = init_params(k_par)
    out = gvp_network_forward(params, x_types, pos, batch, num_graphs=G)
    out = jax.block_until_ready(out)

    assert out.shape == (G, OUT_DIM)
    assert bool(jnp.all(jnp.isfinite(out)))
    print("KERNEL_OK")
</pallas_src>

<mosaic_0001>
module attributes {stable_mosaic.version = 11 : i64} {
  func.func @_edge_feat_kernel(%arg0: i32, %arg1: memref<512x1xf32, #tpu.memory_space<vmem>>, %arg2: memref<512x3xf32, #tpu.memory_space<vmem>>, %arg3: memref<1x16xf32, #tpu.memory_space<vmem>>, %arg4: memref<1x1xf32, #tpu.memory_space<vmem>>, %arg5: memref<16x16xf32, #tpu.memory_space<vmem>>, %arg6: memref<1x16xf32, #tpu.memory_space<vmem>>, %arg7: memref<1x16xf32, #tpu.memory_space<vmem>>, %arg8: memref<16x1xf32, #tpu.memory_space<vmem>>, %arg9: memref<1x1xf32, #tpu.memory_space<vmem>>, %arg10: memref<1x1xf32, #tpu.memory_space<vmem>>, %arg11: memref<512x16xf32, #tpu.memory_space<vmem>>, %arg12: memref<512x3xf32, #tpu.memory_space<vmem>>) attributes {dimension_semantics = [#tpu.dimension_semantics<parallel>], iteration_bounds = array<i64: 2>, scalar_prefetch = 0 : i64, scratch_operands = 0 : i64, tpu.core_type = #tpu.core_type<tc>, window_params = [{transform_indices = @transform_0, window_bounds = array<i64: 512, 1>}, {transform_indices = @transform_1, window_bounds = array<i64: 512, 3>}, {pipeline_mode = #tpu.pipeline_mode<synchronous>, transform_indices = @transform_2, window_bounds = array<i64: 1, 16>}, {pipeline_mode = #tpu.pipeline_mode<synchronous>, transform_indices = @transform_3, window_bounds = array<i64: 1, 1>}, {pipeline_mode = #tpu.pipeline_mode<synchronous>, transform_indices = @transform_4, window_bounds = array<i64: 16, 16>}, {pipeline_mode = #tpu.pipeline_mode<synchronous>, transform_indices = @transform_5, window_bounds = array<i64: 1, 16>}, {pipeline_mode = #tpu.pipeline_mode<synchronous>, transform_indices = @transform_6, window_bounds = array<i64: 1, 16>}, {pipeline_mode = #tpu.pipeline_mode<synchronous>, transform_indices = @transform_7, window_bounds = array<i64: 16, 1>}, {pipeline_mode = #tpu.pipeline_mode<synchronous>, transform_indices = @transform_8, window_bounds = array<i64: 1, 1>}, {pipeline_mode = #tpu.pipeline_mode<synchronous>, transform_indices = @transform_9, window_bounds = array<i64: 1, 1>}, {transform_indices = @transform_10, window_bounds = array<i64: 512, 16>}, {transform_indices = @transform_11, window_bounds = array<i64: 512, 3>}]} {
    %c0 = arith.constant 0 : index
    %c0_0 = arith.constant 0 : index
    %0 = vector.load %arg1[%c0, %c0_0] : memref<512x1xf32, #tpu.memory_space<vmem>>, vector<512x1xf32>
    %c0_1 = arith.constant 0 : index
    %c0_2 = arith.constant 0 : index
    %1 = vector.load %arg3[%c0_1, %c0_2] : memref<1x16xf32, #tpu.memory_space<vmem>>, vector<1x16xf32>
    %2 = vector.broadcast %0 : vector<512x1xf32> to vector<512x16xf32>
    %3 = vector.broadcast %1 : vector<1x16xf32> to vector<512x16xf32>
    %4 = arith.subf %2, %3 : vector<512x16xf32>
    %5 = arith.mulf %4, %4 : vector<512x16xf32>
    %cst = arith.constant -1.125000e+00 : f32
    %6 = vector.broadcast %cst : f32 to vector<512x16xf32>
    %7 = arith.mulf %6, %5 : vector<512x16xf32>
    %8 = math.exp %7 : vector<512x16xf32>
    %c0_3 = arith.constant 0 : index
    %c0_4 = arith.constant 0 : index
    %9 = vector.load %arg2[%c0_3, %c0_4] : memref<512x3xf32, #tpu.memory_space<vmem>>, vector<512x3xf32>
    %c0_5 = arith.constant 0 : index
    %c0_6 = arith.constant 0 : index
    %10 = vector.load %arg4[%c0_5, %c0_6] : memref<1x1xf32, #tpu.memory_space<vmem>>, vector<1x1xf32>
    %11 = vector.broadcast %10 : vector<1x1xf32> to vector<512x3xf32>
    %12 = arith.mulf %9, %11 : vector<512x3xf32>
    %13 = arith.mulf %12, %12 : vector<512x3xf32>
    %cst_7 = arith.constant dense<0.000000e+00> : vector<512xf32>
    %14 = vector.multi_reduction <add>, %13, %cst_7 [1] : vector<512x3xf32> to vector<512xf32>
    %15 = vector.shape_cast %14 : vector<512xf32> to vector<512x1xf32>
    %cst_8 = arith.constant 9.99999993E-9 : f32
    %16 = vector.broadcast %cst_8 : f32 to vector<512x1xf32>
    %17 = arith.maximumf %15, %16 : vector<512x1xf32>
    %18 = math.sqrt %17 : vector<512x1xf32>
    %c0_9 = arith.constant 0 : index
    %c0_10 = arith.constant 0 : index
    %19 = vector.load %arg5[%c0_9, %c0_10] : memref<16x16xf32, #tpu.memory_space<vmem>>, vector<16x16xf32>
    %cst_11 = arith.constant dense<0.000000e+00> : vector<512x16xf32>
    %20 = tpu.matmul %8, %19, %cst_11 {dimension_numbers = #tpu.dot_dimension_numbers<[1], [0], [0], [1], [0, 0, 1, 1], [], []>} : vector<512x16xf32>, vector<16x16xf32>, vector<512x16xf32> -> vector<512x16xf32>
    %c0_12 = arith.constant 0 : index
    %c0_13 = arith.constant 0 : index
    %21 = vector.load %arg6[%c0_12, %c0_13] : memref<1x16xf32, #tpu.memory_space<vmem>>, vector<1x16xf32>
    %22 = vector.broadcast %18 : vector<512x1xf32> to vector<512x16xf32>
    %23 = vector.broadcast %21 : vector<1x16xf32> to vector<512x16xf32>
    %24 = arith.mulf %22, %23 : vector<512x16xf32>
    %25 = arith.addf %20, %24 : vector<512x16xf32>
    %c0_14 = arith.constant 0 : index
    %c0_15 = arith.constant 0 : index
    %26 = vector.load %arg7[%c0_14, %c0_15] : memref<1x16xf32, #tpu.memory_space<vmem>>, vector<1x16xf32>
    %27 = vector.broadcast %26 : vector<1x16xf32> to vector<512x16xf32>
    %28 = arith.addf %25, %27 : vector<512x16xf32>
    %c0_16 = arith.constant 0 : index
    %c0_17 = arith.constant 0 : index
    %29 = vector.load %arg8[%c0_16, %c0_17] : memref<16x1xf32, #tpu.memory_space<vmem>>, vector<16x1xf32>
    %cst_18 = arith.constant dense<0.000000e+00> : vector<512x1xf32>
    %30 = tpu.matmul %28, %29, %cst_18 {dimension_numbers = #tpu.dot_dimension_numbers<[1], [0], [0], [1], [0, 0, 1, 1], [], []>} : vector<512x16xf32>, vector<16x1xf32>, vector<512x1xf32> -> vector<512x1xf32>
    %c0_19 = arith.constant 0 : index
    %c0_20 = arith.constant 0 : index
    %31 = vector.load %arg9[%c0_19, %c0_20] : memref<1x1xf32, #tpu.memory_space<vmem>>, vector<1x1xf32>
    %32 = vector.broadcast %31 : vector<1x1xf32> to vector<512x1xf32>
    %33 = arith.addf %30, %32 : vector<512x1xf32>
    %34 = arith.negf %33 : vector<512x1xf32>
    %35 = math.exp %34 : vector<512x1xf32>
    %cst_21 = arith.constant 1.000000e+00 : f32
    %36 = vector.broadcast %cst_21 : f32 to vector<512x1xf32>
    %37 = arith.addf %36, %35 : vector<512x1xf32>
    %38 = arith.divf %36, %37 : vector<512x1xf32>
    %c0_22 = arith.constant 0 : index
    %c0_23 = arith.constant 0 : index
    %39 = vector.load %arg11[%c0_22, %c0_23] : memref<512x16xf32, #tpu.memory_space<vmem>>, vector<512x16xf32>
    tpu.vector_store %arg11[%c0_22, %c0_23], %28 {strides = array<i32>} : memref<512x16xf32, #tpu.memory_space<vmem>>, vector<512x16xf32>,
    %c0_24 = arith.constant 0 : index
    %c0_25 = arith.constant 0 : index
    %40 = vector.load %arg10[%c0_24, %c0_25] : memref<1x1xf32, #tpu.memory_space<vmem>>, vector<1x1xf32>
    %41 = vector.broadcast %40 : vector<1x1xf32> to vector<512x3xf32>
    %42 = arith.mulf %12, %41 : vector<512x3xf32>
    %43 = vector.broadcast %38 : vector<512x1xf32> to vector<512x3xf32>
    %44 = arith.mulf %42, %43 : vector<512x3xf32>
    %c0_26 = arith.constant 0 : index
    %c0_27 = arith.constant 0 : index
    %45 = vector.load %arg12[%c0_26, %c0_27] : memref<512x3xf32, #tpu.memory_space<vmem>>, vector<512x3xf32>
    tpu.vector_store %arg12[%c0_26, %c0_27], %44 {strides = array<i32>} : memref<512x3xf32, #tpu.memory_space<vmem>>, vector<512x3xf32>,
    return
  }
  func.func @transform_0(%arg0: i32) -> (i32, i32) {
    %c0_i32 = arith.constant 0 : i32
    %c0_i32_0 = arith.constant 0 : i32
    return %arg0, %c0_i32 : i32, i32
  }
  func.func @transform_1(%arg0: i32) -> (i32, i32) {
    %c0_i32 = arith.constant 0 : i32
    %c0_i32_0 = arith.constant 0 : i32
    return %arg0, %c0_i32 : i32, i32
  }
  func.func @transform_2(%arg0: i32) -> (i32, i32) {
    %c0_i32 = arith.constant 0 : i32
    %c0_i32_0 = arith.constant 0 : i32
    %c0_i32_1 = arith.constant 0 : i32
    return %c0_i32, %c0_i32_0 : i32, i32
  }
  func.func @transform_3(%arg0: i32) -> (i32, i32) {
    %c0_i32 = arith.constant 0 : i32
    %c0_i32_0 = arith.constant 0 : i32
    %c0_i32_1 = arith.constant 0 : i32
    return %c0_i32, %c0_i32_0 : i32, i32
  }
  func.func @transform_4(%arg0: i32) -> (i32, i32) {
    %c0_i32 = arith.constant 0 : i32
    %c0_i32_0 = arith.constant 0 : i32
    %c0_i32_1 = arith.constant 0 : i32
    return %c0_i32, %c0_i32_0 : i32, i32
  }
  func.func @transform_5(%arg0: i32) -> (i32, i32) {
    %c0_i32 = arith.constant 0 : i32
    %c0_i32_0 = arith.constant 0 : i32
    %c0_i32_1 = arith.constant 0 : i32
    return %c0_i32, %c0_i32_0 : i32, i32
  }
  func.func @transform_6(%arg0: i32) -> (i32, i32) {
    %c0_i32 = arith.constant 0 : i32
    %c0_i32_0 = arith.constant 0 : i32
    %c0_i32_1 = arith.constant 0 : i32
    return %c0_i32, %c0_i32_0 : i32, i32
  }
  func.func @transform_7(%arg0: i32) -> (i32, i32) {
    %c0_i32 = arith.constant 0 : i32
    %c0_i32_0 = arith.constant 0 : i32
    %c0_i32_1 = arith.constant 0 : i32
    return %c0_i32, %c0_i32_0 : i32, i32
  }
  func.func @transform_8(%arg0: i32) -> (i32, i32) {
    %c0_i32 = arith.constant 0 : i32
    %c0_i32_0 = arith.constant 0 : i32
    %c0_i32_1 = arith.constant 0 : i32
    return %c0_i32, %c0_i32_0 : i32, i32
  }
  func.func @transform_9(%arg0: i32) -> (i32, i32) {
    %c0_i32 = arith.constant 0 : i32
    %c0_i32_0 = arith.constant 0 : i32
    %c0_i32_1 = arith.constant 0 : i32
    return %c0_i32, %c0_i32_0 : i32, i32
  }
  func.func @transform_10(%arg0: i32) -> (i32, i32) {
    %c0_i32 = arith.constant 0 : i32
    %c0_i32_0 = arith.constant 0 : i32
    return %arg0, %c0_i32 : i32, i32
  }
  func.func @transform_11(%arg0: i32) -> (i32, i32) {
    %c0_i32 = arith.constant 0 : i32
    %c0_i32_0 = arith.constant 0 : i32
    return %arg0, %c0_i32 : i32, i32
  }
}

</mosaic_0001>

<llo_original>
// kernel: tpu_custom_call.1
$region0: #{tpu_custom_call.1}
  #allocation0 [shape = 'u32[]', space=smem, size = 0x4, offset = 0x4, fixed_abs, tag = 'smem constant byte address 0x4 - core index']
  #allocation1 [shape = 'u32[144,128]{1,0:T(1,128)}', space=vmem, size = 0x12000, scoped, tag = 'internal scratch']
  #allocation2 [shape = 'f32[1,1]{1,0:T(1,128)S(1)}', space=vmem, size = 0x200, scoped, tag = 'scoped memory for tpu_custom_call.1']
  #allocation3 [shape = 'f32[1,1]{1,0:T(1,128)S(1)}', space=vmem, size = 0x200, scoped, tag = 'scoped memory for tpu_custom_call.1']
  #allocation4 [shape = 'f32[1,1]{1,0:T(1,128)S(1)}', space=vmem, size = 0x200, scoped, tag = 'scoped memory for tpu_custom_call.1']
  %s0 = inlined_call_operand.vmem [shape: f32[1024,1], index: 0, kind: input, shape index: {}]
  %s1 = inlined_call_operand.vmem [shape: f32[1024,3], index: 1, kind: input, shape index: {}]
  %s2 = inlined_call_operand.vmem [shape: f32[1,16], index: 2, kind: input, shape index: {}]
  %s3 = inlined_call_operand.<no memory space> [shape: f32[1,1], index: 3, kind: input, shape index: {}]
  %s4 = inlined_call_operand.vmem [shape: f32[16,16], index: 4, kind: input, shape index: {}]
  %s5 = inlined_call_operand.vmem [shape: f32[1,16], index: 5, kind: input, shape index: {}]
  %s6 = inlined_call_operand.vmem [shape: f32[1,16], index: 6, kind: input, shape index: {}]
  %s7 = inlined_call_operand.vmem [shape: f32[16,1], index: 7, kind: input, shape index: {}]
  %s8 = inlined_call_operand.<no memory space> [shape: f32[1,1], index: 8, kind: input, shape index: {}]
  %s9 = inlined_call_operand.<no memory space> [shape: f32[1,1], index: 9, kind: input, shape index: {}]
  %s10 = inlined_call_operand.vmem [shape: f32[1024,16], index: 10, kind: output, shape index: {0}]
  %s11 = inlined_call_operand.vmem [shape: f32[1024,3], index: 11, kind: output, shape index: {1}]
  %12 = xla_tuple %s10, %s11
  %s13 = sld [smem:[#allocation0]]
  $region81: #{tpu_custom_call.1} parent=0
    _
  %s15 = ssub.s32 1, %s13
  %s16 = scalar_select 0, %s15, %s13
  %v17 = vstv %s3
  %18 = vst [vmem:[#allocation2] sm:$0x1] %v17
  %v19 = vstv %s8
  %20 = vst [vmem:[#allocation3] sm:$0x1] %v19
  %v21 = vstv %s9
  %22 = vst [vmem:[#allocation4] sm:$0x1] %v21
  loop: start=0, step=1, limit=4
  $region2: #{tpu_custom_call.1} parent=0 // loop_pre_header
    _
  $region3: #{tpu_custom_call.1} parent=0 // loop_header
    %s24 = sphi 0, %s28
    %p25 = scmp.ge.s32.totalorder %s24, 4
    %s34 = sphi 0, %s36
    %s37 = sphi 0, %s34
    %s38 = sphi 0, %s37
    %s54 = sphi 0, %s38
    %s60 = sphi 0, %s62
    %s63 = sphi 0, %s60
    %s64 = sphi 0, %s63
    %s80 = sphi 0, %s64
    %s84 = sphi 0, %s84
    %s86 = sphi 0, %s84
    %s87 = sphi 0, %s86
    %s101 = sphi 0, %s87
    %s105 = sphi 0, %s105
    %s107 = sphi 0, %s105
    %s108 = sphi 0, %s107
    %s122 = sphi 0, %s108
    %s126 = sphi 0, %s126
    %s128 = sphi 0, %s126
    %s129 = sphi 0, %s128
    %s143 = sphi 0, %s129
    %s147 = sphi 0, %s147
    %s149 = sphi 0, %s147
    %s150 = sphi 0, %s149
    %s164 = sphi 0, %s150
    %s168 = sphi 0, %s168
    %s170 = sphi 0, %s168
    %s171 = sphi 0, %s170
    %s185 = sphi 0, %s171
    %s189 = sphi 0, %s189
    %s191 = sphi 0, %s189
    %s192 = sphi 0, %s191
    %s206 = sphi 0, %s192
    %s210 = sphi 0, %s210
    %s212 = sphi 0, %s210
    %s213 = sphi 0, %s212
    %s227 = sphi 0, %s213
    %s231 = sphi 0, %s231
    %s233 = sphi 0, %s231
    %s234 = sphi 0, %s233
    %s248 = sphi 0, %s234
    %s254 = sphi 0, %s256
    %s257 = sphi 0, %s254
    %s258 = sphi 0, %s257
    %s274 = sphi 0, %s258
    %s280 = sphi 0, %s282
    %s283 = sphi 0, %s280
    %s284 = sphi 0, %s283
    %s300 = sphi 0, %s284
  $region4: #{tpu_custom_call.1} parent=0 // loop_header_branch
    %27 = sbr.rel (%p25) target = $region8
  $region5: #{tpu_custom_call.1} parent=0 // loop_body
    %s29 = ssub.s32 %s24, 1
    %s30 = ssub.s32 %s24, 2
    %s31 = sadd.s32 %s24, 1
    %s32 = ssub.s32 %s24, %s31
    %p33 = scmp.eq.s32.totalorder %s32, 0
    %s35 = sadd.s32 %s34, 1
    %s36 = scalar_select %p33, %s34, %s35
    %p39 = pneg %p33
    %p40 = scmp.eq.s32.totalorder %s24, 1
    %p41 = por %p39, %p40
    %p42 = scmp.ne.s32.totalorder %s34, %s37
    %p43 = scmp.eq.s32.totalorder %s24, 0
    %p44 = por %p42, %p43
    %p45 = scmp.ne.s32.totalorder %s34, %s37
    %p46 = scmp.eq.s32.totalorder %s29, 1
    %p47 = por %p45, %p46
    %p48 = scmp.ne.s32.totalorder %s37, %s38
    %p49 = scmp.eq.s32.totalorder %s29, 0
    %p50 = por %p48, %p49
    %p51 = scmp.ne.s32.totalorder %s37, %s38
    %p52 = scmp.eq.s32.totalorder %s30, 1
    %p53 = por %p51, %p52
    %p55 = scmp.ne.s32.totalorder %s38, %s54
    %p56 = scmp.eq.s32.totalorder %s30, 0
    %p57 = por %p55, %p56
    %s58 = ssub.s32 %s24, %s31
    %p59 = scmp.eq.s32.totalorder %s58, 0
    %s61 = sadd.s32 %s60, 1
    %s62 = scalar_select %p59, %s60, %s61
    %p65 = pneg %p59
    %p66 = scmp.eq.s32.totalorder %s24, 1
    %p67 = por %p65, %p66
    %p68 = scmp.ne.s32.totalorder %s60, %s63
    %p69 = scmp.eq.s32.totalorder %s24, 0
    %p70 = por %p68, %p69
    %p71 = scmp.ne.s32.totalorder %s60, %s63
    %p72 = scmp.eq.s32.totalorder %s29, 1
    %p73 = por %p71, %p72
    %p74 = scmp.ne.s32.totalorder %s63, %s64
    %p75 = scmp.eq.s32.totalorder %s29, 0
    %p76 = por %p74, %p75
    %p77 = scmp.ne.s32.totalorder %s63, %s64
    %p78 = scmp.eq.s32.totalorder %s30, 1
    %p79 = por %p77, %p78
    %p81 = scmp.ne.s32.totalorder %s64, %s80
    %p82 = scmp.eq.s32.totalorder %s30, 0
    %p83 = por %p81, %p82
    %s85 = sadd.s32 %s84, 1
    %p88 = scmp.eq.s32.totalorder %s24, 1
    %p89 = scmp.ne.s32.totalorder %s84, %s86
    %p90 = scmp.eq.s32.totalorder %s24, 0
    %p91 = por %p89, %p90
    %p92 = scmp.ne.s32.totalorder %s84, %s86
    %p93 = scmp.eq.s32.totalorder %s29, 1
    %p94 = por %p92, %p93
    %p95 = scmp.ne.s32.totalorder %s86, %s87
    %p96 = scmp.eq.s32.totalorder %s29, 0
    %p97 = por %p95, %p96
    %p98 = scmp.ne.s32.totalorder %s86, %s87
    %p99 = scmp.eq.s32.totalorder %s30, 1
    %p100 = por %p98, %p99
    %p102 = scmp.ne.s32.totalorder %s87, %s101
    %p103 = scmp.eq.s32.totalorder %s30, 0
    %p104 = por %p102, %p103
    %s106 = sadd.s32 %s105, 1
    %p109 = scmp.eq.s32.totalorder %s24, 1
    %p110 = scmp.ne.s32.totalorder %s105, %s107
    %p111 = scmp.eq.s32.totalorder %s24, 0
    %p112 = por %p110, %p111
    %p113 = scmp.ne.s32.totalorder %s105, %s107
    %p114 = scmp.eq.s32.totalorder %s29, 1
    %p115 = por %p113, %p114
    %p116 = scmp.ne.s32.totalorder %s107, %s108
    %p117 = scmp.eq.s32.totalorder %s29, 0
    %p118 = por %p116, %p117
    %p119 = scmp.ne.s32.totalorder %s107, %s108
    %p120 = scmp.eq.s32.totalorder %s30, 1
    %p121 = por %p119, %p120
    %p123 = scmp.ne.s32.totalorder %s108, %s122
    %p124 = scmp.eq.s32.totalorder %s30, 0
    %p125 = por %p123, %p124
    %s127 = sadd.s32 %s126, 1
    %p130 = scmp.eq.s32.totalorder %s24, 1
    %p131 = scmp.ne.s32.totalorder %s126, %s128
    %p132 = scmp.eq.s32.totalorder %s24, 0
    %p133 = por %p131, %p132
    %p134 = scmp.ne.s32.totalorder %s126, %s128
    %p135 = scmp.eq.s32.totalorder %s29, 1
    %p136 = por %p134, %p135
    %p137 = scmp.ne.s32.totalorder %s128, %s129
    %p138 = scmp.eq.s32.totalorder %s29, 0
    %p139 = por %p137, %p138
    %p140 = scmp.ne.s32.totalorder %s128, %s129
    %p141 = scmp.eq.s32.totalorder %s30, 1
    %p142 = por %p140, %p141
    %p144 = scmp.ne.s32.totalorder %s129, %s143
    %p145 = scmp.eq.s32.totalorder %s30, 0
    %p146 = por %p144, %p145
    %s148 = sadd.s32 %s147, 1
    %p151 = scmp.eq.s32.totalorder %s24, 1
    %p152 = scmp.ne.s32.totalorder %s147, %s149
    %p153 = scmp.eq.s32.totalorder %s24, 0
    %p154 = por %p152, %p153
    %p155 = scmp.ne.s32.totalorder %s147, %s149
    %p156 = scmp.eq.s32.totalorder %s29, 1
    %p157 = por %p155, %p156
    %p158 = scmp.ne.s32.totalorder %s149, %s150
    %p159 = scmp.eq.s32.totalorder %s29, 0
    %p160 = por %p158, %p159
    %p161 = scmp.ne.s32.totalorder %s149, %s150
    %p162 = scmp.eq.s32.totalorder %s30, 1
    %p163 = por %p161, %p162
    %p165 = scmp.ne.s32.totalorder %s150, %s164
    %p166 = scmp.eq.s32.totalorder %s30, 0
    %p167 = por %p165, %p166
    %s169 = sadd.s32 %s168, 1
    %p172 = scmp.eq.s32.totalorder %s24, 1
    %p173 = scmp.ne.s32.totalorder %s168, %s170
    %p174 = scmp.eq.s32.totalorder %s24, 0
    %p175 = por %p173, %p174
    %p176 = scmp.ne.s32.totalorder %s168, %s170
    %p177 = scmp.eq.s32.totalorder %s29, 1
    %p178 = por %p176, %p177
    %p179 = scmp.ne.s32.totalorder %s170, %s171
    %p180 = scmp.eq.s32.totalorder %s29, 0
    %p181 = por %p179, %p180
    %p182 = scmp.ne.s32.totalorder %s170, %s171
    %p183 = scmp.eq.s32.totalorder %s30, 1
    %p184 = por %p182, %p183
    %p186 = scmp.ne.s32.totalorder %s171, %s185
    %p187 = scmp.eq.s32.totalorder %s30, 0
    %p188 = por %p186, %p187
    %s190 = sadd.s32 %s189, 1
    %p193 = scmp.eq.s32.totalorder %s24, 1
    %p194 = scmp.ne.s32.totalorder %s189, %s191
    %p195 = scmp.eq.s32.totalorder %s24, 0
    %p196 = por %p194, %p195
    %p197 = scmp.ne.s32.totalorder %s189, %s191
    %p198 = scmp.eq.s32.totalorder %s29, 1
    %p199 = por %p197, %p198
    %p200 = scmp.ne.s32.totalorder %s191, %s192
    %p201 = scmp.eq.s32.totalorder %s29, 0
    %p202 = por %p200, %p201
    %p203 = scmp.ne.s32.totalorder %s191, %s192
    %p204 = scmp.eq.s32.totalorder %s30, 1
    %p205 = por %p203, %p204
    %p207 = scmp.ne.s32.totalorder %s192, %s206
    %p208 = scmp.eq.s32.totalorder %s30, 0
    %p209 = por %p207, %p208
    %s211 = sadd.s32 %s210, 1
    %p214 = scmp.eq.s32.totalorder %s24, 1
    %p215 = scmp.ne.s32.totalorder %s210, %s212
    %p216 = scmp.eq.s32.totalorder %s24, 0
    %p217 = por %p215, %p216
    %p218 = scmp.ne.s32.totalorder %s210, %s212
    %p219 = scmp.eq.s32.totalorder %s29, 1
    %p220 = por %p218, %p219
    %p221 = scmp.ne.s32.totalorder %s212, %s213
    %p222 = scmp.eq.s32.totalorder %s29, 0
    %p223 = por %p221, %p222
    %p224 = scmp.ne.s32.totalorder %s212, %s213
    %p225 = scmp.eq.s32.totalorder %s30, 1
    %p226 = por %p224, %p225
    %p228 = scmp.ne.s32.totalorder %s213, %s227
    %p229 = scmp.eq.s32.totalorder %s30, 0
    %p230 = por %p228, %p229
    %s232 = sadd.s32 %s231, 1
    %p235 = scmp.eq.s32.totalorder %s24, 1
    %p236 = scmp.ne.s32.totalorder %s231, %s233
    %p237 = scmp.eq.s32.totalorder %s24, 0
    %p238 = por %p236, %p237
    %p239 = scmp.ne.s32.totalorder %s231, %s233
    %p240 = scmp.eq.s32.totalorder %s29, 1
    %p241 = por %p239, %p240
    %p242 = scmp.ne.s32.totalorder %s233, %s234
    %p243 = scmp.eq.s32.totalorder %s29, 0
    %p244 = por %p242, %p243
    %p245 = scmp.ne.s32.totalorder %s233, %s234
    %p246 = scmp.eq.s32.totalorder %s30, 1
    %p247 = por %p245, %p246
    %p249 = scmp.ne.s32.totalorder %s234, %s248
    %p250 = scmp.eq.s32.totalorder %s30, 0
    %p251 = por %p249, %p250
    %s252 = ssub.s32 %s24, %s31
    %p253 = scmp.eq.s32.totalorder %s252, 0
    %s255 = sadd.s32 %s254, 1
    %s256 = scalar_select %p253, %s254, %s255
    %p259 = pneg %p253
    %p260 = scmp.eq.s32.totalorder %s24, 1
    %p261 = por %p259, %p260
    %p262 = scmp.ne.s32.totalorder %s254, %s257
    %p263 = scmp.eq.s32.totalorder %s24, 0
    %p264 = por %p262, %p263
    %p265 = scmp.ne.s32.totalorder %s254, %s257
    %p266 = scmp.eq.s32.totalorder %s29, 1
    %p267 = por %p265, %p266
    %p268 = scmp.ne.s32.totalorder %s257, %s258
    %p269 = scmp.eq.s32.totalorder %s29, 0
    %p270 = por %p268, %p269
    %p271 = scmp.ne.s32.totalorder %s257, %s258
    %p272 = scmp.eq.s32.totalorder %s30, 1
    %p273 = por %p271, %p272
    %p275 = scmp.ne.s32.totalorder %s258, %s274
    %p276 = scmp.eq.s32.totalorder %s30, 0
    %p277 = por %p275, %p276
    %s278 = ssub.s32 %s24, %s31
    %p279 = scmp.eq.s32.totalorder %s278, 0
    %s281 = sadd.s32 %s280, 1
    %s282 = scalar_select %p279, %s280, %s281
    %p285 = pneg %p279
    %p286 = scmp.eq.s32.totalorder %s24, 1
    %p287 = por %p285, %p286
    %p288 = scmp.ne.s32.totalorder %s280, %s283
    %p289 = scmp.eq.s32.totalorder %s24, 0
    %p290 = por %p288, %p289
    %p291 = scmp.ne.s32.totalorder %s280, %s283
    %p292 = scmp.eq.s32.totalorder %s29, 1
    %p293 = por %p291, %p292
    %p294 = scmp.ne.s32.totalorder %s283, %s284
    %p295 = scmp.eq.s32.totalorder %s29, 0
    %p296 = por %p294, %p295
    %p297 = scmp.ne.s32.totalorder %s283, %s284
    %p298 = scmp.eq.s32.totalorder %s30, 1
    %p299 = por %p297, %p298
    %p301 = scmp.ne.s32.totalorder %s284, %s300
    %p302 = scmp.eq.s32.totalorder %s30, 0
    %p303 = por %p301, %p302
    %p304 = scmp.le.s32.totalorder 1, %s24
    %p305 = scmp.lt.s32.totalorder %s24, 3
    %p306 = pnand %p304, %p305
    %p307 = pneg %p306
    // Predicated region
    $region9: #{tpu_custom_call.1} parent=5 // pred_check
      _
    $region10: #{tpu_custom_call.1} parent=5 // pred_check_branch
      %309 = sbr.rel (%p306) target = $region12
    $region11: #{tpu_custom_call.1} parent=5 // pred_region
      %s310 = ssub.s32 %s24, 1
      // Predicated region
      $region13: #{tpu_custom_call.1} parent=11 // pred_check
        %p311 = pneg %p97
      $region14: #{tpu_custom_call.1} parent=11 // pred_check_branch
        %313 = sbr.rel (%p311) target = $region16
      $region15: #{tpu_custom_call.1} parent=11 // pred_region
        _
      $region16: #{tpu_custom_call.1} parent=11 // pred_fallthru
        _
      // Predicated region
      $region17: #{tpu_custom_call.1} parent=11 // pred_check
        %p314 = pneg %p118
      $region18: #{tpu_custom_call.1} parent=11 // pred_check_branch
        %316 = sbr.rel (%p314) target = $region20
      $region19: #{tpu_custom_call.1} parent=11 // pred_region
        _
      $region20: #{tpu_custom_call.1} parent=11 // pred_fallthru
        _
      // Predicated region
      $region21: #{tpu_custom_call.1} parent=11 // pred_check
        %p317 = pneg %p139
      $region22: #{tpu_custom_call.1} parent=11 // pred_check_branch
        %319 = sbr.rel (%p317) target = $region24
      $region23: #{tpu_custom_call.1} parent=11 // pred_region
        _
      $region24: #{tpu_custom_call.1} parent=11 // pred_fallthru
        _
      // Predicated region
      $region25: #{tpu_custom_call.1} parent=11 // pred_check
        %p320 = pneg %p160
      $region26: #{tpu_custom_call.1} parent=11 // pred_check_branch
        %322 = sbr.rel (%p320) target = $region28
      $region27: #{tpu_custom_call.1} parent=11 // pred_region
        _
      $region28: #{tpu_custom_call.1} parent=11 // pred_fallthru
        _
      // Predicated region
      $region29: #{tpu_custom_call.1} parent=11 // pred_check
        %p323 = pneg %p181
      $region30: #{tpu_custom_call.1} parent=11 // pred_check_branch
        %325 = sbr.rel (%p323) target = $region32
      $region31: #{tpu_custom_call.1} parent=11 // pred_region
        _
      $region32: #{tpu_custom_call.1} parent=11 // pred_fallthru
        _
      // Predicated region
      $region33: #{tpu_custom_call.1} parent=11 // pred_check
        %p326 = pneg %p202
      $region34: #{tpu_custom_call.1} parent=11 // pred_check_branch
        %328 = sbr.rel (%p326) target = $region36
      $region35: #{tpu_custom_call.1} parent=11 // pred_region
        _
      $region36: #{tpu_custom_call.1} parent=11 // pred_fallthru
        _
      // Predicated region
      $region37: #{tpu_custom_call.1} parent=11 // pred_check
        %p329 = pneg %p223
      $region38: #{tpu_custom_call.1} parent=11 // pred_check_branch
        %331 = sbr.rel (%p329) target = $region40
      $region39: #{tpu_custom_call.1} parent=11 // pred_region
        _
      $region40: #{tpu_custom_call.1} parent=11 // pred_fallthru
        _
      // Predicated region
      $region41: #{tpu_custom_call.1} parent=11 // pred_check
        %p332 = pneg %p244
      $region42: #{tpu_custom_call.1} parent=11 // pred_check_branch
        %334 = sbr.rel (%p332) target = $region44
      $region43: #{tpu_custom_call.1} parent=11 // pred_region
        _
      $region44: #{tpu_custom_call.1} parent=11 // pred_fallthru
        _
    $region12: #{tpu_custom_call.1} parent=5 // pred_fallthru
      _
    %p335 = scmp.lt.s32.totalorder %s24, 2
    // Predicated region
    $region45: #{tpu_custom_call.1} parent=5 // pred_check
      %p336 = pneg %p335
    $region46: #{tpu_custom_call.1} parent=5 // pred_check_branch
      %338 = sbr.rel (%p336) target = $region48
    $region47: #{tpu_custom_call.1} parent=5 // pred_region
      // Predicated region
      $region49: #{tpu_custom_call.1} parent=47 // pred_check
        %p339 = pneg %p44
      $region50: #{tpu_custom_call.1} parent=47 // pred_check_branch
        %341 = sbr.rel (%p339) target = $region52
      $region51: #{tpu_custom_call.1} parent=47 // pred_region
        %s342 = smul.u32 64, %s24
        %p343 = scmp.lt.s32.totalorder %s342, 127
        %s344 = scalar_select %p343, %s342, 127
        %s345 = smul.addr %s344, 8
        %s346 = scalar_lea.vmem %s0, %s345
        %s347 = smul.u32 64, %s24
      $region52: #{tpu_custom_call.1} parent=47 // pred_fallthru
        _
      // Predicated region
      $region53: #{tpu_custom_call.1} parent=47 // pred_check
        %p348 = pneg %p70
      $region54: #{tpu_custom_call.1} parent=47 // pred_check_branch
        %350 = sbr.rel (%p348) target = $region56
      $region55: #{tpu_custom_call.1} parent=47 // pred_region
        %s351 = smul.u32 64, %s24
        %p352 = scmp.lt.s32.totalorder %s351, 127
        %s353 = scalar_select %p352, %s351, 127
        %s354 = smul.addr %s353, 8
        %s355 = scalar_lea.vmem %s1, %s354
        %s356 = smul.u32 64, %s24
      $region56: #{tpu_custom_call.1} parent=47 // pred_fallthru
        _
    $region48: #{tpu_custom_call.1} parent=5 // pred_fallthru
      _
    %p357 = scmp.le.s32.totalorder 1, %s24
    %p358 = scmp.lt.s32.totalorder %s24, 3
    %p359 = pnand %p357, %p358
    %p360 = pneg %p359
    // Predicated region
    $region57: #{tpu_custom_call.1} parent=5 // pred_check
      _
    $region58: #{tpu_custom_call.1} parent=5 // pred_check_branch
      %362 = sbr.rel (%p359) target = $region60
    $region59: #{tpu_custom_call.1} parent=5 // pred_region
      %s363 = ssub.s32 %s24, 1
      %s364 = smul.u32 64, %s29
      %p365 = scmp.lt.s32.totalorder %s364, 127
      %s366 = scalar_select %p365, %s364, 127
      %s367 = smul.addr %s366, 8
      %s368 = scalar_lea.vmem %s0, %s367
      %p369 = pneg %p50
      %p370 = pneg %p47
      %s371 = smul.u32 64, %s29
      %p372 = scmp.lt.s32.totalorder %s371, 127
      %s373 = scalar_select %p372, %s371, 127
      %s374 = smul.addr %s373, 8
      %s375 = scalar_lea.vmem %s1, %s374
      %p376 = pneg %p76
      %p377 = pneg %p73
      %p378 = pneg %p97
      %p379 = pneg %p94
      %p380 = pneg %p118
      %p381 = pneg %p115
      %p382 = pneg %p139
      %p383 = pneg %p136
      %p384 = pneg %p160
      %p385 = pneg %p157
      %p386 = pneg %p181
      %p387 = pneg %p178
      %p388 = pneg %p202
      %p389 = pneg %p199
      %p390 = pneg %p223
      %p391 = pneg %p220
      %p392 = pneg %p244
      %p393 = pneg %p241
      %p394 = pneg %p270
      %p395 = pneg %p267
      %s396 = smul.u32 64, %s29
      %p397 = scmp.lt.s32.totalorder %s396, 127
      %s398 = scalar_select %p397, %s396, 127
      %s399 = smul.addr %s398, 8
      %s400 = scalar_lea.vmem %s10, %s399
      %p401 = pneg %p296
      %p402 = pneg %p293
      %s403 = smul.u32 64, %s29
      %p404 = scmp.lt.s32.totalorder %s403, 127
      %s405 = scalar_select %p404, %s403, 127
      %s406 = smul.addr %s405, 8
      %s407 = scalar_lea.vmem %s11, %s406
      %s408 = smul.u32 64, %s29
      %p409 = scmp.lt.s32.totalorder %s408, 127
      %s410 = scalar_select %p409, %s408, 127
      %s411 = smul.addr %s410, 8
      %s412 = scalar_lea.vmem %s0, %s411
      %s413 = smul.u32 64, %s29
      %s414 = smul.u32 64, %s29
      %p415 = scmp.lt.s32.totalorder %s414, 127
      %s416 = scalar_select %p415, %s414, 127
      %s417 = smul.addr %s416, 8
      %s418 = scalar_lea.vmem %s1, %s417
      %s419 = smul.u32 64, %s29
      %s420 = smul.u32 64, %s29
      %p421 = scmp.lt.s32.totalorder %s420, 127
      %s422 = scalar_select %p421, %s420, 127
      %s423 = smul.addr %s422, 8
      %s424 = scalar_lea.vmem %s10, %s423
      %s425 = smul.u32 64, %s29
      %s426 = smul.u32 64, %s29
      %p427 = scmp.lt.s32.totalorder %s426, 127
      %s428 = scalar_select %p427, %s426, 127
      %s429 = smul.addr %s428, 8
      %s430 = scalar_lea.vmem %s11, %s429
      %s431 = smul.u32 64, %s29
      %v432 = vld [vmem:[%s412] sm:$0xff]
      %v433 = vld [vmem:[%s412 + $0x8] sm:$0xff]
      %v434 = vld [vmem:[%s412 + $0x10] sm:$0xff]
      %v435 = vld [vmem:[%s412 + $0x18] sm:$0xff]
      %v436 = vld [vmem:[%s412 + $0x20] sm:$0xff]
      %v437 = vld [vmem:[%s412 + $0x28] sm:$0xff]
      %v438 = vld [vmem:[%s412 + $0x30] sm:$0xff]
      %v439 = vld [vmem:[%s412 + $0x38] sm:$0xff]
      %v440 = vld [vmem:[%s412 + $0x40] sm:$0xff]
      %v441 = vld [vmem:[%s412 + $0x48] sm:$0xff]
      %v442 = vld [vmem:[%s412 + $0x50] sm:$0xff]
      %v443 = vld [vmem:[%s412 + $0x58] sm:$0xff]
      %v444 = vld [vmem:[%s412 + $0x60] sm:$0xff]
      %v445 = vld [vmem:[%s412 + $0x68] sm:$0xff]
      %v446 = vld [vmem:[%s412 + $0x70] sm:$0xff]
      %v447 = vld [vmem:[%s412 + $0x78] sm:$0xff]
      %v448 = vld [vmem:[%s412 + $0x80] sm:$0xff]
      %v449 = vld [vmem:[%s412 + $0x88] sm:$0xff]
      %v450 = vld [vmem:[%s412 + $0x90] sm:$0xff]
      %v451 = vld [vmem:[%s412 + $0x98] sm:$0xff]
      %v452 = vld [vmem:[%s412 + $0xa0] sm:$0xff]
      %v453 = vld [vmem:[%s412 + $0xa8] sm:$0xff]
      %v454 = vld [vmem:[%s412 + $0xb0] sm:$0xff]
      %v455 = vld [vmem:[%s412 + $0xb8] sm:$0xff]
      %v456 = vld [vmem:[%s412 + $0xc0] sm:$0xff]
      %v457 = vld [vmem:[%s412 + $0xc8] sm:$0xff]
      %v458 = vld [vmem:[%s412 + $0xd0] sm:$0xff]
      %v459 = vld [vmem:[%s412 + $0xd8] sm:$0xff]
      %v460 = vld [vmem:[%s412 + $0xe0] sm:$0xff]
      %v461 = vld [vmem:[%s412 + $0xe8] sm:$0xff]
      %v462 = vld [vmem:[%s412 + $0xf0] sm:$0xff]
      %v463 = vld [vmem:[%s412 + $0xf8] sm:$0xff]
      %v464 = vld [vmem:[%s412 + $0x100] sm:$0xff]
      %v465 = vld [vmem:[%s412 + $0x108] sm:$0xff]
      %v466 = vld [vmem:[%s412 + $0x110] sm:$0xff]
      %v467 = vld [vmem:[%s412 + $0x118] sm:$0xff]
      %v468 = vld [vmem:[%s412 + $0x120] sm:$0xff]
      %v469 = vld [vmem:[%s412 + $0x128] sm:$0xff]
      %v470 = vld [vmem:[%s412 + $0x130] sm:$0xff]
      %v471 = vld [vmem:[%s412 + $0x138] sm:$0xff]
      %v472 = vld [vmem:[%s412 + $0x140] sm:$0xff]
      %v473 = vld [vmem:[%s412 + $0x148] sm:$0xff]
      %v474 = vld [vmem:[%s412 + $0x150] sm:$0xff]
      %v475 = vld [vmem:[%s412 + $0x158] sm:$0xff]
      %v476 = vld [vmem:[%s412 + $0x160] sm:$0xff]
      %v477 = vld [vmem:[%s412 + $0x168] sm:$0xff]
      %v478 = vld [vmem:[%s412 + $0x170] sm:$0xff]
      %v479 = vld [vmem:[%s412 + $0x178] sm:$0xff]
      %v480 = vld [vmem:[%s412 + $0x180] sm:$0xff]
      %v481 = vld [vmem:[%s412 + $0x188] sm:$0xff]
      %v482 = vld [vmem:[%s412 + $0x190] sm:$0xff]
      %v483 = vld [vmem:[%s412 + $0x198] sm:$0xff]
      %v484 = vld [vmem:[%s412 + $0x1a0] sm:$0xff]
      %v485 = vld [vmem:[%s412 + $0x1a8] sm:$0xff]
      %v486 = vld [vmem:[%s412 + $0x1b0] sm:$0xff]
      %v487 = vld [vmem:[%s412 + $0x1b8] sm:$0xff]
      %v488 = vld [vmem:[%s412 + $0x1c0] sm:$0xff]
      %v489 = vld [vmem:[%s412 + $0x1c8] sm:$0xff]
      %v490 = vld [vmem:[%s412 + $0x1d0] sm:$0xff]
      %v491 = vld [vmem:[%s412 + $0x1d8] sm:$0xff]
      %v492 = vld [vmem:[%s412 + $0x1e0] sm:$0xff]
      %v493 = vld [vmem:[%s412 + $0x1e8] sm:$0xff]
      %v494 = vld [vmem:[%s412 + $0x1f0] sm:$0xff]
      %v495 = vld [vmem:[%s412 + $0x1f8] sm:$0xff]
      %v496 = vld [vmem:[%s2] sm:$0x1]
      %498 = vset.pattern.permute.xlu0 0
      %499 = vperm.xlu0 %498, %v432
      %v500 = vpop.permute.xlu0 %499
      %503 = vset.pattern.permute.xlu0 0
      %504 = vperm.xlu0 %503, %v433
      %v505 = vpop.permute.xlu0 %504
      %508 = vset.pattern.permute.xlu0 0
      %509 = vperm.xlu0 %508, %v434
      %v510 = vpop.permute.xlu0 %509
      %513 = vset.pattern.permute.xlu0 0
      %514 = vperm.xlu0 %513, %v435
      %v515 = vpop.permute.xlu0 %514
      %518 = vset.pattern.permute.xlu0 0
      %519 = vperm.xlu0 %518, %v436
      %v520 = vpop.permute.xlu0 %519
      %523 = vset.pattern.permute.xlu0 0
      %524 = vperm.xlu0 %523, %v437
      %v525 = vpop.permute.xlu0 %524
      %528 = vset.pattern.permute.xlu0 0
      %529 = vperm.xlu0 %528, %v438
      %v530 = vpop.permute.xlu0 %529
      %533 = vset.pattern.permute.xlu0 0
      %534 = vperm.xlu0 %533, %v439
      %v535 = vpop.permute.xlu0 %534
      %538 = vset.pattern.permute.xlu0 0
      %539 = vperm.xlu0 %538, %v440
      %v540 = vpop.permute.xlu0 %539
      %543 = vset.pattern.permute.xlu0 0
      %544 = vperm.xlu0 %543, %v441
      %v545 = vpop.permute.xlu0 %544
      %548 = vset.pattern.permute.xlu0 0
      %549 = vperm.xlu0 %548, %v442
      %v550 = vpop.permute.xlu0 %549
      %553 = vset.pattern.permute.xlu0 0
      %554 = vperm.xlu0 %553, %v443
      %v555 = vpop.permute.xlu0 %554
      %558 = vset.pattern.permute.xlu0 0
      %559 = vperm.xlu0 %558, %v444
      %v560 = vpop.permute.xlu0 %559
      %563 = vset.pattern.permute.xlu0 0
      %564 = vperm.xlu0 %563, %v445
      %v565 = vpop.permute.xlu0 %564
      %568 = vset.pattern.permute.xlu0 0
      %569 = vperm.xlu0 %568, %v446
      %v570 = vpop.permute.xlu0 %569
      %573 = vset.pattern.permute.xlu0 0
      %574 = vperm.xlu0 %573, %v447
      %v575 = vpop.permute.xlu0 %574
      %578 = vset.pattern.permute.xlu0 0
      %579 = vperm.xlu0 %578, %v448
      %v580 = vpop.permute.xlu0 %579
      %583 = vset.pattern.permute.xlu0 0
      %584 = vperm.xlu0 %583, %v449
      %v585 = vpop.permute.xlu0 %584
      %588 = vset.pattern.permute.xlu0 0
      %589 = vperm.xlu0 %588, %v450
      %v590 = vpop.permute.xlu0 %589
      %593 = vset.pattern.permute.xlu0 0
      %594 = vperm.xlu0 %593, %v451
      %v595 = vpop.permute.xlu0 %594
      %598 = vset.pattern.permute.xlu0 0
      %599 = vperm.xlu0 %598, %v452
      %v600 = vpop.permute.xlu0 %599
      %603 = vset.pattern.permute.xlu0 0
      %604 = vperm.xlu0 %603, %v453
      %v605 = vpop.permute.xlu0 %604
      %608 = vset.pattern.permute.xlu0 0
      %609 = vperm.xlu0 %608, %v454
      %v610 = vpop.permute.xlu0 %609
      %613 = vset.pattern.permute.xlu0 0
      %614 = vperm.xlu0 %613, %v455
      %v615 = vpop.permute.xlu0 %614
      %618 = vset.pattern.permute.xlu0 0
      %619 = vperm.xlu0 %618, %v456
      %v620 = vpop.permute.xlu0 %619
      %623 = vset.pattern.permute.xlu0 0
      %624 = vperm.xlu0 %623, %v457
      %v625 = vpop.permute.xlu0 %624
      %628 = vset.pattern.permute.xlu0 0
      %629 = vperm.xlu0 %628, %v458
      %v630 = vpop.permute.xlu0 %629
      %633 = vset.pattern.permute.xlu0 0
      %634 = vperm.xlu0 %633, %v459
      %v635 = vpop.permute.xlu0 %634
      %638 = vset.pattern.permute.xlu0 0
      %639 = vperm.xlu0 %638, %v460
      %v640 = vpop.permute.xlu0 %639
      %643 = vset.pattern.permute.xlu0 0
      %644 = vperm.xlu0 %643, %v461
      %v645 = vpop.permute.xlu0 %644
      %648 = vset.pattern.permute.xlu0 0
      %649 = vperm.xlu0 %648, %v462
      %v650 = vpop.permute.xlu0 %649
      %653 = vset.pattern.permute.xlu0 0
      %654 = vperm.xlu0 %653, %v463
      %v655 = vpop.permute.xlu0 %654
      %658 = vset.pattern.permute.xlu0 0
      %659 = vperm.xlu0 %658, %v464
      %v660 = vpop.permute.xlu0 %659
      %663 = vset.pattern.permute.xlu0 0
      %664 = vperm.xlu0 %663, %v465
      %v665 = vpop.permute.xlu0 %664
      %668 = vset.pattern.permute.xlu0 0
      %669 = vperm.xlu0 %668, %v466
      %v670 = vpop.permute.xlu0 %669
      %673 = vset.pattern.permute.xlu0 0
      %674 = vperm.xlu0 %673, %v467
      %v675 = vpop.permute.xlu0 %674
      %678 = vset.pattern.permute.xlu0 0
      %679 = vperm.xlu0 %678, %v468
      %v680 = vpop.permute.xlu0 %679
      %683 = vset.pattern.permute.xlu0 0
      %684 = vperm.xlu0 %683, %v469
      %v685 = vpop.permute.xlu0 %684
      %688 = vset.pattern.permute.xlu0 0
      %689 = vperm.xlu0 %688, %v470
      %v690 = vpop.permute.xlu0 %689
      %693 = vset.pattern.permute.xlu0 0
      %694 = vperm.xlu0 %693, %v471
      %v695 = vpop.permute.xlu0 %694
      %698 = vset.pattern.permute.xlu0 0
      %699 = vperm.xlu0 %698, %v472
      %v700 = vpop.permute.xlu0 %699
      %703 = vset.pattern.permute.xlu0 0
      %704 = vperm.xlu0 %703, %v473
      %v705 = vpop.permute.xlu0 %704
      %708 = vset.pattern.permute.xlu0 0
      %709 = vperm.xlu0 %708, %v474
      %v710 = vpop.permute.xlu0 %709
      %713 = vset.pattern.permute.xlu0 0
      %714 = vperm.xlu0 %713, %v475
      %v715 = vpop.permute.xlu0 %714
      %718 = vset.pattern.permute.xlu0 0
      %719 = vperm.xlu0 %718, %v476
      %v720 = vpop.permute.xlu0 %719
      %723 = vset.pattern.permute.xlu0 0
      %724 = vperm.xlu0 %723, %v477
      %v725 = vpop.permute.xlu0 %724
      %728 = vset.pattern.permute.xlu0 0
      %729 = vperm.xlu0 %728, %v478
      %v730 = vpop.permute.xlu0 %729
      %733 = vset.pattern.permute.xlu0 0
      %734 = vperm.xlu0 %733, %v479
      %v735 = vpop.permute.xlu0 %734
      %738 = vset.pattern.permute.xlu0 0
      %739 = vperm.xlu0 %738, %v480
      %v740 = vpop.permute.xlu0 %739
      %743 = vset.pattern.permute.xlu0 0
      %744 = vperm.xlu0 %743, %v481
      %v745 = vpop.permute.xlu0 %744
      %748 = vset.pattern.permute.xlu0 0
      %749 = vperm.xlu0 %748, %v482
      %v750 = vpop.permute.xlu0 %749
      %753 = vset.pattern.permute.xlu0 0
      %754 = vperm.xlu0 %753, %v483
      %v755 = vpop.permute.xlu0 %754
      %758 = vset.pattern.permute.xlu0 0
      %759 = vperm.xlu0 %758, %v484
      %v760 = vpop.permute.xlu0 %759
      %763 = vset.pattern.permute.xlu0 0
      %764 = vperm.xlu0 %763, %v485
      %v765 = vpop.permute.xlu0 %764
      %768 = vset.pattern.permute.xlu0 0
      %769 = vperm.xlu0 %768, %v486
      %v770 = vpop.permute.xlu0 %769
      %773 = vset.pattern.permute.xlu0 0
      %774 = vperm.xlu0 %773, %v487
      %v775 = vpop.permute.xlu0 %774
      %778 = vset.pattern.permute.xlu0 0
      %779 = vperm.xlu0 %778, %v488
      %v780 = vpop.permute.xlu0 %779
      %783 = vset.pattern.permute.xlu0 0
      %784 = vperm.xlu0 %783, %v489
      %v785 = vpop.permute.xlu0 %784
      %788 = vset.pattern.permute.xlu0 0
      %789 = vperm.xlu0 %788, %v490
      %v790 = vpop.permute.xlu0 %789
      %793 = vset.pattern.permute.xlu0 0
      %794 = vperm.xlu0 %793, %v491
      %v795 = vpop.permute.xlu0 %794
      %798 = vset.pattern.permute.xlu0 0
      %799 = vperm.xlu0 %798, %v492
      %v800 = vpop.permute.xlu0 %799
      %803 = vset.pattern.permute.xlu0 0
      %804 = vperm.xlu0 %803, %v493
      %v805 = vpop.permute.xlu0 %804
      %808 = vset.pattern.permute.xlu0 0
      %809 = vperm.xlu0 %808, %v494
      %v810 = vpop.permute.xlu0 %809
      %813 = vset.pattern.permute.xlu0 0
      %814 = vperm.xlu0 %813, %v495
      %v815 = vpop.permute.xlu0 %814
      %v818 = vlaneseq
      %v819 = vshrl.u32 %v818, 7
      %v820 = vsub.s32 0, %v819
      %v821 = vrot.slane %v496, %v820
      %v823 = vsub.f32 %v500, %v821
      %v824 = vsub.f32 %v505, %v821
      %v825 = vsub.f32 %v510, %v821
      %v826 = vsub.f32 %v515, %v821
      %v827 = vsub.f32 %v520, %v821
      %v828 = vsub.f32 %v525, %v821
      %v829 = vsub.f32 %v530, %v821
      %v830 = vsub.f32 %v535, %v821
      %v831 = vsub.f32 %v540, %v821
      %v832 = vsub.f32 %v545, %v821
      %v833 = vsub.f32 %v550, %v821
      %v834 = vsub.f32 %v555, %v821
      %v835 = vsub.f32 %v560, %v821
      %v836 = vsub.f32 %v565, %v821
      %v837 = vsub.f32 %v570, %v821
      %v838 = vsub.f32 %v575, %v821
      %v839 = vsub.f32 %v580, %v821
      %v840 = vsub.f32 %v585, %v821
      %v841 = vsub.f32 %v590, %v821
      %v842 = vsub.f32 %v595, %v821
      %v843 = vsub.f32 %v600, %v821
      %v844 = vsub.f32 %v605, %v821
      %v845 = vsub.f32 %v610, %v821
      %v846 = vsub.f32 %v615, %v821
      %v847 = vsub.f32 %v620, %v821
      %v848 = vsub.f32 %v625, %v821
      %v849 = vsub.f32 %v630, %v821
      %v850 = vsub.f32 %v635, %v821
      %v851 = vsub.f32 %v640, %v821
      %v852 = vsub.f32 %v645, %v821
      %v853 = vsub.f32 %v650, %v821
      %v854 = vsub.f32 %v655, %v821
      %v855 = vsub.f32 %v660, %v821
      %v856 = vsub.f32 %v665, %v821
      %v857 = vsub.f32 %v670, %v821
      %v858 = vsub.f32 %v675, %v821
      %v859 = vsub.f32 %v680, %v821
      %v860 = vsub.f32 %v685, %v821
      %v861 = vsub.f32 %v690, %v821
      %v862 = vsub.f32 %v695, %v821
      %v863 = vsub.f32 %v700, %v821
      %v864 = vsub.f32 %v705, %v821
      %v865 = vsub.f32 %v710, %v821
      %v866 = vsub.f32 %v715, %v821
      %v867 = vsub.f32 %v720, %v821
      %v868 = vsub.f32 %v725, %v821
      %v869 = vsub.f32 %v730, %v821
      %v870 = vsub.f32 %v735, %v821
      %v871 = vsub.f32 %v740, %v821
      %v872 = vsub.f32 %v745, %v821
      %v873 = vsub.f32 %v750, %v821
      %v874 = vsub.f32 %v755, %v821
      %v875 = vsub.f32 %v760, %v821
      %v876 = vsub.f32 %v765, %v821
      %v877 = vsub.f32 %v770, %v821
      %v878 = vsub.f32 %v775, %v821
      %v879 = vsub.f32 %v780, %v821
      %v880 = vsub.f32 %v785, %v821
      %v881 = vsub.f32 %v790, %v821
      %v882 = vsub.f32 %v795, %v821
      %v883 = vsub.f32 %v800, %v821
      %v884 = vsub.f32 %v805, %v821
      %v885 = vsub.f32 %v810, %v821
      %v886 = vsub.f32 %v815, %v821
      %v887 = vmul.f32 %v823, %v823
      %v888 = vmul.f32 %v824, %v824
      %v889 = vmul.f32 %v825, %v825
      %v890 = vmul.f32 %v826, %v826
      %v891 = vmul.f32 %v827, %v827
      %v892 = vmul.f32 %v828, %v828
      %v893 = vmul.f32 %v829, %v829
      %v894 = vmul.f32 %v830, %v830
      %v895 = vmul.f32 %v831, %v831
      %v896 = vmul.f32 %v832, %v832
      %v897 = vmul.f32 %v833, %v833
      %v898 = vmul.f32 %v834, %v834
      %v899 = vmul.f32 %v835, %v835
      %v900 = vmul.f32 %v836, %v836
      %v901 = vmul.f32 %v837, %v837
      %v902 = vmul.f32 %v838, %v838
      %v903 = vmul.f32 %v839, %v839
      %v904 = vmul.f32 %v840, %v840
      %v905 = vmul.f32 %v841, %v841
      %v906 = vmul.f32 %v842, %v842
      %v907 = vmul.f32 %v843, %v843
      %v908 = vmul.f32 %v844, %v844
      %v909 = vmul.f32 %v845, %v845
      %v910 = vmul.f32 %v846, %v846
      %v911 = vmul.f32 %v847, %v847
      %v912 = vmul.f32 %v848, %v848
      %v913 = vmul.f32 %v849, %v849
      %v914 = vmul.f32 %v850, %v850
      %v915 = vmul.f32 %v851, %v851
      %v916 = vmul.f32 %v852, %v852
      %v917 = vmul.f32 %v853, %v853
      %v918 = vmul.f32 %v854, %v854
      %v919 = vmul.f32 %v855, %v855
      %v920 = vmul.f32 %v856, %v856
      %v921 = vmul.f32 %v857, %v857
      %v922 = vmul.f32 %v858, %v858
      %v923 = vmul.f32 %v859, %v859
      %v924 = vmul.f32 %v860, %v860
      %v925 = vmul.f32 %v861, %v861
      %v926 = vmul.f32 %v862, %v862
      %v927 = vmul.f32 %v863, %v863
      %v928 = vmul.f32 %v864, %v864
      %v929 = vmul.f32 %v865, %v865
      %v930 = vmul.f32 %v866, %v866
      %v931 = vmul.f32 %v867, %v867
      %v932 = vmul.f32 %v868, %v868
      %v933 = vmul.f32 %v869, %v869
      %v934 = vmul.f32 %v870, %v870
      %v935 = vmul.f32 %v871, %v871
      %v936 = vmul.f32 %v872, %v872
      %v937 = vmul.f32 %v873, %v873
      %v938 = vmul.f32 %v874, %v874
      %v939 = vmul.f32 %v875, %v875
      %v940 = vmul.f32 %v876, %v876
      %v941 = vmul.f32 %v877, %v877
      %v942 = vmul.f32 %v878, %v878
      %v943 = vmul.f32 %v879, %v879
      %v944 = vmul.f32 %v880, %v880
      %v945 = vmul.f32 %v881, %v881
      %v946 = vmul.f32 %v882, %v882
      %v947 = vmul.f32 %v883, %v883
      %v948 = vmul.f32 %v884, %v884
      %v949 = vmul.f32 %v885, %v885
      %v950 = vmul.f32 %v886, %v886
      %v951 = vmul.f32 %v887, -1.125
      %v952 = vmul.f32 %v888, -1.125
      %v953 = vmul.f32 %v889, -1.125
      %v954 = vmul.f32 %v890, -1.125
      %v955 = vmul.f32 %v891, -1.125
      %v956 = vmul.f32 %v892, -1.125
      %v957 = vmul.f32 %v893, -1.125
      %v958 = vmul.f32 %v894, -1.125
      %v959 = vmul.f32 %v895, -1.125
      %v960 = vmul.f32 %v896, -1.125
      %v961 = vmul.f32 %v897, -1.125
      %v962 = vmul.f32 %v898, -1.125
      %v963 = vmul.f32 %v899, -1.125
      %v964 = vmul.f32 %v900, -1.125
      %v965 = vmul.f32 %v901, -1.125
      %v966 = vmul.f32 %v902, -1.125
      %v967 = vmul.f32 %v903, -1.125
      %v968 = vmul.f32 %v904, -1.125
      %v969 = vmul.f32 %v905, -1.125
      %v970 = vmul.f32 %v906, -1.125
      %v971 = vmul.f32 %v907, -1.125
      %v972 = vmul.f32 %v908, -1.125
      %v973 = vmul.f32 %v909, -1.125
      %v974 = vmul.f32 %v910, -1.125
      %v975 = vmul.f32 %v911, -1.125
      %v976 = vmul.f32 %v912, -1.125
      %v977 = vmul.f32 %v913, -1.125
      %v978 = vmul.f32 %v914, -1.125
      %v979 = vmul.f32 %v915, -1.125
      %v980 = vmul.f32 %v916, -1.125
      %v981 = vmul.f32 %v917, -1.125
      %v982 = vmul.f32 %v918, -1.125
      %v983 = vmul.f32 %v919, -1.125
      %v984 = vmul.f32 %v920, -1.125
      %v985 = vmul.f32 %v921, -1.125
      %v986 = vmul.f32 %v922, -1.125
      %v987 = vmul.f32 %v923, -1.125
      %v988 = vmul.f32 %v924, -1.125
      %v989 = vmul.f32 %v925, -1.125
      %v990 = vmul.f32 %v926, -1.125
      %v991 = vmul.f32 %v927, -1.125
      %v992 = vmul.f32 %v928, -1.125
      %v993 = vmul.f32 %v929, -1.125
      %v994 = vmul.f32 %v930, -1.125
      %v995 = vmul.f32 %v931, -1.125
      %v996 = vmul.f32 %v932, -1.125
      %v997 = vmul.f32 %v933, -1.125
      %v998 = vmul.f32 %v934, -1.125
      %v999 = vmul.f32 %v935, -1.125
      %v1000 = vmul.f32 %v936, -1.125
      %v1001 = vmul.f32 %v937, -1.125
      %v1002 = vmul.f32 %v938, -1.125
      %v1003 = vmul.f32 %v939, -1.125
      %v1004 = vmul.f32 %v940, -1.125
      %v1005 = vmul.f32 %v941, -1.125
      %v1006 = vmul.f32 %v942, -1.125
      %v1007 = vmul.f32 %v943, -1.125
      %v1008 = vmul.f32 %v944, -1.125
      %v1009 = vmul.f32 %v945, -1.125
      %v1010 = vmul.f32 %v946, -1.125
      %v1011 = vmul.f32 %v947, -1.125
      %v1012 = vmul.f32 %v948, -1.125
      %v1013 = vmul.f32 %v949, -1.125
      %v1014 = vmul.f32 %v950, -1.125
      %v1015 = vmul.f32 %v951, 1.442695
      %v1016 = vpow.pop %v1015
      %v1017 = vmul.f32 %v952, 1.442695
      %v1018 = vpow.pop %v1017
      %v1019 = vmul.f32 %v953, 1.442695
      %v1020 = vpow.pop %v1019
      %v1021 = vmul.f32 %v954, 1.442695
      %v1022 = vpow.pop %v1021
      %v1023 = vmul.f32 %v955, 1.442695
      %v1024 = vpow.pop %v1023
      %v1025 = vmul.f32 %v956, 1.442695
      %v1026 = vpow.pop %v1025
      %v1027 = vmul.f32 %v957, 1.442695
      %v1028 = vpow.pop %v1027
      %v1029 = vmul.f32 %v958, 1.442695
      %v1030 = vpow.pop %v1029
      %v1031 = vmul.f32 %v959, 1.442695
      %v1032 = vpow.pop %v1031
      %v1033 = vmul.f32 %v960, 1.442695
      %v1034 = vpow.pop %v1033
      %v1035 = vmul.f32 %v961, 1.442695
      %v1036 = vpow.pop %v1035
      %v1037 = vmul.f32 %v962, 1.442695
      %v1038 = vpow.pop %v1037
      %v1039 = vmul.f32 %v963, 1.442695
      %v1040 = vpow.pop %v1039
      %v1041 = vmul.f32 %v964, 1.442695
      %v1042 = vpow.pop %v1041
      %v1043 = vmul.f32 %v965, 1.442695
      %v1044 = vpow.pop %v1043
      %v1045 = vmul.f32 %v966, 1.442695
      %v1046 = vpow.pop %v1045
      %v1047 = vmul.f32 %v967, 1.442695
      %v1048 = vpow.pop %v1047
      %v1049 = vmul.f32 %v968, 1.442695
      %v1050 = vpow.pop %v1049
      %v1051 = vmul.f32 %v969, 1.442695
      %v1052 = vpow.pop %v1051
      %v1053 = vmul.f32 %v970, 1.442695
      %v1054 = vpow.pop %v1053
      %v1055 = vmul.f32 %v971, 1.442695
      %v1056 = vpow.pop %v1055
      %v1057 = vmul.f32 %v972, 1.442695
      %v1058 = vpow.pop %v1057
      %v1059 = vmul.f32 %v973, 1.442695
      %v1060 = vpow.pop %v1059
      %v1061 = vmul.f32 %v974, 1.442695
      %v1062 = vpow.pop %v1061
      %v1063 = vmul.f32 %v975, 1.442695
      %v1064 = vpow.pop %v1063
      %v1065 = vmul.f32 %v976, 1.442695
      %v1066 = vpow.pop %v1065
      %v1067 = vmul.f32 %v977, 1.442695
      %v1068 = vpow.pop %v1067
      %v1069 = vmul.f32 %v978, 1.442695
      %v1070 = vpow.pop %v1069
      %v1071 = vmul.f32 %v979, 1.442695
      %v1072 = vpow.pop %v1071
      %v1073 = vmul.f32 %v980, 1.442695
      %v1074 = vpow.pop %v1073
      %v1075 = vmul.f32 %v981, 1.442695
      %v1076 = vpow.pop %v1075
      %v1077 = vmul.f32 %v982, 1.442695
      %v1078 = vpow.pop %v1077
      %v1079 = vmul.f32 %v983, 1.442695
      %v1080 = vpow.pop %v1079
      %v1081 = vmul.f32 %v984, 1.442695
      %v1082 = vpow.pop %v1081
      %v1083 = vmul.f32 %v985, 1.442695
      %v1084 = vpow.pop %v1083
      %v1085 = vmul.f32 %v986, 1.442695
      %v1086 = vpow.pop %v1085
      %v1087 = vmul.f32 %v987, 1.442695
      %v1088 = vpow.pop %v1087
      %v1089 = vmul.f32 %v988, 1.442695
      %v1090 = vpow.pop %v1089
      %v1091 = vmul.f32 %v989, 1.442695
      %v1092 = vpow.pop %v1091
      %v1093 = vmul.f32 %v990, 1.442695
      %v1094 = vpow.pop %v1093
      %v1095 = vmul.f32 %v991, 1.442695
      %v1096 = vpow.pop %v1095
      %v1097 = vmul.f32 %v992, 1.442695
      %v1098 = vpow.pop %v1097
      %v1099 = vmul.f32 %v993, 1.442695
      %v1100 = vpow.pop %v1099
      %v1101 = vmul.f32 %v994, 1.442695
      %v1102 = vpow.pop %v1101
      %v1103 = vmul.f32 %v995, 1.442695
      %v1104 = vpow.pop %v1103
      %v1105 = vmul.f32 %v996, 1.442695
      %v1106 = vpow.pop %v1105
      %v1107 = vmul.f32 %v997, 1.442695
      %v1108 = vpow.pop %v1107
      %v1109 = vmul.f32 %v998, 1.442695
      %v1110 = vpow.pop %v1109
      %v1111 = vmul.f32 %v999, 1.442695
      %v1112 = vpow.pop %v1111
      %v1113 = vmul.f32 %v1000, 1.442695
      %v1114 = vpow.pop %v1113
      %v1115 = vmul.f32 %v1001, 1.442695
      %v1116 = vpow.pop %v1115
      %v1117 = vmul.f32 %v1002, 1.442695
      %v1118 = vpow.pop %v1117
      %v1119 = vmul.f32 %v1003, 1.442695
      %v1120 = vpow.pop %v1119
      %v1121 = vmul.f32 %v1004, 1.442695
      %v1122 = vpow.pop %v1121
      %v1123 = vmul.f32 %v1005, 1.442695
      %v1124 = vpow.pop %v1123
      %v1125 = vmul.f32 %v1006, 1.442695
      %v1126 = vpow.pop %v1125
      %v1127 = vmul.f32 %v1007, 1.442695
      %v1128 = vpow.pop %v1127
      %v1129 = vmul.f32 %v1008, 1.442695
      %v1130 = vpow.pop %v1129
      %v1131 = vmul.f32 %v1009, 1.442695
      %v1132 = vpow.pop %v1131
      %v1133 = vmul.f32 %v1010, 1.442695
      %v1134 = vpow.pop %v1133
      %v1135 = vmul.f32 %v1011, 1.442695
      %v1136 = vpow.pop %v1135
      %v1137 = vmul.f32 %v1012, 1.442695
      %v1138 = vpow.pop %v1137
      %v1139 = vmul.f32 %v1013, 1.442695
      %v1140 = vpow.pop %v1139
      %v1141 = vmul.f32 %v1014, 1.442695
      %v1142 = vpow.pop %v1141
      %v1143 = vld [vmem:[%s418] sm:$0xff]
      %v1144 = vld [vmem:[%s418 + $0x8] sm:$0xff]
      %v1145 = vld [vmem:[%s418 + $0x10] sm:$0xff]
      %v1146 = vld [vmem:[%s418 + $0x18] sm:$0xff]
      %v1147 = vld [vmem:[%s418 + $0x20] sm:$0xff]
      %v1148 = vld [vmem:[%s418 + $0x28] sm:$0xff]
      %v1149 = vld [vmem:[%s418 + $0x30] sm:$0xff]
      %v1150 = vld [vmem:[%s418 + $0x38] sm:$0xff]
      %v1151 = vld [vmem:[%s418 + $0x40] sm:$0xff]
      %v1152 = vld [vmem:[%s418 + $0x48] sm:$0xff]
      %v1153 = vld [vmem:[%s418 + $0x50] sm:$0xff]
      %v1154 = vld [vmem:[%s418 + $0x58] sm:$0xff]
      %v1155 = vld [vmem:[%s418 + $0x60] sm:$0xff]
      %v1156 = vld [vmem:[%s418 + $0x68] sm:$0xff]
      %v1157 = vld [vmem:[%s418 + $0x70] sm:$0xff]
      %v1158 = vld [vmem:[%s418 + $0x78] sm:$0xff]
      %v1159 = vld [vmem:[%s418 + $0x80] sm:$0xff]
      %v1160 = vld [vmem:[%s418 + $0x88] sm:$0xff]
      %v1161 = vld [vmem:[%s418 + $0x90] sm:$0xff]
      %v1162 = vld [vmem:[%s418 + $0x98] sm:$0xff]
      %v1163 = vld [vmem:[%s418 + $0xa0] sm:$0xff]
      %v1164 = vld [vmem:[%s418 + $0xa8] sm:$0xff]
      %v1165 = vld [vmem:[%s418 + $0xb0] sm:$0xff]
      %v1166 = vld [vmem:[%s418 + $0xb8] sm:$0xff]
      %v1167 = vld [vmem:[%s418 + $0xc0] sm:$0xff]
      %v1168 = vld [vmem:[%s418 + $0xc8] sm:$0xff]
      %v1169 = vld [vmem:[%s418 + $0xd0] sm:$0xff]
      %v1170 = vld [vmem:[%s418 + $0xd8] sm:$0xff]
      %v1171 = vld [vmem:[%s418 + $0xe0] sm:$0xff]
      %v1172 = vld [vmem:[%s418 + $0xe8] sm:$0xff]
      %v1173 = vld [vmem:[%s418 + $0xf0] sm:$0xff]
      %v1174 = vld [vmem:[%s418 + $0xf8] sm:$0xff]
      %v1175 = vld [vmem:[%s418 + $0x100] sm:$0xff]
      %v1176 = vld [vmem:[%s418 + $0x108] sm:$0xff]
      %v1177 = vld [vmem:[%s418 + $0x110] sm:$0xff]
      %v1178 = vld [vmem:[%s418 + $0x118] sm:$0xff]
      %v1179 = vld [vmem:[%s418 + $0x120] sm:$0xff]
      %v1180 = vld [vmem:[%s418 + $0x128] sm:$0xff]
      %v1181 = vld [vmem:[%s418 + $0x130] sm:$0xff]
      %v1182 = vld [vmem:[%s418 + $0x138] sm:$0xff]
      %v1183 = vld [vmem:[%s418 + $0x140] sm:$0xff]
      %v1184 = vld [vmem:[%s418 + $0x148] sm:$0xff]
      %v1185 = vld [vmem:[%s418 + $0x150] sm:$0xff]
      %v1186 = vld [vmem:[%s418 + $0x158] sm:$0xff]
      %v1187 = vld [vmem:[%s418 + $0x160] sm:$0xff]
      %v1188 = vld [vmem:[%s418 + $0x168] sm:$0xff]
      %v1189 = vld [vmem:[%s418 + $0x170] sm:$0xff]
      %v1190 = vld [vmem:[%s418 + $0x178] sm:$0xff]
      %v1191 = vld [vmem:[%s418 + $0x180] sm:$0xff]
      %v1192 = vld [vmem:[%s418 + $0x188] sm:$0xff]
      %v1193 = vld [vmem:[%s418 + $0x190] sm:$0xff]
      %v1194 = vld [vmem:[%s418 + $0x198] sm:$0xff]
      %v1195 = vld [vmem:[%s418 + $0x1a0] sm:$0xff]
      %v1196 = vld [vmem:[%s418 + $0x1a8] sm:$0xff]
      %v1197 = vld [vmem:[%s418 + $0x1b0] sm:$0xff]
      %v1198 = vld [vmem:[%s418 + $0x1b8] sm:$0xff]
      %v1199 = vld [vmem:[%s418 + $0x1c0] sm:$0xff]
      %v1200 = vld [vmem:[%s418 + $0x1c8] sm:$0xff]
      %v1201 = vld [vmem:[%s418 + $0x1d0] sm:$0xff]
      %v1202 = vld [vmem:[%s418 + $0x1d8] sm:$0xff]
      %v1203 = vld [vmem:[%s418 + $0x1e0] sm:$0xff]
      %v1204 = vld [vmem:[%s418 + $0x1e8] sm:$0xff]
      %v1205 = vld [vmem:[%s418 + $0x1f0] sm:$0xff]
      %v1206 = vld [vmem:[%s418 + $0x1f8] sm:$0xff]
      %v1207 = vld [vmem:[#allocation2] sm:$0x1]
      %v1209 = vlaneseq
      %v1210 = vshrl.u32 %v1209, 7
      %v1211 = vsub.s32 0, %v1210
      %v1212 = vrot.slane %v1207, %v1211
      %1213 = vset.pattern.permute.xlu0 0
      %1214 = vperm.xlu0 %1213, %v1212
      %v1215 = vpop.permute.xlu0 %1214
      %v1217 = vmul.f32 %v1143, %v1215
      %v1218 = vmul.f32 %v1144, %v1215
      %v1219 = vmul.f32 %v1145, %v1215
      %v1220 = vmul.f32 %v1146, %v1215
      %v1221 = vmul.f32 %v1147, %v1215
      %v1222 = vmul.f32 %v1148, %v1215
      %v1223 = vmul.f32 %v1149, %v1215
      %v1224 = vmul.f32 %v1150, %v1215
      %v1225 = vmul.f32 %v1151, %v1215
      %v1226 = vmul.f32 %v1152, %v1215
      %v1227 = vmul.f32 %v1153, %v1215
      %v1228 = vmul.f32 %v1154, %v1215
      %v1229 = vmul.f32 %v1155, %v1215
      %v1230 = vmul.f32 %v1156, %v1215
      %v1231 = vmul.f32 %v1157, %v1215
      %v1232 = vmul.f32 %v1158, %v1215
      %v1233 = vmul.f32 %v1159, %v1215
      %v1234 = vmul.f32 %v1160, %v1215
      %v1235 = vmul.f32 %v1161, %v1215
      %v1236 = vmul.f32 %v1162, %v1215
      %v1237 = vmul.f32 %v1163, %v1215
      %v1238 = vmul.f32 %v1164, %v1215
      %v1239 = vmul.f32 %v1165, %v1215
      %v1240 = vmul.f32 %v1166, %v1215
      %v1241 = vmul.f32 %v1167, %v1215
      %v1242 = vmul.f32 %v1168, %v1215
      %v1243 = vmul.f32 %v1169, %v1215
      %v1244 = vmul.f32 %v1170, %v1215
      %v1245 = vmul.f32 %v1171, %v1215
      %v1246 = vmul.f32 %v1172, %v1215
      %v1247 = vmul.f32 %v1173, %v1215
      %v1248 = vmul.f32 %v1174, %v1215
      %v1249 = vmul.f32 %v1175, %v1215
      %v1250 = vmul.f32 %v1176, %v1215
      %v1251 = vmul.f32 %v1177, %v1215
      %v1252 = vmul.f32 %v1178, %v1215
      %v1253 = vmul.f32 %v1179, %v1215
      %v1254 = vmul.f32 %v1180, %v1215
      %v1255 = vmul.f32 %v1181, %v1215
      %v1256 = vmul.f32 %v1182, %v1215
      %v1257 = vmul.f32 %v1183, %v1215
      %v1258 = vmul.f32 %v1184, %v1215
      %v1259 = vmul.f32 %v1185, %v1215
      %v1260 = vmul.f32 %v1186, %v1215
      %v1261 = vmul.f32 %v1187, %v1215
      %v1262 = vmul.f32 %v1188, %v1215
      %v1263 = vmul.f32 %v1189, %v1215
      %v1264 = vmul.f32 %v1190, %v1215
      %v1265 = vmul.f32 %v1191, %v1215
      %v1266 = vmul.f32 %v1192, %v1215
      %v1267 = vmul.f32 %v1193, %v1215
      %v1268 = vmul.f32 %v1194, %v1215
      %v1269 = vmul.f32 %v1195, %v1215
      %v1270 = vmul.f32 %v1196, %v1215
      %v1271 = vmul.f32 %v1197, %v1215
      %v1272 = vmul.f32 %v1198, %v1215
      %v1273 = vmul.f32 %v1199, %v1215
      %v1274 = vmul.f32 %v1200, %v1215
      %v1275 = vmul.f32 %v1201, %v1215
      %v1276 = vmul.f32 %v1202, %v1215
      %v1277 = vmul.f32 %v1203, %v1215
      %v1278 = vmul.f32 %v1204, %v1215
      %v1279 = vmul.f32 %v1205, %v1215
      %v1280 = vmul.f32 %v1206, %v1215
      %v1281 = vmul.f32 %v1217, %v1217
      %v1282 = vmul.f32 %v1218, %v1218
      %v1283 = vmul.f32 %v1219, %v1219
      %v1284 = vmul.f32 %v1220, %v1220
      %v1285 = vmul.f32 %v1221, %v1221
      %v1286 = vmul.f32 %v1222, %v1222
      %v1287 = vmul.f32 %v1223, %v1223
      %v1288 = vmul.f32 %v1224, %v1224
      %v1289 = vmul.f32 %v1225, %v1225
      %v1290 = vmul.f32 %v1226, %v1226
      %v1291 = vmul.f32 %v1227, %v1227
      %v1292 = vmul.f32 %v1228, %v1228
      %v1293 = vmul.f32 %v1229, %v1229
      %v1294 = vmul.f32 %v1230, %v1230
      %v1295 = vmul.f32 %v1231, %v1231
      %v1296 = vmul.f32 %v1232, %v1232
      %v1297 = vmul.f32 %v1233, %v1233
      %v1298 = vmul.f32 %v1234, %v1234
      %v1299 = vmul.f32 %v1235, %v1235
      %v1300 = vmul.f32 %v1236, %v1236
      %v1301 = vmul.f32 %v1237, %v1237
      %v1302 = vmul.f32 %v1238, %v1238
      %v1303 = vmul.f32 %v1239, %v1239
      %v1304 = vmul.f32 %v1240, %v1240
      %v1305 = vmul.f32 %v1241, %v1241
      %v1306 = vmul.f32 %v1242, %v1242
      %v1307 = vmul.f32 %v1243, %v1243
      %v1308 = vmul.f32 %v1244, %v1244
      %v1309 = vmul.f32 %v1245, %v1245
      %v1310 = vmul.f32 %v1246, %v1246
      %v1311 = vmul.f32 %v1247, %v1247
      %v1312 = vmul.f32 %v1248, %v1248
      %v1313 = vmul.f32 %v1249, %v1249
      %v1314 = vmul.f32 %v1250, %v1250
      %v1315 = vmul.f32 %v1251, %v1251
      %v1316 = vmul.f32 %v1252, %v1252
      %v1317 = vmul.f32 %v1253, %v1253
      %v1318 = vmul.f32 %v1254, %v1254
      %v1319 = vmul.f32 %v1255, %v1255
      %v1320 = vmul.f32 %v1256, %v1256
      %v1321 = vmul.f32 %v1257, %v1257
      %v1322 = vmul.f32 %v1258, %v1258
      %v1323 = vmul.f32 %v1259, %v1259
      %v1324 = vmul.f32 %v1260, %v1260
      %v1325 = vmul.f32 %v1261, %v1261
      %v1326 = vmul.f32 %v1262, %v1262
      %v1327 = vmul.f32 %v1263, %v1263
      %v1328 = vmul.f32 %v1264, %v1264
      %v1329 = vmul.f32 %v1265, %v1265
      %v1330 = vmul.f32 %v1266, %v1266
      %v1331 = vmul.f32 %v1267, %v1267
      %v1332 = vmul.f32 %v1268, %v1268
      %v1333 = vmul.f32 %v1269, %v1269
      %v1334 = vmul.f32 %v1270, %v1270
      %v1335 = vmul.f32 %v1271, %v1271
      %v1336 = vmul.f32 %v1272, %v1272
      %v1337 = vmul.f32 %v1273, %v1273
      %v1338 = vmul.f32 %v1274, %v1274
      %v1339 = vmul.f32 %v1275, %v1275
      %v1340 = vmul.f32 %v1276, %v1276
      %v1341 = vmul.f32 %v1277, %v1277
      %v1342 = vmul.f32 %v1278, %v1278
      %v1343 = vmul.f32 %v1279, %v1279
      %v1344 = vmul.f32 %v1280, %v1280
      %vm1345 = vcmask 23552
      %v1346 = vsel %vm1345, %v1281, 0.0
      %1347 = vadd.xlane.f32.xlu0 %v1346
      %v1348 = vpop.xlane.xlu0 %1347
      %v1349 = vsel %vm1345, %v1282, 0.0
      %1350 = vadd.xlane.f32.xlu0 %v1349
      %v1351 = vpop.xlane.xlu0 %1350
      %v1352 = vsel %vm1345, %v1283, 0.0
      %1353 = vadd.xlane.f32.xlu0 %v1352
      %v1354 = vpop.xlane.xlu0 %1353
      %v1355 = vsel %vm1345, %v1284, 0.0
      %1356 = vadd.xlane.f32.xlu0 %v1355
      %v1357 = vpop.xlane.xlu0 %1356
      %v1358 = vsel %vm1345, %v1285, 0.0
      %1359 = vadd.xlane.f32.xlu0 %v1358
      %v1360 = vpop.xlane.xlu0 %1359
      %v1361 = vsel %vm1345, %v1286, 0.0
      %1362 = vadd.xlane.f32.xlu0 %v1361
      %v1363 = vpop.xlane.xlu0 %1362
      %v1364 = vsel %vm1345, %v1287, 0.0
      %1365 = vadd.xlane.f32.xlu0 %v1364
      %v1366 = vpop.xlane.xlu0 %1365
      %v1367 = vsel %vm1345, %v1288, 0.0
      %1368 = vadd.xlane.f32.xlu0 %v1367
      %v1369 = vpop.xlane.xlu0 %1368
      %v1370 = vsel %vm1345, %v1289, 0.0
      %1371 = vadd.xlane.f32.xlu0 %v1370
      %v1372 = vpop.xlane.xlu0 %1371
      %v1373 = vsel %vm1345, %v1290, 0.0
      %1374 = vadd.xlane.f32.xlu0 %v1373
      %v1375 = vpop.xlane.xlu0 %1374
      %v1376 = vsel %vm1345, %v1291, 0.0
      %1377 = vadd.xlane.f32.xlu0 %v1376
      %v1378 = vpop.xlane.xlu0 %1377
      %v1379 = vsel %vm1345, %v1292, 0.0
      %1380 = vadd.xlane.f32.xlu0 %v1379
      %v1381 = vpop.xlane.xlu0 %1380
      %v1382 = vsel %vm1345, %v1293, 0.0
      %1383 = vadd.xlane.f32.xlu0 %v1382
      %v1384 = vpop.xlane.xlu0 %1383
      %v1385 = vsel %vm1345, %v1294, 0.0
      %1386 = vadd.xlane.f32.xlu0 %v1385
      %v1387 = vpop.xlane.xlu0 %1386
      %v1388 = vsel %vm1345, %v1295, 0.0
      %1389 = vadd.xlane.f32.xlu0 %v1388
      %v1390 = vpop.xlane.xlu0 %1389
      %v1391 = vsel %vm1345, %v1296, 0.0
      %1392 = vadd.xlane.f32.xlu0 %v1391
      %v1393 = vpop.xlane.xlu0 %1392
      %v1394 = vsel %vm1345, %v1297, 0.0
      %1395 = vadd.xlane.f32.xlu0 %v1394
      %v1396 = vpop.xlane.xlu0 %1395
      %v1397 = vsel %vm1345, %v1298, 0.0
      %1398 = vadd.xlane.f32.xlu0 %v1397
      %v1399 = vpop.xlane.xlu0 %1398
      %v1400 = vsel %vm1345, %v1299, 0.0
      %1401 = vadd.xlane.f32.xlu0 %v1400
      %v1402 = vpop.xlane.xlu0 %1401
      %v1403 = vsel %vm1345, %v1300, 0.0
      %1404 = vadd.xlane.f32.xlu0 %v1403
      %v1405 = vpop.xlane.xlu0 %1404
      %v1406 = vsel %vm1345, %v1301, 0.0
      %1407 = vadd.xlane.f32.xlu0 %v1406
      %v1408 = vpop.xlane.xlu0 %1407
      %v1409 = vsel %vm1345, %v1302, 0.0
      %1410 = vadd.xlane.f32.xlu0 %v1409
      %v1411 = vpop.xlane.xlu0 %1410
      %v1412 = vsel %vm1345, %v1303, 0.0
      %1413 = vadd.xlane.f32.xlu0 %v1412
      %v1414 = vpop.xlane.xlu0 %1413
      %v1415 = vsel %vm1345, %v1304, 0.0
      %1416 = vadd.xlane.f32.xlu0 %v1415
      %v1417 = vpop.xlane.xlu0 %1416
      %v1418 = vsel %vm1345, %v1305, 0.0
      %1419 = vadd.xlane.f32.xlu0 %v1418
      %v1420 = vpop.xlane.xlu0 %1419
      %v1421 = vsel %vm1345, %v1306, 0.0
      %1422 = vadd.xlane.f32.xlu0 %v1421
      %v1423 = vpop.xlane.xlu0 %1422
      %v1424 = vsel %vm1345, %v1307, 0.0
      %1425 = vadd.xlane.f32.xlu0 %v1424
      %v1426 = vpop.xlane.xlu0 %1425
      %v1427 = vsel %vm1345, %v1308, 0.0
      %1428 = vadd.xlane.f32.xlu0 %v1427
      %v1429 = vpop.xlane.xlu0 %1428
      %v1430 = vsel %vm1345, %v1309, 0.0
      %1431 = vadd.xlane.f32.xlu0 %v1430
      %v1432 = vpop.xlane.xlu0 %1431
      %v1433 = vsel %vm1345, %v1310, 0.0
      %1434 = vadd.xlane.f32.xlu0 %v1433
      %v1435 = vpop.xlane.xlu0 %1434
      %v1436 = vsel %vm1345, %v1311, 0.0
      %1437 = vadd.xlane.f32.xlu0 %v1436
      %v1438 = vpop.xlane.xlu0 %1437
      %v1439 = vsel %vm1345, %v1312, 0.0
      %1440 = vadd.xlane.f32.xlu0 %v1439
      %v1441 = vpop.xlane.xlu0 %1440
      %v1442 = vsel %vm1345, %v1313, 0.0
      %1443 = vadd.xlane.f32.xlu0 %v1442
      %v1444 = vpop.xlane.xlu0 %1443
      %v1445 = vsel %vm1345, %v1314, 0.0
      %1446 = vadd.xlane.f32.xlu0 %v1445
      %v1447 = vpop.xlane.xlu0 %1446
      %v1448 = vsel %vm1345, %v1315, 0.0
      %1449 = vadd.xlane.f32.xlu0 %v1448
      %v1450 = vpop.xlane.xlu0 %1449
      %v1451 = vsel %vm1345, %v1316, 0.0
      %1452 = vadd.xlane.f32.xlu0 %v1451
      %v1453 = vpop.xlane.xlu0 %1452
      %v1454 = vsel %vm1345, %v1317, 0.0
      %1455 = vadd.xlane.f32.xlu0 %v1454
      %v1456 = vpop.xlane.xlu0 %1455
      %v1457 = vsel %vm1345, %v1318, 0.0
      %1458 = vadd.xlane.f32.xlu0 %v1457
      %v1459 = vpop.xlane.xlu0 %1458
      %v1460 = vsel %vm1345, %v1319, 0.0
      %1461 = vadd.xlane.f32.xlu0 %v1460
      %v1462 = vpop.xlane.xlu0 %1461
      %v1463 = vsel %vm1345, %v1320, 0.0
      %1464 = vadd.xlane.f32.xlu0 %v1463
      %v1465 = vpop.xlane.xlu0 %1464
      %v1466 = vsel %vm1345, %v1321, 0.0
      %1467 = vadd.xlane.f32.xlu0 %v1466
      %v1468 = vpop.xlane.xlu0 %1467
      %v1469 = vsel %vm1345, %v1322, 0.0
      %1470 = vadd.xlane.f32.xlu0 %v1469
      %v1471 = vpop.xlane.xlu0 %1470
      %v1472 = vsel %vm1345, %v1323, 0.0
      %1473 = vadd.xlane.f32.xlu0 %v1472
      %v1474 = vpop.xlane.xlu0 %1473
      %v1475 = vsel %vm1345, %v1324, 0.0
      %1476 = vadd.xlane.f32.xlu0 %v1475
      %v1477 = vpop.xlane.xlu0 %1476
      %v1478 = vsel %vm1345, %v1325, 0.0
      %1479 = vadd.xlane.f32.xlu0 %v1478
      %v1480 = vpop.xlane.xlu0 %1479
      %v1481 = vsel %vm1345, %v1326, 0.0
      %1482 = vadd.xlane.f32.xlu0 %v1481
      %v1483 = vpop.xlane.xlu0 %1482
      %v1484 = vsel %vm1345, %v1327, 0.0
      %1485 = vadd.xlane.f32.xlu0 %v1484
      %v1486 = vpop.xlane.xlu0 %1485
      %v1487 = vsel %vm1345, %v1328, 0.0
      %1488 = vadd.xlane.f32.xlu0 %v1487
      %v1489 = vpop.xlane.xlu0 %1488
      %v1490 = vsel %vm1345, %v1329, 0.0
      %1491 = vadd.xlane.f32.xlu0 %v1490
      %v1492 = vpop.xlane.xlu0 %1491
      %v1493 = vsel %vm1345, %v1330, 0.0
      %1494 = vadd.xlane.f32.xlu0 %v1493
      %v1495 = vpop.xlane.xlu0 %1494
      %v1496 = vsel %vm1345, %v1331, 0.0
      %1497 = vadd.xlane.f32.xlu0 %v1496
      %v1498 = vpop.xlane.xlu0 %1497
      %v1499 = vsel %vm1345, %v1332, 0.0
      %1500 = vadd.xlane.f32.xlu0 %v1499
      %v1501 = vpop.xlane.xlu0 %1500
      %v1502 = vsel %vm1345, %v1333, 0.0
      %1503 = vadd.xlane.f32.xlu0 %v1502
      %v1504 = vpop.xlane.xlu0 %1503
      %v1505 = vsel %vm1345, %v1334, 0.0
      %1506 = vadd.xlane.f32.xlu0 %v1505
      %v1507 = vpop.xlane.xlu0 %1506
      %v1508 = vsel %vm1345, %v1335, 0.0
      %1509 = vadd.xlane.f32.xlu0 %v1508
      %v1510 = vpop.xlane.xlu0 %1509
      %v1511 = vsel %vm1345, %v1336, 0.0
      %1512 = vadd.xlane.f32.xlu0 %v1511
      %v1513 = vpop.xlane.xlu0 %1512
      %v1514 = vsel %vm1345, %v1337, 0.0
      %1515 = vadd.xlane.f32.xlu0 %v1514
      %v1516 = vpop.xlane.xlu0 %1515
      %v1517 = vsel %vm1345, %v1338, 0.0
      %1518 = vadd.xlane.f32.xlu0 %v1517
      %v1519 = vpop.xlane.xlu0 %1518
      %v1520 = vsel %vm1345, %v1339, 0.0
      %1521 = vadd.xlane.f32.xlu0 %v1520
      %v1522 = vpop.xlane.xlu0 %1521
      %v1523 = vsel %vm1345, %v1340, 0.0
      %1524 = vadd.xlane.f32.xlu0 %v1523
      %v1525 = vpop.xlane.xlu0 %1524
      %v1526 = vsel %vm1345, %v1341, 0.0
      %1527 = vadd.xlane.f32.xlu0 %v1526
      %v1528 = vpop.xlane.xlu0 %1527
      %v1529 = vsel %vm1345, %v1342, 0.0
      %1530 = vadd.xlane.f32.xlu0 %v1529
      %v1531 = vpop.xlane.xlu0 %1530
      %v1532 = vsel %vm1345, %v1343, 0.0
      %1533 = vadd.xlane.f32.xlu0 %v1532
      %v1534 = vpop.xlane.xlu0 %1533
      %v1535 = vsel %vm1345, %v1344, 0.0
      %1536 = vadd.xlane.f32.xlu0 %v1535
      %v1537 = vpop.xlane.xlu0 %1536
      %v1538 = vmax.f32 %v1348, 1e-08
      %v1539 = vmax.f32 %v1351, 1e-08
      %v1540 = vmax.f32 %v1354, 1e-08
      %v1541 = vmax.f32 %v1357, 1e-08
      %v1542 = vmax.f32 %v1360, 1e-08
      %v1543 = vmax.f32 %v1363, 1e-08
      %v1544 = vmax.f32 %v1366, 1e-08
      %v1545 = vmax.f32 %v1369, 1e-08
      %v1546 = vmax.f32 %v1372, 1e-08
      %v1547 = vmax.f32 %v1375, 1e-08
      %v1548 = vmax.f32 %v1378, 1e-08
      %v1549 = vmax.f32 %v1381, 1e-08
      %v1550 = vmax.f32 %v1384, 1e-08
      %v1551 = vmax.f32 %v1387, 1e-08
      %v1552 = vmax.f32 %v1390, 1e-08
      %v1553 = vmax.f32 %v1393, 1e-08
      %v1554 = vmax.f32 %v1396, 1e-08
      %v1555 = vmax.f32 %v1399, 1e-08
      %v1556 = vmax.f32 %v1402, 1e-08
      %v1557 = vmax.f32 %v1405, 1e-08
      %v1558 = vmax.f32 %v1408, 1e-08
      %v1559 = vmax.f32 %v1411, 1e-08
      %v1560 = vmax.f32 %v1414, 1e-08
      %v1561 = vmax.f32 %v1417, 1e-08
      %v1562 = vmax.f32 %v1420, 1e-08
      %v1563 = vmax.f32 %v1423, 1e-08
      %v1564 = vmax.f32 %v1426, 1e-08
      %v1565 = vmax.f32 %v1429, 1e-08
      %v1566 = vmax.f32 %v1432, 1e-08
      %v1567 = vmax.f32 %v1435, 1e-08
      %v1568 = vmax.f32 %v1438, 1e-08
      %v1569 = vmax.f32 %v1441, 1e-08
      %v1570 = vmax.f32 %v1444, 1e-08
      %v1571 = vmax.f32 %v1447, 1e-08
      %v1572 = vmax.f32 %v1450, 1e-08
      %v1573 = vmax.f32 %v1453, 1e-08
      %v1574 = vmax.f32 %v1456, 1e-08
      %v1575 = vmax.f32 %v1459, 1e-08
      %v1576 = vmax.f32 %v1462, 1e-08
      %v1577 = vmax.f32 %v1465, 1e-08
      %v1578 = vmax.f32 %v1468, 1e-08
      %v1579 = vmax.f32 %v1471, 1e-08
      %v1580 = vmax.f32 %v1474, 1e-08
      %v1581 = vmax.f32 %v1477, 1e-08
      %v1582 = vmax.f32 %v1480, 1e-08
      %v1583 = vmax.f32 %v1483, 1e-08
      %v1584 = vmax.f32 %v1486, 1e-08
      %v1585 = vmax.f32 %v1489, 1e-08
      %v1586 = vmax.f32 %v1492, 1e-08
      %v1587 = vmax.f32 %v1495, 1e-08
      %v1588 = vmax.f32 %v1498, 1e-08
      %v1589 = vmax.f32 %v1501, 1e-08
      %v1590 = vmax.f32 %v1504, 1e-08
      %v1591 = vmax.f32 %v1507, 1e-08
      %v1592 = vmax.f32 %v1510, 1e-08
      %v1593 = vmax.f32 %v1513, 1e-08
      %v1594 = vmax.f32 %v1516, 1e-08
      %v1595 = vmax.f32 %v1519, 1e-08
      %v1596 = vmax.f32 %v1522, 1e-08
      %v1597 = vmax.f32 %v1525, 1e-08
      %v1598 = vmax.f32 %v1528, 1e-08
      %v1599 = vmax.f32 %v1531, 1e-08
      %v1600 = vmax.f32 %v1534, 1e-08
      %v1601 = vmax.f32 %v1537, 1e-08
      %v1602 = vrsqrt.pop %v1538
      %v1603 = vmul.f32 %v1538, %v1602
      %vm1604 = vcmp.eq.f32.partialorder %v1538, inf
      %v1605 = vsel %vm1604, %v1538, %v1603
      %vm1606 = vcmp.eq.f32.partialorder %v1538, 0.0
      %v1607 = vand.u32 %v1538, 2147483648
      %v1608 = vsel %vm1606, %v1607, %v1605
      %v1609 = vrsqrt.pop %v1539
      %v1610 = vmul.f32 %v1539, %v1609
      %vm1611 = vcmp.eq.f32.partialorder %v1539, inf
      %v1612 = vsel %vm1611, %v1539, %v1610
      %vm1613 = vcmp.eq.f32.partialorder %v1539, 0.0
      %v1614 = vand.u32 %v1539, 2147483648
      %v1615 = vsel %vm1613, %v1614, %v1612
      %v1616 = vrsqrt.pop %v1540
      %v1617 = vmul.f32 %v1540, %v1616
      %vm1618 = vcmp.eq.f32.partialorder %v1540, inf
      %v1619 = vsel %vm1618, %v1540, %v1617
      %vm1620 = vcmp.eq.f32.partialorder %v1540, 0.0
      %v1621 = vand.u32 %v1540, 2147483648
      %v1622 = vsel %vm1620, %v1621, %v1619
      %v1623 = vrsqrt.pop %v1541
      %v1624 = vmul.f32 %v1541, %v1623
      %vm1625 = vcmp.eq.f32.partialorder %v1541, inf
      %v1626 = vsel %vm1625, %v1541, %v1624
      %vm1627 = vcmp.eq.f32.partialorder %v1541, 0.0
      %v1628 = vand.u32 %v1541, 2147483648
      %v1629 = vsel %vm1627, %v1628, %v1626
      %v1630 = vrsqrt.pop %v1542
      %v1631 = vmul.f32 %v1542, %v1630
      %vm1632 = vcmp.eq.f32.partialorder %v1542, inf
      %v1633 = vsel %vm1632, %v1542, %v1631
      %vm1634 = vcmp.eq.f32.partialorder %v1542, 0.0
      %v1635 = vand.u32 %v1542, 2147483648
      %v1636 = vsel %vm1634, %v1635, %v1633
      %v1637 = vrsqrt.pop %v1543
      %v1638 = vmul.f32 %v1543, %v1637
      %vm1639 = vcmp.eq.f32.partialorder %v1543, inf
      %v1640 = vsel %vm1639, %v1543, %v1638
      %vm1641 = vcmp.eq.f32.partialorder %v1543, 0.0
      %v1642 = vand.u32 %v1543, 2147483648
      %v1643 = vsel %vm1641, %v1642, %v1640
      %v1644 = vrsqrt.pop %v1544
      %v1645 = vmul.f32 %v1544, %v1644
      %vm1646 = vcmp.eq.f32.partialorder %v1544, inf
      %v1647 = vsel %vm1646, %v1544, %v1645
      %vm1648 = vcmp.eq.f32.partialorder %v1544, 0.0
      %v1649 = vand.u32 %v1544, 2147483648
      %v1650 = vsel %vm1648, %v1649, %v1647
      %v1651 = vrsqrt.pop %v1545
      %v1652 = vmul.f32 %v1545, %v1651
      %vm1653 = vcmp.eq.f32.partialorder %v1545, inf
      %v1654 = vsel %vm1653, %v1545, %v1652
      %vm1655 = vcmp.eq.f32.partialorder %v1545, 0.0
      %v1656 = vand.u32 %v1545, 2147483648
      %v1657 = vsel %vm1655, %v1656, %v1654
      %v1658 = vrsqrt.pop %v1546
      %v1659 = vmul.f32 %v1546, %v1658
      %vm1660 = vcmp.eq.f32.partialorder %v1546, inf
      %v1661 = vsel %vm1660, %v1546, %v1659
      %vm1662 = vcmp.eq.f32.partialorder %v1546, 0.0
      %v1663 = vand.u32 %v1546, 2147483648
      %v1664 = vsel %vm1662, %v1663, %v1661
      %v1665 = vrsqrt.pop %v1547
      %v1666 = vmul.f32 %v1547, %v1665
      %vm1667 = vcmp.eq.f32.partialorder %v1547, inf
      %v1668 = vsel %vm1667, %v1547, %v1666
      %vm1669 = vcmp.eq.f32.partialorder %v1547, 0.0
      %v1670 = vand.u32 %v1547, 2147483648
      %v1671 = vsel %vm1669, %v1670, %v1668
      %v1672 = vrsqrt.pop %v1548
      %v1673 = vmul.f32 %v1548, %v1672
      %vm1674 = vcmp.eq.f32.partialorder %v1548, inf
      %v1675 = vsel %vm1674, %v1548, %v1673
      %vm1676 = vcmp.eq.f32.partialorder %v1548, 0.0
      %v1677 = vand.u32 %v1548, 2147483648
      %v1678 = vsel %vm1676, %v1677, %v1675
      %v1679 = vrsqrt.pop %v1549
      %v1680 = vmul.f32 %v1549, %v1679
      %vm1681 = vcmp.eq.f32.partialorder %v1549, inf
      %v1682 = vsel %vm1681, %v1549, %v1680
      %vm1683 = vcmp.eq.f32.partialorder %v1549, 0.0
      %v1684 = vand.u32 %v1549, 2147483648
      %v1685 = vsel %vm1683, %v1684, %v1682
      %v1686 = vrsqrt.pop %v1550
      %v1687 = vmul.f32 %v1550, %v1686
      %vm1688 = vcmp.eq.f32.partialorder %v1550, inf
      %v1689 = vsel %vm1688, %v1550, %v1687
      %vm1690 = vcmp.eq.f32.partialorder %v1550, 0.0
      %v1691 = vand.u32 %v1550, 2147483648
      %v1692 = vsel %vm1690, %v1691, %v1689
      %v1693 = vrsqrt.pop %v1551
      %v1694 = vmul.f32 %v1551, %v1693
      %vm1695 = vcmp.eq.f32.partialorder %v1551, inf
      %v1696 = vsel %vm1695, %v1551, %v1694
      %vm1697 = vcmp.eq.f32.partialorder %v1551, 0.0
      %v1698 = vand.u32 %v1551, 2147483648
      %v1699 = vsel %vm1697, %v1698, %v1696
      %v1700 = vrsqrt.pop %v1552
      %v1701 = vmul.f32 %v1552, %v1700
      %vm1702 = vcmp.eq.f32.partialorder %v1552, inf
      %v1703 = vsel %vm1702, %v1552, %v1701
      %vm1704 = vcmp.eq.f32.partialorder %v1552, 0.0
      %v1705 = vand.u32 %v1552, 2147483648
      %v1706 = vsel %vm1704, %v1705, %v1703
      %v1707 = vrsqrt.pop %v1553
      %v1708 = vmul.f32 %v1553, %v1707
      %vm1709 = vcmp.eq.f32.partialorder %v1553, inf
      %v1710 = vsel %vm1709, %v1553, %v1708
      %vm1711 = vcmp.eq.f32.partialorder %v1553, 0.0
      %v1712 = vand.u32 %v1553, 2147483648
      %v1713 = vsel %vm1711, %v1712, %v1710
      %v1714 = vrsqrt.pop %v1554
      %v1715 = vmul.f32 %v1554, %v1714
      %vm1716 = vcmp.eq.f32.partialorder %v1554, inf
      %v1717 = vsel %vm1716, %v1554, %v1715
      %vm1718 = vcmp.eq.f32.partialorder %v1554, 0.0
      %v1719 = vand.u32 %v1554, 2147483648
      %v1720 = vsel %vm1718, %v1719, %v1717
      %v1721 = vrsqrt.pop %v1555
      %v1722 = vmul.f32 %v1555, %v1721
      %vm1723 = vcmp.eq.f32.partialorder %v1555, inf
      %v1724 = vsel %vm1723, %v1555, %v1722
      %vm1725 = vcmp.eq.f32.partialorder %v1555, 0.0
      %v1726 = vand.u32 %v1555, 2147483648
      %v1727 = vsel %vm1725, %v1726, %v1724
      %v1728 = vrsqrt.pop %v1556
      %v1729 = vmul.f32 %v1556, %v1728
      %vm1730 = vcmp.eq.f32.partialorder %v1556, inf
      %v1731 = vsel %vm1730, %v1556, %v1729
      %vm1732 = vcmp.eq.f32.partialorder %v1556, 0.0
      %v1733 = vand.u32 %v1556, 2147483648
      %v1734 = vsel %vm1732, %v1733, %v1731
      %v1735 = vrsqrt.pop %v1557
      %v1736 = vmul.f32 %v1557, %v1735
      %vm1737 = vcmp.eq.f32.partialorder %v1557, inf
      %v1738 = vsel %vm1737, %v1557, %v1736
      %vm1739 = vcmp.eq.f32.partialorder %v1557, 0.0
      %v1740 = vand.u32 %v1557, 2147483648
      %v1741 = vsel %vm1739, %v1740, %v1738
      %v1742 = vrsqrt.pop %v1558
      %v1743 = vmul.f32 %v1558, %v1742
      %vm1744 = vcmp.eq.f32.partialorder %v1558, inf
      %v1745 = vsel %vm1744, %v1558, %v1743
      %vm1746 = vcmp.eq.f32.partialorder %v1558, 0.0
      %v1747 = vand.u32 %v1558, 2147483648
      %v1748 = vsel %vm1746, %v1747, %v1745
      %v1749 = vrsqrt.pop %v1559
      %v1750 = vmul.f32 %v1559, %v1749
      %vm1751 = vcmp.eq.f32.partialorder %v1559, inf
      %v1752 = vsel %vm1751, %v1559, %v1750
      %vm1753 = vcmp.eq.f32.partialorder %v1559, 0.0
      %v1754 = vand.u32 %v1559, 2147483648
      %v1755 = vsel %vm1753, %v1754, %v1752
      %v1756 = vrsqrt.pop %v1560
      %v1757 = vmul.f32 %v1560, %v1756
      %vm1758 = vcmp.eq.f32.partialorder %v1560, inf
      %v1759 = vsel %vm1758, %v1560, %v1757
      %vm1760 = vcmp.eq.f32.partialorder %v1560, 0.0
      %v1761 = vand.u32 %v1560, 2147483648
      %v1762 = vsel %vm1760, %v1761, %v1759
      %v1763 = vrsqrt.pop %v1561
      %v1764 = vmul.f32 %v1561, %v1763
      %vm1765 = vcmp.eq.f32.partialorder %v1561, inf
      %v1766 = vsel %vm1765, %v1561, %v1764
      %vm1767 = vcmp.eq.f32.partialorder %v1561, 0.0
      %v1768 = vand.u32 %v1561, 2147483648
      %v1769 = vsel %vm1767, %v1768, %v1766
      %v1770 = vrsqrt.pop %v1562
      %v1771 = vmul.f32 %v1562, %v1770
      %vm1772 = vcmp.eq.f32.partialorder %v1562, inf
      %v1773 = vsel %vm1772, %v1562, %v1771
      %vm1774 = vcmp.eq.f32.partialorder %v1562, 0.0
      %v1775 = vand.u32 %v1562, 2147483648
      %v1776 = vsel %vm1774, %v1775, %v1773
      %v1777 = vrsqrt.pop %v1563
      %v1778 = vmul.f32 %v1563, %v1777
      %vm1779 = vcmp.eq.f32.partialorder %v1563, inf
      %v1780 = vsel %vm1779, %v1563, %v1778
      %vm1781 = vcmp.eq.f32.partialorder %v1563, 0.0
      %v1782 = vand.u32 %v1563, 2147483648
      %v1783 = vsel %vm1781, %v1782, %v1780
      %v1784 = vrsqrt.pop %v1564
      %v1785 = vmul.f32 %v1564, %v1784
      %vm1786 = vcmp.eq.f32.partialorder %v1564, inf
      %v1787 = vsel %vm1786, %v1564, %v1785
      %vm1788 = vcmp.eq.f32.partialorder %v1564, 0.0
      %v1789 = vand.u32 %v1564, 2147483648
      %v1790 = vsel %vm1788, %v1789, %v1787
      %v1791 = vrsqrt.pop %v1565
      %v1792 = vmul.f32 %v1565, %v1791
      %vm1793 = vcmp.eq.f32.partialorder %v1565, inf
      %v1794 = vsel %vm1793, %v1565, %v1792
      %vm1795 = vcmp.eq.f32.partialorder %v1565, 0.0
      %v1796 = vand.u32 %v1565, 2147483648
      %v1797 = vsel %vm1795, %v1796, %v1794
      %v1798 = vrsqrt.pop %v1566
      %v1799 = vmul.f32 %v1566, %v1798
      %vm1800 = vcmp.eq.f32.partialorder %v1566, inf
      %v1801 = vsel %vm1800, %v1566, %v1799
      %vm1802 = vcmp.eq.f32.partialorder %v1566, 0.0
      %v1803 = vand.u32 %v1566, 2147483648
      %v1804 = vsel %vm1802, %v1803, %v1801
      %v1805 = vrsqrt.pop %v1567
      %v1806 = vmul.f32 %v1567, %v1805
      %vm1807 = vcmp.eq.f32.partialorder %v1567, inf
      %v1808 = vsel %vm1807, %v1567, %v1806
      %vm1809 = vcmp.eq.f32.partialorder %v1567, 0.0
      %v1810 = vand.u32 %v1567, 2147483648
      %v1811 = vsel %vm1809, %v1810, %v1808
      %v1812 = vrsqrt.pop %v1568
      %v1813 = vmul.f32 %v1568, %v1812
      %vm1814 = vcmp.eq.f32.partialorder %v1568, inf
      %v1815 = vsel %vm1814, %v1568, %v1813
      %vm1816 = vcmp.eq.f32.partialorder %v1568, 0.0
      %v1817 = vand.u32 %v1568, 2147483648
      %v1818 = vsel %vm1816, %v1817, %v1815
      %v1819 = vrsqrt.pop %v1569
      %v1820 = vmul.f32 %v1569, %v1819
      %vm1821 = vcmp.eq.f32.partialorder %v1569, inf
      %v1822 = vsel %vm1821, %v1569, %v1820
      %vm1823 = vcmp.eq.f32.partialorder %v1569, 0.0
      %v1824 = vand.u32 %v1569, 2147483648
      %v1825 = vsel %vm1823, %v1824, %v1822
      %v1826 = vrsqrt.pop %v1570
      %v1827 = vmul.f32 %v1570, %v1826
      %vm1828 = vcmp.eq.f32.partialorder %v1570, inf
      %v1829 = vsel %vm1828, %v1570, %v1827
      %vm1830 = vcmp.eq.f32.partialorder %v1570, 0.0
      %v1831 = vand.u32 %v1570, 2147483648
      %v1832 = vsel %vm1830, %v1831, %v1829
      %v1833 = vrsqrt.pop %v1571
      %v1834 = vmul.f32 %v1571, %v1833
      %vm1835 = vcmp.eq.f32.partialorder %v1571, inf
      %v1836 = vsel %vm1835, %v1571, %v1834
      %vm1837 = vcmp.eq.f32.partialorder %v1571, 0.0
      %v1838 = vand.u32 %v1571, 2147483648
      %v1839 = vsel %vm1837, %v1838, %v1836
      %v1840 = vrsqrt.pop %v1572
      %v1841 = vmul.f32 %v1572, %v1840
      %vm1842 = vcmp.eq.f32.partialorder %v1572, inf
      %v1843 = vsel %vm1842, %v1572, %v1841
      %vm1844 = vcmp.eq.f32.partialorder %v1572, 0.0
      %v1845 = vand.u32 %v1572, 2147483648
      %v1846 = vsel %vm1844, %v1845, %v1843
      %v1847 = vrsqrt.pop %v1573
      %v1848 = vmul.f32 %v1573, %v1847
      %vm1849 = vcmp.eq.f32.partialorder %v1573, inf
      %v1850 = vsel %vm1849, %v1573, %v1848
      %vm1851 = vcmp.eq.f32.partialorder %v1573, 0.0
      %v1852 = vand.u32 %v1573, 2147483648
      %v1853 = vsel %vm1851, %v1852, %v1850
      %v1854 = vrsqrt.pop %v1574
      %v1855 = vmul.f32 %v1574, %v1854
      %vm1856 = vcmp.eq.f32.partialorder %v1574, inf
      %v1857 = vsel %vm1856, %v1574, %v1855
      %vm1858 = vcmp.eq.f32.partialorder %v1574, 0.0
      %v1859 = vand.u32 %v1574, 2147483648
      %v1860 = vsel %vm1858, %v1859, %v1857
      %v1861 = vrsqrt.pop %v1575
      %v1862 = vmul.f32 %v1575, %v1861
      %vm1863 = vcmp.eq.f32.partialorder %v1575, inf
      %v1864 = vsel %vm1863, %v1575, %v1862
      %vm1865 = vcmp.eq.f32.partialorder %v1575, 0.0
      %v1866 = vand.u32 %v1575, 2147483648
      %v1867 = vsel %vm1865, %v1866, %v1864
      %v1868 = vrsqrt.pop %v1576
      %v1869 = vmul.f32 %v1576, %v1868
      %vm1870 = vcmp.eq.f32.partialorder %v1576, inf
      %v1871 = vsel %vm1870, %v1576, %v1869
      %vm1872 = vcmp.eq.f32.partialorder %v1576, 0.0
      %v1873 = vand.u32 %v1576, 2147483648
      %v1874 = vsel %vm1872, %v1873, %v1871
      %v1875 = vrsqrt.pop %v1577
      %v1876 = vmul.f32 %v1577, %v1875
      %vm1877 = vcmp.eq.f32.partialorder %v1577, inf
      %v1878 = vsel %vm1877, %v1577, %v1876
      %vm1879 = vcmp.eq.f32.partialorder %v1577, 0.0
      %v1880 = vand.u32 %v1577, 2147483648
      %v1881 = vsel %vm1879, %v1880, %v1878
      %v1882 = vrsqrt.pop %v1578
      %v1883 = vmul.f32 %v1578, %v1882
      %vm1884 = vcmp.eq.f32.partialorder %v1578, inf
      %v1885 = vsel %vm1884, %v1578, %v1883
      %vm1886 = vcmp.eq.f32.partialorder %v1578, 0.0
      %v1887 = vand.u32 %v1578, 2147483648
      %v1888 = vsel %vm1886, %v1887, %v1885
      %v1889 = vrsqrt.pop %v1579
      %v1890 = vmul.f32 %v1579, %v1889
      %vm1891 = vcmp.eq.f32.partialorder %v1579, inf
      %v1892 = vsel %vm1891, %v1579, %v1890
      %vm1893 = vcmp.eq.f32.partialorder %v1579, 0.0
      %v1894 = vand.u32 %v1579, 2147483648
      %v1895 = vsel %vm1893, %v1894, %v1892
      %v1896 = vrsqrt.pop %v1580
      %v1897 = vmul.f32 %v1580, %v1896
      %vm1898 = vcmp.eq.f32.partialorder %v1580, inf
      %v1899 = vsel %vm1898, %v1580, %v1897
      %vm1900 = vcmp.eq.f32.partialorder %v1580, 0.0
      %v1901 = vand.u32 %v1580, 2147483648
      %v1902 = vsel %vm1900, %v1901, %v1899
      %v1903 = vrsqrt.pop %v1581
      %v1904 = vmul.f32 %v1581, %v1903
      %vm1905 = vcmp.eq.f32.partialorder %v1581, inf
      %v1906 = vsel %vm1905, %v1581, %v1904
      %vm1907 = vcmp.eq.f32.partialorder %v1581, 0.0
      %v1908 = vand.u32 %v1581, 2147483648
      %v1909 = vsel %vm1907, %v1908, %v1906
      %v1910 = vrsqrt.pop %v1582
      %v1911 = vmul.f32 %v1582, %v1910
      %vm1912 = vcmp.eq.f32.partialorder %v1582, inf
      %v1913 = vsel %vm1912, %v1582, %v1911
      %vm1914 = vcmp.eq.f32.partialorder %v1582, 0.0
      %v1915 = vand.u32 %v1582, 2147483648
      %v1916 = vsel %vm1914, %v1915, %v1913
      %v1917 = vrsqrt.pop %v1583
      %v1918 = vmul.f32 %v1583, %v1917
      %vm1919 = vcmp.eq.f32.partialorder %v1583, inf
      %v1920 = vsel %vm1919, %v1583, %v1918
      %vm1921 = vcmp.eq.f32.partialorder %v1583, 0.0
      %v1922 = vand.u32 %v1583, 2147483648
      %v1923 = vsel %vm1921, %v1922, %v1920
      %v1924 = vrsqrt.pop %v1584
      %v1925 = vmul.f32 %v1584, %v1924
      %vm1926 = vcmp.eq.f32.partialorder %v1584, inf
      %v1927 = vsel %vm1926, %v1584, %v1925
      %vm1928 = vcmp.eq.f32.partialorder %v1584, 0.0
      %v1929 = vand.u32 %v1584, 2147483648
      %v1930 = vsel %vm1928, %v1929, %v1927
      %v1931 = vrsqrt.pop %v1585
      %v1932 = vmul.f32 %v1585, %v1931
      %vm1933 = vcmp.eq.f32.partialorder %v1585, inf
      %v1934 = vsel %vm1933, %v1585, %v1932
      %vm1935 = vcmp.eq.f32.partialorder %v1585, 0.0
      %v1936 = vand.u32 %v1585, 2147483648
      %v1937 = vsel %vm1935, %v1936, %v1934
      %v1938 = vrsqrt.pop %v1586
      %v1939 = vmul.f32 %v1586, %v1938
      %vm1940 = vcmp.eq.f32.partialorder %v1586, inf
      %v1941 = vsel %vm1940, %v1586, %v1939
      %vm1942 = vcmp.eq.f32.partialorder %v1586, 0.0
      %v1943 = vand.u32 %v1586, 2147483648
      %v1944 = vsel %vm1942, %v1943, %v1941
      %v1945 = vrsqrt.pop %v1587
      %v1946 = vmul.f32 %v1587, %v1945
      %vm1947 = vcmp.eq.f32.partialorder %v1587, inf
      %v1948 = vsel %vm1947, %v1587, %v1946
      %vm1949 = vcmp.eq.f32.partialorder %v1587, 0.0
      %v1950 = vand.u32 %v1587, 2147483648
      %v1951 = vsel %vm1949, %v1950, %v1948
      %v1952 = vrsqrt.pop %v1588
      %v1953 = vmul.f32 %v1588, %v1952
      %vm1954 = vcmp.eq.f32.partialorder %v1588, inf
      %v1955 = vsel %vm1954, %v1588, %v1953
      %vm1956 = vcmp.eq.f32.partialorder %v1588, 0.0
      %v1957 = vand.u32 %v1588, 2147483648
      %v1958 = vsel %vm1956, %v1957, %v1955
      %v1959 = vrsqrt.pop %v1589
      %v1960 = vmul.f32 %v1589, %v1959
      %vm1961 = vcmp.eq.f32.partialorder %v1589, inf
      %v1962 = vsel %vm1961, %v1589, %v1960
      %vm1963 = vcmp.eq.f32.partialorder %v1589, 0.0
      %v1964 = vand.u32 %v1589, 2147483648
      %v1965 = vsel %vm1963, %v1964, %v1962
      %v1966 = vrsqrt.pop %v1590
      %v1967 = vmul.f32 %v1590, %v1966
      %vm1968 = vcmp.eq.f32.partialorder %v1590, inf
      %v1969 = vsel %vm1968, %v1590, %v1967
      %vm1970 = vcmp.eq.f32.partialorder %v1590, 0.0
      %v1971 = vand.u32 %v1590, 2147483648
      %v1972 = vsel %vm1970, %v1971, %v1969
      %v1973 = vrsqrt.pop %v1591
      %v1974 = vmul.f32 %v1591, %v1973
      %vm1975 = vcmp.eq.f32.partialorder %v1591, inf
      %v1976 = vsel %vm1975, %v1591, %v1974
      %vm1977 = vcmp.eq.f32.partialorder %v1591, 0.0
      %v1978 = vand.u32 %v1591, 2147483648
      %v1979 = vsel %vm1977, %v1978, %v1976
      %v1980 = vrsqrt.pop %v1592
      %v1981 = vmul.f32 %v1592, %v1980
      %vm1982 = vcmp.eq.f32.partialorder %v1592, inf
      %v1983 = vsel %vm1982, %v1592, %v1981
      %vm1984 = vcmp.eq.f32.partialorder %v1592, 0.0
      %v1985 = vand.u32 %v1592, 2147483648
      %v1986 = vsel %vm1984, %v1985, %v1983
      %v1987 = vrsqrt.pop %v1593
      %v1988 = vmul.f32 %v1593, %v1987
      %vm1989 = vcmp.eq.f32.partialorder %v1593, inf
      %v1990 = vsel %vm1989, %v1593, %v1988
      %vm1991 = vcmp.eq.f32.partialorder %v1593, 0.0
      %v1992 = vand.u32 %v1593, 2147483648
      %v1993 = vsel %vm1991, %v1992, %v1990
      %v1994 = vrsqrt.pop %v1594
      %v1995 = vmul.f32 %v1594, %v1994
      %vm1996 = vcmp.eq.f32.partialorder %v1594, inf
      %v1997 = vsel %vm1996, %v1594, %v1995
      %vm1998 = vcmp.eq.f32.partialorder %v1594, 0.0
      %v1999 = vand.u32 %v1594, 2147483648
      %v2000 = vsel %vm1998, %v1999, %v1997
      %v2001 = vrsqrt.pop %v1595
      %v2002 = vmul.f32 %v1595, %v2001
      %vm2003 = vcmp.eq.f32.partialorder %v1595, inf
      %v2004 = vsel %vm2003, %v1595, %v2002
      %vm2005 = vcmp.eq.f32.partialorder %v1595, 0.0
      %v2006 = vand.u32 %v1595, 2147483648
      %v2007 = vsel %vm2005, %v2006, %v2004
      %v2008 = vrsqrt.pop %v1596
      %v2009 = vmul.f32 %v1596, %v2008
      %vm2010 = vcmp.eq.f32.partialorder %v1596, inf
      %v2011 = vsel %vm2010, %v1596, %v2009
      %vm2012 = vcmp.eq.f32.partialorder %v1596, 0.0
      %v2013 = vand.u32 %v1596, 2147483648
      %v2014 = vsel %vm2012, %v2013, %v2011
      %v2015 = vrsqrt.pop %v1597
      %v2016 = vmul.f32 %v1597, %v2015
      %vm2017 = vcmp.eq.f32.partialorder %v1597, inf
      %v2018 = vsel %vm2017, %v1597, %v2016
      %vm2019 = vcmp.eq.f32.partialorder %v1597, 0.0
      %v2020 = vand.u32 %v1597, 2147483648
      %v2021 = vsel %vm2019, %v2020, %v2018
      %v2022 = vrsqrt.pop %v1598
      %v2023 = vmul.f32 %v1598, %v2022
      %vm2024 = vcmp.eq.f32.partialorder %v1598, inf
      %v2025 = vsel %vm2024, %v1598, %v2023
      %vm2026 = vcmp.eq.f32.partialorder %v1598, 0.0
      %v2027 = vand.u32 %v1598, 2147483648
      %v2028 = vsel %vm2026, %v2027, %v2025
      %v2029 = vrsqrt.pop %v1599
      %v2030 = vmul.f32 %v1599, %v2029
      %vm2031 = vcmp.eq.f32.partialorder %v1599, inf
      %v2032 = vsel %vm2031, %v1599, %v2030
      %vm2033 = vcmp.eq.f32.partialorder %v1599, 0.0
      %v2034 = vand.u32 %v1599, 2147483648
      %v2035 = vsel %vm2033, %v2034, %v2032
      %v2036 = vrsqrt.pop %v1600
      %v2037 = vmul.f32 %v1600, %v2036
      %vm2038 = vcmp.eq.f32.partialorder %v1600, inf
      %v2039 = vsel %vm2038, %v1600, %v2037
      %vm2040 = vcmp.eq.f32.partialorder %v1600, 0.0
      %v2041 = vand.u32 %v1600, 2147483648
      %v2042 = vsel %vm2040, %v2041, %v2039
      %v2043 = vrsqrt.pop %v1601
      %v2044 = vmul.f32 %v1601, %v2043
      %vm2045 = vcmp.eq.f32.partialorder %v1601, inf
      %v2046 = vsel %vm2045, %v1601, %v2044
      %vm2047 = vcmp.eq.f32.partialorder %v1601, 0.0
      %v2048 = vand.u32 %v1601, 2147483648
      %v2049 = vsel %vm2047, %v2048, %v2046
      %v2050 = vld [vmem:[%s4] sm:$0xff]
      %v2051 = vld [vmem:[%s4 + $0x8] sm:$0xff]
      %v2052 = vld [vmem:[%s5] sm:$0x1]
      %v2054 = vlaneseq
      %v2055 = vshrl.u32 %v2054, 7
      %v2056 = vsub.s32 0, %v2055
      %v2057 = vrot.slane %v2052, %v2056
      %v2059 = vmul.f32 %v1608, %v2057
      %v2060 = vmul.f32 %v1615, %v2057
      %v2061 = vmul.f32 %v1622, %v2057
      %v2062 = vmul.f32 %v1629, %v2057
      %v2063 = vmul.f32 %v1636, %v2057
      %v2064 = vmul.f32 %v1643, %v2057
      %v2065 = vmul.f32 %v1650, %v2057
      %v2066 = vmul.f32 %v1657, %v2057
      %v2067 = vmul.f32 %v1664, %v2057
      %v2068 = vmul.f32 %v1671, %v2057
      %v2069 = vmul.f32 %v1678, %v2057
      %v2070 = vmul.f32 %v1685, %v2057
      %v2071 = vmul.f32 %v1692, %v2057
      %v2072 = vmul.f32 %v1699, %v2057
      %v2073 = vmul.f32 %v1706, %v2057
      %v2074 = vmul.f32 %v1713, %v2057
      %v2075 = vmul.f32 %v1720, %v2057
      %v2076 = vmul.f32 %v1727, %v2057
      %v2077 = vmul.f32 %v1734, %v2057
      %v2078 = vmul.f32 %v1741, %v2057
      %v2079 = vmul.f32 %v1748, %v2057
      %v2080 = vmul.f32 %v1755, %v2057
      %v2081 = vmul.f32 %v1762, %v2057
      %v2082 = vmul.f32 %v1769, %v2057
      %v2083 = vmul.f32 %v1776, %v2057
      %v2084 = vmul.f32 %v1783, %v2057
      %v2085 = vmul.f32 %v1790, %v2057
      %v2086 = vmul.f32 %v1797, %v2057
      %v2087 = vmul.f32 %v1804, %v2057
      %v2088 = vmul.f32 %v1811, %v2057
      %v2089 = vmul.f32 %v1818, %v2057
      %v2090 = vmul.f32 %v1825, %v2057
      %v2091 = vmul.f32 %v1832, %v2057
      %v2092 = vmul.f32 %v1839, %v2057
      %v2093 = vmul.f32 %v1846, %v2057
      %v2094 = vmul.f32 %v1853, %v2057
      %v2095 = vmul.f32 %v1860, %v2057
      %v2096 = vmul.f32 %v1867, %v2057
      %v2097 = vmul.f32 %v1874, %v2057
      %v2098 = vmul.f32 %v1881, %v2057
      %v2099 = vmul.f32 %v1888, %v2057
      %v2100 = vmul.f32 %v1895, %v2057
      %v2101 = vmul.f32 %v1902, %v2057
      %v2102 = vmul.f32 %v1909, %v2057
      %v2103 = vmul.f32 %v1916, %v2057
      %v2104 = vmul.f32 %v1923, %v2057
      %v2105 = vmul.f32 %v1930, %v2057
      %v2106 = vmul.f32 %v1937, %v2057
      %v2107 = vmul.f32 %v1944, %v2057
      %v2108 = vmul.f32 %v1951, %v2057
      %v2109 = vmul.f32 %v1958, %v2057
      %v2110 = vmul.f32 %v1965, %v2057
      %v2111 = vmul.f32 %v1972, %v2057
      %v2112 = vmul.f32 %v1979, %v2057
      %v2113 = vmul.f32 %v1986, %v2057
      %v2114 = vmul.f32 %v1993, %v2057
      %v2115 = vmul.f32 %v2000, %v2057
      %v2116 = vmul.f32 %v2007, %v2057
      %v2117 = vmul.f32 %v2014, %v2057
      %v2118 = vmul.f32 %v2021, %v2057
      %v2119 = vmul.f32 %v2028, %v2057
      %v2120 = vmul.f32 %v2035, %v2057
      %v2121 = vmul.f32 %v2042, %v2057
      %v2122 = vmul.f32 %v2049, %v2057
      %vm2123 = vcmask 130048
      %v2125 = vsel %vm2123, %v1016, 0
      %v2128 = vsel %vm2123, %v1018, 0
      %v2131 = vsel %vm2123, %v1020, 0
      %v2134 = vsel %vm2123, %v1022, 0
      %v2137 = vsel %vm2123, %v1024, 0
      %v2140 = vsel %vm2123, %v1026, 0
      %v2143 = vsel %vm2123, %v1028, 0
      %v2146 = vsel %vm2123, %v1030, 0
      %v2149 = vsel %vm2123, %v1032, 0
      %v2152 = vsel %vm2123, %v1034, 0
      %v2155 = vsel %vm2123, %v1036, 0
      %v2158 = vsel %vm2123, %v1038, 0
      %v2161 = vsel %vm2123, %v1040, 0
      %v2164 = vsel %vm2123, %v1042, 0
      %v2167 = vsel %vm2123, %v1044, 0
      %v2170 = vsel %vm2123, %v1046, 0
      %v2173 = vsel %vm2123, %v1048, 0
      %v2176 = vsel %vm2123, %v1050, 0
      %v2179 = vsel %vm2123, %v1052, 0
      %v2182 = vsel %vm2123, %v1054, 0
      %v2185 = vsel %vm2123, %v1056, 0
      %v2188 = vsel %vm2123, %v1058, 0
      %v2191 = vsel %vm2123, %v1060, 0
      %v2194 = vsel %vm2123, %v1062, 0
      %v2197 = vsel %vm2123, %v1064, 0
      %v2200 = vsel %vm2123, %v1066, 0
      %v2203 = vsel %vm2123, %v1068, 0
      %v2206 = vsel %vm2123, %v1070, 0
      %v2209 = vsel %vm2123, %v1072, 0
      %v2212 = vsel %vm2123, %v1074, 0
      %v2215 = vsel %vm2123, %v1076, 0
      %v2218 = vsel %vm2123, %v1078, 0
      %v2221 = vsel %vm2123, %v1080, 0
      %v2224 = vsel %vm2123, %v1082, 0
      %v2227 = vsel %vm2123, %v1084, 0
      %v2230 = vsel %vm2123, %v1086, 0
      %v2233 = vsel %vm2123, %v1088, 0
      %v2236 = vsel %vm2123, %v1090, 0
      %v2239 = vsel %vm2123, %v1092, 0
      %v2242 = vsel %vm2123, %v1094, 0
      %v2245 = vsel %vm2123, %v1096, 0
      %v2248 = vsel %vm2123, %v1098, 0
      %v2251 = vsel %vm2123, %v1100, 0
      %v2254 = vsel %vm2123, %v1102, 0
      %v2257 = vsel %vm2123, %v1104, 0
      %v2260 = vsel %vm2123, %v1106, 0
      %v2263 = vsel %vm2123, %v1108, 0
      %v2266 = vsel %vm2123, %v1110, 0
      %v2269 = vsel %vm2123, %v1112, 0
      %v2272 = vsel %vm2123, %v1114, 0
      %v2275 = vsel %vm2123, %v1116, 0
      %v2278 = vsel %vm2123, %v1118, 0
      %v2281 = vsel %vm2123, %v1120, 0
      %v2284 = vsel %vm2123, %v1122, 0
      %v2287 = vsel %vm2123, %v1124, 0
      %v2290 = vsel %vm2123, %v1126, 0
      %v2293 = vsel %vm2123, %v1128, 0
      %v2296 = vsel %vm2123, %v1130, 0
      %v2299 = vsel %vm2123, %v1132, 0
      %v2302 = vsel %vm2123, %v1134, 0
      %v2305 = vsel %vm2123, %v1136, 0
      %v2308 = vsel %vm2123, %v1138, 0
      %v2311 = vsel %vm2123, %v1140, 0
      %v2314 = vsel %vm2123, %v1142, 0
      %2316 = vmatprep.subr.mxu0 0.0
      %2317 = vmatpush1.msra.mxu0 %v2050
      %2318 = vmatprep.subr.mxu0 0.0
      %2319 = vmatpush1.msra.mxu0 %v2051
      %2320 = vmatprep.subr.mxu0 0.0
      %2321 = vmatpush1.msra.mxu0 0.0
      %2322 = vmatprep.subr.mxu0 0.0
      %2323 = vmatpush1.msra.mxu0 0.0
      %2324 = vmatprep.subr.mxu0 0.0
      %2325 = vmatpush1.msra.mxu0 0.0
      %2326 = vmatprep.subr.mxu0 0.0
      %2327 = vmatpush1.msra.mxu0 0.0
      %2328 = vmatprep.subr.mxu0 0.0
      %2329 = vmatpush1.msra.mxu0 0.0
      %2330 = vmatprep.subr.mxu0 0.0
      %2331 = vmatpush1.msra.mxu0 0.0
      %2332 = vmatprep.subr.mxu0 0.0
      %2333 = vmatpush1.msra.mxu0 0.0
      %2334 = vmatprep.subr.mxu0 0.0
      %2335 = vmatpush1.msra.mxu0 0.0
      %2336 = vmatprep.subr.mxu0 0.0
      %2337 = vmatpush1.msra.mxu0 0.0
      %2338 = vmatprep.subr.mxu0 0.0
      %2339 = vmatpush1.msra.mxu0 0.0
      %2340 = vmatprep.subr.mxu0 0.0
      %2341 = vmatpush1.msra.mxu0 0.0
      %2342 = vmatprep.subr.mxu0 0.0
      %2343 = vmatpush1.msra.mxu0 0.0
      %2344 = vmatprep.subr.mxu0 0.0
      %2345 = vmatpush1.msra.mxu0 0.0
      %2346 = vmatprep.subr.mxu0 0.0
      %2347 = vmatpush1.msra.mxu0 0.0
      %2348 = vmatprep.subr.mxu0 0.0
      %2349 = vmatpush1.msra.mxu0 0.0
      %2350 = vmatprep.subr.mxu0 0.0
      %2351 = vmatpush1.msra.mxu0 0.0
      %2352 = vmatprep.subr.mxu0 0.0
      %2353 = vmatpush1.msra.mxu0 0.0
      %2354 = vmatprep.subr.mxu0 0.0
      %2355 = vmatpush1.msra.mxu0 0.0
      %2356 = vmatprep.subr.mxu0 0.0
      %2357 = vmatpush1.msra.mxu0 0.0
      %2358 = vmatprep.subr.mxu0 0.0
      %2359 = vmatpush1.msra.mxu0 0.0
      %2360 = vmatprep.subr.mxu0 0.0
      %2361 = vmatpush1.msra.mxu0 0.0
      %2362 = vmatprep.subr.mxu0 0.0
      %2363 = vmatpush1.msra.mxu0 0.0
      %2364 = vmatprep.subr.mxu0 0.0
      %2365 = vmatpush1.msra.mxu0 0.0
      %2366 = vmatprep.subr.mxu0 0.0
      %2367 = vmatpush1.msra.mxu0 0.0
      %2368 = vmatprep.subr.mxu0 0.0
      %2369 = vmatpush1.msra.mxu0 0.0
      %2370 = vmatprep.subr.mxu0 0.0
      %2371 = vmatpush1.msra.mxu0 0.0
      %2372 = vmatprep.subr.mxu0 0.0
      %2373 = vmatpush1.msra.mxu0 0.0
      %2374 = vmatprep.subr.mxu0 0.0
      %2375 = vmatpush1.msra.mxu0 0.0
      %2376 = vmatprep.subr.mxu0 0.0
      %2377 = vmatpush1.msra.mxu0 0.0
      %2378 = vmatprep.subr.mxu0 0.0
      %2379 = vmatpush1.msra.mxu0 0.0
      %2380 = vmatprep.mubr.f32.mxu0 0.0
      %2381 = vmatmul.mubr.f32.gmra.mrb[0].mxu0 %v2125
      %v2382 = vpop.f32.mrb[0].mxu0
      %v2383 = vadd.f32 %v2059, %v2382
      %v2384 = vpop.f32.mrb[0].mxu0
      %2385 = vmatprep.mubr.f32.mxu0 0.0
      %2386 = vmatmul.mubr.f32.gmra.mrb[0].mxu0 %v2128
      %v2387 = vpop.f32.mrb[0].mxu0
      %v2388 = vadd.f32 %v2060, %v2387
      %v2389 = vpop.f32.mrb[0].mxu0
      %2390 = vmatprep.mubr.f32.mxu0 0.0
      %2391 = vmatmul.mubr.f32.gmra.mrb[0].mxu0 %v2131
      %v2392 = vpop.f32.mrb[0].mxu0
      %v2393 = vadd.f32 %v2061, %v2392
      %v2394 = vpop.f32.mrb[0].mxu0
      %2395 = vmatprep.mubr.f32.mxu0 0.0
      %2396 = vmatmul.mubr.f32.gmra.mrb[0].mxu0 %v2134
      %v2397 = vpop.f32.mrb[0].mxu0
      %v2398 = vadd.f32 %v2062, %v2397
      %v2399 = vpop.f32.mrb[0].mxu0
      %2400 = vmatprep.mubr.f32.mxu0 0.0
      %2401 = vmatmul.mubr.f32.gmra.mrb[0].mxu0 %v2137
      %v2402 = vpop.f32.mrb[0].mxu0
      %v2403 = vadd.f32 %v2063, %v2402
      %v2404 = vpop.f32.mrb[0].mxu0
      %2405 = vmatprep.mubr.f32.mxu0 0.0
      %2406 = vmatmul.mubr.f32.gmra.mrb[0].mxu0 %v2140
      %v2407 = vpop.f32.mrb[0].mxu0
      %v2408 = vadd.f32 %v2064, %v2407
      %v2409 = vpop.f32.mrb[0].mxu0
      %2410 = vmatprep.mubr.f32.mxu0 0.0
      %2411 = vmatmul.mubr.f32.gmra.mrb[0].mxu0 %v2143
      %v2412 = vpop.f32.mrb[0].mxu0
      %v2413 = vadd.f32 %v2065, %v2412
      %v2414 = vpop.f32.mrb[0].mxu0
      %2415 = vmatprep.mubr.f32.mxu0 0.0
      %2416 = vmatmul.mubr.f32.gmra.mrb[0].mxu0 %v2146
      %v2417 = vpop.f32.mrb[0].mxu0
      %v2418 = vadd.f32 %v2066, %v2417
      %v2419 = vpop.f32.mrb[0].mxu0
      %2420 = vmatprep.mubr.f32.mxu0 0.0
      %2421 = vmatmul.mubr.f32.gmra.mrb[0].mxu0 %v2149
      %v2422 = vpop.f32.mrb[0].mxu0
      %v2423 = vadd.f32 %v2067, %v2422
      %v2424 = vpop.f32.mrb[0].mxu0
      %2425 = vmatprep.mubr.f32.mxu0 0.0
      %2426 = vmatmul.mubr.f32.gmra.mrb[0].mxu0 %v2152
      %v2427 = vpop.f32.mrb[0].mxu0
      %v2428 = vadd.f32 %v2068, %v2427
      %v2429 = vpop.f32.mrb[0].mxu0
      %2430 = vmatprep.mubr.f32.mxu0 0.0
      %2431 = vmatmul.mubr.f32.gmra.mrb[0].mxu0 %v2155
      %v2432 = vpop.f32.mrb[0].mxu0
      %v2433 = vadd.f32 %v2069, %v2432
      %v2434 = vpop.f32.mrb[0].mxu0
      %2435 = vmatprep.mubr.f32.mxu0 0.0
      %2436 = vmatmul.mubr.f32.gmra.mrb[0].mxu0 %v2158
      %v2437 = vpop.f32.mrb[0].mxu0
      %v2438 = vadd.f32 %v2070, %v2437
      %v2439 = vpop.f32.mrb[0].mxu0
      %2440 = vmatprep.mubr.f32.mxu0 0.0
      %2441 = vmatmul.mubr.f32.gmra.mrb[0].mxu0 %v2161
      %v2442 = vpop.f32.mrb[0].mxu0
      %v2443 = vadd.f32 %v2071, %v2442
      %v2444 = vpop.f32.mrb[0].mxu0
      %2445 = vmatprep.mubr.f32.mxu0 0.0
      %2446 = vmatmul.mubr.f32.gmra.mrb[0].mxu0 %v2164
      %v2447 = vpop.f32.mrb[0].mxu0
      %v2448 = vadd.f32 %v2072, %v2447
      %v2449 = vpop.f32.mrb[0].mxu0
      %2450 = vmatprep.mubr.f32.mxu0 0.0
      %2451 = vmatmul.mubr.f32.gmra.mrb[0].mxu0 %v2167
      %v2452 = vpop.f32.mrb[0].mxu0
      %v2453 = vadd.f32 %v2073, %v2452
      %v2454 = vpop.f32.mrb[0].mxu0
      %2455 = vmatprep.mubr.f32.mxu0 0.0
      %2456 = vmatmul.mubr.f32.gmra.mrb[0].mxu0 %v2170
      %v2457 = vpop.f32.mrb[0].mxu0
      %v2458 = vadd.f32 %v2074, %v2457
      %v2459 = vpop.f32.mrb[0].mxu0
      %2460 = vmatprep.mubr.f32.mxu0 0.0
      %2461 = vmatmul.mubr.f32.gmra.mrb[0].mxu0 %v2173
      %v2462 = vpop.f32.mrb[0].mxu0
      %v2463 = vadd.f32 %v2075, %v2462
      %v2464 = vpop.f32.mrb[0].mxu0
      %2465 = vmatprep.mubr.f32.mxu0 0.0
      %2466 = vmatmul.mubr.f32.gmra.mrb[0].mxu0 %v2176
      %v2467 = vpop.f32.mrb[0].mxu0
      %v2468 = vadd.f32 %v2076, %v2467
      %v2469 = vpop.f32.mrb[0].mxu0
      %2470 = vmatprep.mubr.f32.mxu0 0.0
      %2471 = vmatmul.mubr.f32.gmra.mrb[0].mxu0 %v2179
      %v2472 = vpop.f32.mrb[0].mxu0
      %v2473 = vadd.f32 %v2077, %v2472
      %v2474 = vpop.f32.mrb[0].mxu0
      %2475 = vmatprep.mubr.f32.mxu0 0.0
      %2476 = vmatmul.mubr.f32.gmra.mrb[0].mxu0 %v2182
      %v2477 = vpop.f32.mrb[0].mxu0
      %v2478 = vadd.f32 %v2078, %v2477
      %v2479 = vpop.f32.mrb[0].mxu0
      %2480 = vmatprep.mubr.f32.mxu0 0.0
      %2481 = vmatmul.mubr.f32.gmra.mrb[0].mxu0 %v2185
      %v2482 = vpop.f32.mrb[0].mxu0
      %v2483 = vadd.f32 %v2079, %v2482
      %v2484 = vpop.f32.mrb[0].mxu0
      %2485 = vmatprep.mubr.f32.mxu0 0.0
      %2486 = vmatmul.mubr.f32.gmra.mrb[0].mxu0 %v2188
      %v2487 = vpop.f32.mrb[0].mxu0
      %v2488 = vadd.f32 %v2080, %v2487
      %v2489 = vpop.f32.mrb[0].mxu0
      %2490 = vmatprep.mubr.f32.mxu0 0.0
      %2491 = vmatmul.mubr.f32.gmra.mrb[0].mxu0 %v2191
      %v2492 = vpop.f32.mrb[0].mxu0
      %v2493 = vadd.f32 %v2081, %v2492
      %v2494 = vpop.f32.mrb[0].mxu0
      %2495 = vmatprep.mubr.f32.mxu0 0.0
      %2496 = vmatmul.mubr.f32.gmra.mrb[0].mxu0 %v2194
      %v2497 = vpop.f32.mrb[0].mxu0
      %v2498 = vadd.f32 %v2082, %v2497
      %v2499 = vpop.f32.mrb[0].mxu0
      %2500 = vmatprep.mubr.f32.mxu0 0.0
      %2501 = vmatmul.mubr.f32.gmra.mrb[0].mxu0 %v2197
      %v2502 = vpop.f32.mrb[0].mxu0
      %v2503 = vadd.f32 %v2083, %v2502
      %v2504 = vpop.f32.mrb[0].mxu0
      %2505 = vmatprep.mubr.f32.mxu0 0.0
      %2506 = vmatmul.mubr.f32.gmra.mrb[0].mxu0 %v2200
      %v2507 = vpop.f32.mrb[0].mxu0
      %v2508 = vadd.f32 %v2084, %v2507
      %v2509 = vpop.f32.mrb[0].mxu0
      %2510 = vmatprep.mubr.f32.mxu0 0.0
      %2511 = vmatmul.mubr.f32.gmra.mrb[0].mxu0 %v2203
      %v2512 = vpop.f32.mrb[0].mxu0
      %v2513 = vadd.f32 %v2085, %v2512
      %v2514 = vpop.f32.mrb[0].mxu0
      %2515 = vmatprep.mubr.f32.mxu0 0.0
      %2516 = vmatmul.mubr.f32.gmra.mrb[0].mxu0 %v2206
      %v2517 = vpop.f32.mrb[0].mxu0
      %v2518 = vadd.f32 %v2086, %v2517
      %v2519 = vpop.f32.mrb[0].mxu0
      %2520 = vmatprep.mubr.f32.mxu0 0.0
      %2521 = vmatmul.mubr.f32.gmra.mrb[0].mxu0 %v2209
      %v2522 = vpop.f32.mrb[0].mxu0
      %v2523 = vadd.f32 %v2087, %v2522
      %v2524 = vpop.f32.mrb[0].mxu0
      %2525 = vmatprep.mubr.f32.mxu0 0.0
      %2526 = vmatmul.mubr.f32.gmra.mrb[0].mxu0 %v2212
      %v2527 = vpop.f32.mrb[0].mxu0
      %v2528 = vadd.f32 %v2088, %v2527
      %v2529 = vpop.f32.mrb[0].mxu0
      %2530 = vmatprep.mubr.f32.mxu0 0.0
      %2531 = vmatmul.mubr.f32.gmra.mrb[0].mxu0 %v2215
      %v2532 = vpop.f32.mrb[0].mxu0
      %v2533 = vadd.f32 %v2089, %v2532
      %v2534 = vpop.f32.mrb[0].mxu0
      %2535 = vmatprep.mubr.f32.mxu0 0.0
      %2536 = vmatmul.mubr.f32.gmra.mrb[0].mxu0 %v2218
      %v2537 = vpop.f32.mrb[0].mxu0
      %v2538 = vadd.f32 %v2090, %v2537
      %v2539 = vpop.f32.mrb[0].mxu0
      %2540 = vmatprep.mubr.f32.mxu0 0.0
      %2541 = vmatmul.mubr.f32.gmra.mrb[0].mxu0 %v2221
      %v2542 = vpop.f32.mrb[0].mxu0
      %v2543 = vadd.f32 %v2091, %v2542
      %v2544 = vpop.f32.mrb[0].mxu0
      %2545 = vmatprep.mubr.f32.mxu0 0.0
      %2546 = vmatmul.mubr.f32.gmra.mrb[0].mxu0 %v2224
      %v2547 = vpop.f32.mrb[0].mxu0
      %v2548 = vadd.f32 %v2092, %v2547
      %v2549 = vpop.f32.mrb[0].mxu0
      %2550 = vmatprep.mubr.f32.mxu0 0.0
      %2551 = vmatmul.mubr.f32.gmra.mrb[0].mxu0 %v2227
      %v2552 = vpop.f32.mrb[0].mxu0
      %v2553 = vadd.f32 %v2093, %v2552
      %v2554 = vpop.f32.mrb[0].mxu0
      %2555 = vmatprep.mubr.f32.mxu0 0.0
      %2556 = vmatmul.mubr.f32.gmra.mrb[0].mxu0 %v2230
      %v2557 = vpop.f32.mrb[0].mxu0
      %v2558 = vadd.f32 %v2094, %v2557
      %v2559 = vpop.f32.mrb[0].mxu0
      %2560 = vmatprep.mubr.f32.mxu0 0.0
      %2561 = vmatmul.mubr.f32.gmra.mrb[0].mxu0 %v2233
      %v2562 = vpop.f32.mrb[0].mxu0
      %v2563 = vadd.f32 %v2095, %v2562
      %v2564 = vpop.f32.mrb[0].mxu0
      %2565 = vmatprep.mubr.f32.mxu0 0.0
      %2566 = vmatmul.mubr.f32.gmra.mrb[0].mxu0 %v2236
      %v2567 = vpop.f32.mrb[0].mxu0
      %v2568 = vadd.f32 %v2096, %v2567
      %v2569 = vpop.f32.mrb[0].mxu0
      %2570 = vmatprep.mubr.f32.mxu0 0.0
      %2571 = vmatmul.mubr.f32.gmra.mrb[0].mxu0 %v2239
      %v2572 = vpop.f32.mrb[0].mxu0
      %v2573 = vadd.f32 %v2097, %v2572
      %v2574 = vpop.f32.mrb[0].mxu0
      %2575 = vmatprep.mubr.f32.mxu0 0.0
      %2576 = vmatmul.mubr.f32.gmra.mrb[0].mxu0 %v2242
      %v2577 = vpop.f32.mrb[0].mxu0
      %v2578 = vadd.f32 %v2098, %v2577
      %v2579 = vpop.f32.mrb[0].mxu0
      %2580 = vmatprep.mubr.f32.mxu0 0.0
      %2581 = vmatmul.mubr.f32.gmra.mrb[0].mxu0 %v2245
      %v2582 = vpop.f32.mrb[0].mxu0
      %v2583 = vadd.f32 %v2099, %v2582
      %v2584 = vpop.f32.mrb[0].mxu0
      %2585 = vmatprep.mubr.f32.mxu0 0.0
      %2586 = vmatmul.mubr.f32.gmra.mrb[0].mxu0 %v2248
      %v2587 = vpop.f32.mrb[0].mxu0
      %v2588 = vadd.f32 %v2100, %v2587
      %v2589 = vpop.f32.mrb[0].mxu0
      %2590 = vmatprep.mubr.f32.mxu0 0.0
      %2591 = vmatmul.mubr.f32.gmra.mrb[0].mxu0 %v2251
      %v2592 = vpop.f32.mrb[0].mxu0
      %v2593 = vadd.f32 %v2101, %v2592
      %v2594 = vpop.f32.mrb[0].mxu0
      %2595 = vmatprep.mubr.f32.mxu0 0.0
      %2596 = vmatmul.mubr.f32.gmra.mrb[0].mxu0 %v2254
      %v2597 = vpop.f32.mrb[0].mxu0
      %v2598 = vadd.f32 %v2102, %v2597
      %v2599 = vpop.f32.mrb[0].mxu0
      %2600 = vmatprep.mubr.f32.mxu0 0.0
      %2601 = vmatmul.mubr.f32.gmra.mrb[0].mxu0 %v2257
      %v2602 = vpop.f32.mrb[0].mxu0
      %v2603 = vadd.f32 %v2103, %v2602
      %v2604 = vpop.f32.mrb[0].mxu0
      %2605 = vmatprep.mubr.f32.mxu0 0.0
      %2606 = vmatmul.mubr.f32.gmra.mrb[0].mxu0 %v2260
      %v2607 = vpop.f32.mrb[0].mxu0
      %v2608 = vadd.f32 %v2104, %v2607
      %v2609 = vpop.f32.mrb[0].mxu0
      %2610 = vmatprep.mubr.f32.mxu0 0.0
      %2611 = vmatmul.mubr.f32.gmra.mrb[0].mxu0 %v2263
      %v2612 = vpop.f32.mrb[0].mxu0
      %v2613 = vadd.f32 %v2105, %v2612
      %v2614 = vpop.f32.mrb[0].mxu0
      %2615 = vmatprep.mubr.f32.mxu0 0.0
      %2616 = vmatmul.mubr.f32.gmra.mrb[0].mxu0 %v2266
      %v2617 = vpop.f32.mrb[0].mxu0
      %v2618 = vadd.f32 %v2106, %v2617
      %v2619 = vpop.f32.mrb[0].mxu0
      %2620 = vmatprep.mubr.f32.mxu0 0.0
      %2621 = vmatmul.mubr.f32.gmra.mrb[0].mxu0 %v2269
      %v2622 = vpop.f32.mrb[0].mxu0
      %v2623 = vadd.f32 %v2107, %v2622
      %v2624 = vpop.f32.mrb[0].mxu0
      %2625 = vmatprep.mubr.f32.mxu0 0.0
      %2626 = vmatmul.mubr.f32.gmra.mrb[0].mxu0 %v2272
      %v2627 = vpop.f32.mrb[0].mxu0
      %v2628 = vadd.f32 %v2108, %v2627
      %v2629 = vpop.f32.mrb[0].mxu0
      %2630 = vmatprep.mubr.f32.mxu0 0.0
      %2631 = vmatmul.mubr.f32.gmra.mrb[0].mxu0 %v2275
      %v2632 = vpop.f32.mrb[0].mxu0
      %v2633 = vadd.f32 %v2109, %v2632
      %v2634 = vpop.f32.mrb[0].mxu0
      %2635 = vmatprep.mubr.f32.mxu0 0.0
      %2636 = vmatmul.mubr.f32.gmra.mrb[0].mxu0 %v2278
      %v2637 = vpop.f32.mrb[0].mxu0
      %v2638 = vadd.f32 %v2110, %v2637
      %v2639 = vpop.f32.mrb[0].mxu0
      %2640 = vmatprep.mubr.f32.mxu0 0.0
      %2641 = vmatmul.mubr.f32.gmra.mrb[0].mxu0 %v2281
      %v2642 = vpop.f32.mrb[0].mxu0
      %v2643 = vadd.f32 %v2111, %v2642
      %v2644 = vpop.f32.mrb[0].mxu0
      %2645 = vmatprep.mubr.f32.mxu0 0.0
      %2646 = vmatmul.mubr.f32.gmra.mrb[0].mxu0 %v2284
      %v2647 = vpop.f32.mrb[0].mxu0
      %v2648 = vadd.f32 %v2112, %v2647
      %v2649 = vpop.f32.mrb[0].mxu0
      %2650 = vmatprep.mubr.f32.mxu0 0.0
      %2651 = vmatmul.mubr.f32.gmra.mrb[0].mxu0 %v2287
      %v2652 = vpop.f32.mrb[0].mxu0
      %v2653 = vadd.f32 %v2113, %v2652
      %v2654 = vpop.f32.mrb[0].mxu0
      %2655 = vmatprep.mubr.f32.mxu0 0.0
      %2656 = vmatmul.mubr.f32.gmra.mrb[0].mxu0 %v2290
      %v2657 = vpop.f32.mrb[0].mxu0
      %v2658 = vadd.f32 %v2114, %v2657
      %v2659 = vpop.f32.mrb[0].mxu0
      %2660 = vmatprep.mubr.f32.mxu0 0.0
      %2661 = vmatmul.mubr.f32.gmra.mrb[0].mxu0 %v2293
      %v2662 = vpop.f32.mrb[0].mxu0
      %v2663 = vadd.f32 %v2115, %v2662
      %v2664 = vpop.f32.mrb[0].mxu0
      %2665 = vmatprep.mubr.f32.mxu0 0.0
      %2666 = vmatmul.mubr.f32.gmra.mrb[0].mxu0 %v2296
      %v2667 = vpop.f32.mrb[0].mxu0
      %v2668 = vadd.f32 %v2116, %v2667
      %v2669 = vpop.f32.mrb[0].mxu0
      %2670 = vmatprep.mubr.f32.mxu0 0.0
      %2671 = vmatmul.mubr.f32.gmra.mrb[0].mxu0 %v2299
      %v2672 = vpop.f32.mrb[0].mxu0
      %v2673 = vadd.f32 %v2117, %v2672
      %v2674 = vpop.f32.mrb[0].mxu0
      %2675 = vmatprep.mubr.f32.mxu0 0.0
      %2676 = vmatmul.mubr.f32.gmra.mrb[0].mxu0 %v2302
      %v2677 = vpop.f32.mrb[0].mxu0
      %v2678 = vadd.f32 %v2118, %v2677
      %v2679 = vpop.f32.mrb[0].mxu0
      %2680 = vmatprep.mubr.f32.mxu0 0.0
      %2681 = vmatmul.mubr.f32.gmra.mrb[0].mxu0 %v2305
      %v2682 = vpop.f32.mrb[0].mxu0
      %v2683 = vadd.f32 %v2119, %v2682
      %v2684 = vpop.f32.mrb[0].mxu0
      %2685 = vmatprep.mubr.f32.mxu0 0.0
      %2686 = vmatmul.mubr.f32.gmra.mrb[0].mxu0 %v2308
      %v2687 = vpop.f32.mrb[0].mxu0
      %v2688 = vadd.f32 %v2120, %v2687
      %v2689 = vpop.f32.mrb[0].mxu0
      %2690 = vmatprep.mubr.f32.mxu0 0.0
      %2691 = vmatmul.mubr.f32.gmra.mrb[0].mxu0 %v2311
      %v2692 = vpop.f32.mrb[0].mxu0
      %v2693 = vadd.f32 %v2121, %v2692
      %v2694 = vpop.f32.mrb[0].mxu0
      %2695 = vmatprep.mubr.f32.mxu0 0.0
      %2696 = vmatmul.mubr.f32.gmra.mrb[0].mxu0 %v2314
      %v2697 = vpop.f32.mrb[0].mxu0
      %v2698 = vadd.f32 %v2122, %v2697
      %v2699 = vpop.f32.mrb[0].mxu0
      %2700 = vdwg.mxu0
      %v2701 = vld [vmem:[%s6] sm:$0x1]
      %v2703 = vlaneseq
      %v2704 = vshrl.u32 %v2703, 7
      %v2705 = vsub.s32 0, %v2704
      %v2706 = vrot.slane %v2701, %v2705
      %v2708 = vadd.f32 %v2383, %v2706
      %v2709 = vadd.f32 %v2388, %v2706
      %v2710 = vadd.f32 %v2393, %v2706
      %v2711 = vadd.f32 %v2398, %v2706
      %v2712 = vadd.f32 %v2403, %v2706
      %v2713 = vadd.f32 %v2408, %v2706
      %v2714 = vadd.f32 %v2413, %v2706
      %v2715 = vadd.f32 %v2418, %v2706
      %v2716 = vadd.f32 %v2423, %v2706
      %v2717 = vadd.f32 %v2428, %v2706
      %v2718 = vadd.f32 %v2433, %v2706
      %v2719 = vadd.f32 %v2438, %v2706
      %v2720 = vadd.f32 %v2443, %v2706
      %v2721 = vadd.f32 %v2448, %v2706
      %v2722 = vadd.f32 %v2453, %v2706
      %v2723 = vadd.f32 %v2458, %v2706
      %v2724 = vadd.f32 %v2463, %v2706
      %v2725 = vadd.f32 %v2468, %v2706
      %v2726 = vadd.f32 %v2473, %v2706
      %v2727 = vadd.f32 %v2478, %v2706
      %v2728 = vadd.f32 %v2483, %v2706
      %v2729 = vadd.f32 %v2488, %v2706
      %v2730 = vadd.f32 %v2493, %v2706
      %v2731 = vadd.f32 %v2498, %v2706
      %v2732 = vadd.f32 %v2503, %v2706
      %v2733 = vadd.f32 %v2508, %v2706
      %v2734 = vadd.f32 %v2513, %v2706
      %v2735 = vadd.f32 %v2518, %v2706
      %v2736 = vadd.f32 %v2523, %v2706
      %v2737 = vadd.f32 %v2528, %v2706
      %v2738 = vadd.f32 %v2533, %v2706
      %v2739 = vadd.f32 %v2538, %v2706
      %v2740 = vadd.f32 %v2543, %v2706
      %v2741 = vadd.f32 %v2548, %v2706
      %v2742 = vadd.f32 %v2553, %v2706
      %v2743 = vadd.f32 %v2558, %v2706
      %v2744 = vadd.f32 %v2563, %v2706
      %v2745 = vadd.f32 %v2568, %v2706
      %v2746 = vadd.f32 %v2573, %v2706
      %v2747 = vadd.f32 %v2578, %v2706
      %v2748 = vadd.f32 %v2583, %v2706
      %v2749 = vadd.f32 %v2588, %v2706
      %v2750 = vadd.f32 %v2593, %v2706
      %v2751 = vadd.f32 %v2598, %v2706
      %v2752 = vadd.f32 %v2603, %v2706
      %v2753 = vadd.f32 %v2608, %v2706
      %v2754 = vadd.f32 %v2613, %v2706
      %v2755 = vadd.f32 %v2618, %v2706
      %v2756 = vadd.f32 %v2623, %v2706
      %v2757 = vadd.f32 %v2628, %v2706
      %v2758 = vadd.f32 %v2633, %v2706
      %v2759 = vadd.f32 %v2638, %v2706
      %v2760 = vadd.f32 %v2643, %v2706
      %v2761 = vadd.f32 %v2648, %v2706
      %v2762 = vadd.f32 %v2653, %v2706
      %v2763 = vadd.f32 %v2658, %v2706
      %v2764 = vadd.f32 %v2663, %v2706
      %v2765 = vadd.f32 %v2668, %v2706
      %v2766 = vadd.f32 %v2673, %v2706
      %v2767 = vadd.f32 %v2678, %v2706
      %v2768 = vadd.f32 %v2683, %v2706
      %v2769 = vadd.f32 %v2688, %v2706
      %v2770 = vadd.f32 %v2693, %v2706
      %v2771 = vadd.f32 %v2698, %v2706
      %v2772 = vld [vmem:[%s7] sm:$0xff]
      %v2773 = vld [vmem:[%s7 + $0x8] sm:$0xff]
      %v2774 = vld [vmem:[#allocation3] sm:$0x1]
      %v2776 = vlaneseq
      %v2777 = vshrl.u32 %v2776, 7
      %v2778 = vsub.s32 0, %v2777
      %v2779 = vrot.slane %v2774, %v2778
      %v2782 = vsel %vm2123, %v2708, 0
      %v2785 = vsel %vm2123, %v2709, 0
      %v2788 = vsel %vm2123, %v2710, 0
      %v2791 = vsel %vm2123, %v2711, 0
      %v2794 = vsel %vm2123, %v2712, 0
      %v2797 = vsel %vm2123, %v2713, 0
      %v2800 = vsel %vm2123, %v2714, 0
      %v2803 = vsel %vm2123, %v2715, 0
      %v2806 = vsel %vm2123, %v2716, 0
      %v2809 = vsel %vm2123, %v2717, 0
      %v2812 = vsel %vm2123, %v2718, 0
      %v2815 = vsel %vm2123, %v2719, 0
      %v2818 = vsel %vm2123, %v2720, 0
      %v2821 = vsel %vm2123, %v2721, 0
      %v2824 = vsel %vm2123, %v2722, 0
      %v2827 = vsel %vm2123, %v2723, 0
      %v2830 = vsel %vm2123, %v2724, 0
      %v2833 = vsel %vm2123, %v2725, 0
      %v2836 = vsel %vm2123, %v2726, 0
      %v2839 = vsel %vm2123, %v2727, 0
      %v2842 = vsel %vm2123, %v2728, 0
      %v2845 = vsel %vm2123, %v2729, 0
      %v2848 = vsel %vm2123, %v2730, 0
      %v2851 = vsel %vm2123, %v2731, 0
      %v2854 = vsel %vm2123, %v2732, 0
      %v2857 = vsel %vm2123, %v2733, 0
      %v2860 = vsel %vm2123, %v2734, 0
      %v2863 = vsel %vm2123, %v2735, 0
      %v2866 = vsel %vm2123, %v2736, 0
      %v2869 = vsel %vm2123, %v2737, 0
      %v2872 = vsel %vm2123, %v2738, 0
      %v2875 = vsel %vm2123, %v2739, 0
      %v2878 = vsel %vm2123, %v2740, 0
      %v2881 = vsel %vm2123, %v2741, 0
      %v2884 = vsel %vm2123, %v2742, 0
      %v2887 = vsel %vm2123, %v2743, 0
      %v2890 = vsel %vm2123, %v2744, 0
      %v2893 = vsel %vm2123, %v2745, 0
      %v2896 = vsel %vm2123, %v2746, 0
      %v2899 = vsel %vm2123, %v2747, 0
      %v2902 = vsel %vm2123, %v2748, 0
      %v2905 = vsel %vm2123, %v2749, 0
      %v2908 = vsel %vm2123, %v2750, 0
      %v2911 = vsel %vm2123, %v2751, 0
      %v2914 = vsel %vm2123, %v2752, 0
      %v2917 = vsel %vm2123, %v2753, 0
      %v2920 = vsel %vm2123, %v2754, 0
      %v2923 = vsel %vm2123, %v2755, 0
      %v2926 = vsel %vm2123, %v2756, 0
      %v2929 = vsel %vm2123, %v2757, 0
      %v2932 = vsel %vm2123, %v2758, 0
      %v2935 = vsel %vm2123, %v2759, 0
      %v2938 = vsel %vm2123, %v2760, 0
      %v2941 = vsel %vm2123, %v2761, 0
      %v2944 = vsel %vm2123, %v2762, 0
      %v2947 = vsel %vm2123, %v2763, 0
      %v2950 = vsel %vm2123, %v2764, 0
      %v2953 = vsel %vm2123, %v2765, 0
      %v2956 = vsel %vm2123, %v2766, 0
      %v2959 = vsel %vm2123, %v2767, 0
      %v2962 = vsel %vm2123, %v2768, 0
      %v2965 = vsel %vm2123, %v2769, 0
      %v2968 = vsel %vm2123, %v2770, 0
      %v2971 = vsel %vm2123, %v2771, 0
      %2973 = vmatprep.subr.mxu0 0.0
      %2974 = vmatpush1.msra.mxu0 %v2772
      %2975 = vmatprep.subr.mxu0 0.0
      %2976 = vmatpush1.msra.mxu0 %v2773
      %2977 = vmatprep.subr.mxu0 0.0
      %2978 = vmatpush1.msra.mxu0 0.0
      %2979 = vmatprep.subr.mxu0 0.0
      %2980 = vmatpush1.msra.mxu0 0.0
      %2981 = vmatprep.subr.mxu0 0.0
      %2982 = vmatpush1.msra.mxu0 0.0
      %2983 = vmatprep.subr.mxu0 0.0
      %2984 = vmatpush1.msra.mxu0 0.0
      %2985 = vmatprep.subr.mxu0 0.0
      %2986 = vmatpush1.msra.mxu0 0.0
      %2987 = vmatprep.subr.mxu0 0.0
      %2988 = vmatpush1.msra.mxu0 0.0
      %2989 = vmatprep.subr.mxu0 0.0
      %2990 = vmatpush1.msra.mxu0 0.0
      %2991 = vmatprep.subr.mxu0 0.0
      %2992 = vmatpush1.msra.mxu0 0.0
      %2993 = vmatprep.subr.mxu0 0.0
      %2994 = vmatpush1.msra.mxu0 0.0
      %2995 = vmatprep.subr.mxu0 0.0
      %2996 = vmatpush1.msra.mxu0 0.0
      %2997 = vmatprep.subr.mxu0 0.0
      %2998 = vmatpush1.msra.mxu0 0.0
      %2999 = vmatprep.subr.mxu0 0.0
      %3000 = vmatpush1.msra.mxu0 0.0
      %3001 = vmatprep.subr.mxu0 0.0
      %3002 = vmatpush1.msra.mxu0 0.0
      %3003 = vmatprep.subr.mxu0 0.0
      %3004 = vmatpush1.msra.mxu0 0.0
      %3005 = vmatprep.subr.mxu0 0.0
      %3006 = vmatpush1.msra.mxu0 0.0
      %3007 = vmatprep.subr.mxu0 0.0
      %3008 = vmatpush1.msra.mxu0 0.0
      %3009 = vmatprep.subr.mxu0 0.0
      %3010 = vmatpush1.msra.mxu0 0.0
      %3011 = vmatprep.subr.mxu0 0.0
      %3012 = vmatpush1.msra.mxu0 0.0
      %3013 = vmatprep.subr.mxu0 0.0
      %3014 = vmatpush1.msra.mxu0 0.0
      %3015 = vmatprep.subr.mxu0 0.0
      %3016 = vmatpush1.msra.mxu0 0.0
      %3017 = vmatprep.subr.mxu0 0.0
      %3018 = vmatpush1.msra.mxu0 0.0
      %3019 = vmatprep.subr.mxu0 0.0
      %3020 = vmatpush1.msra.mxu0 0.0
      %3021 = vmatprep.subr.mxu0 0.0
      %3022 = vmatpush1.msra.mxu0 0.0
      %3023 = vmatprep.subr.mxu0 0.0
      %3024 = vmatpush1.msra.mxu0 0.0
      %3025 = vmatprep.subr.mxu0 0.0
      %3026 = vmatpush1.msra.mxu0 0.0
      %3027 = vmatprep.subr.mxu0 0.0
      %3028 = vmatpush1.msra.mxu0 0.0
      %3029 = vmatprep.subr.mxu0 0.0
      %3030 = vmatpush1.msra.mxu0 0.0
      %3031 = vmatprep.subr.mxu0 0.0
      %3032 = vmatpush1.msra.mxu0 0.0
      %3033 = vmatprep.subr.mxu0 0.0
      %3034 = vmatpush1.msra.mxu0 0.0
      %3035 = vmatprep.subr.mxu0 0.0
      %3036 = vmatpush1.msra.mxu0 0.0
      %3037 = vmatprep.mubr.f32.mxu0 0.0
      %3038 = vmatmul.mubr.f32.gmra.mrb[0].mxu0 %v2782
      %v3039 = vpop.f32.mrb[0].mxu0
      %v3040 = vadd.f32 %v2779, %v3039
      %v3041 = vpop.f32.mrb[0].mxu0
      %3042 = vmatprep.mubr.f32.mxu0 0.0
      %3043 = vmatmul.mubr.f32.gmra.mrb[0].mxu0 %v2785
      %v3044 = vpop.f32.mrb[0].mxu0
      %v3045 = vadd.f32 %v2779, %v3044
      %v3046 = vpop.f32.mrb[0].mxu0
      %3047 = vmatprep.mubr.f32.mxu0 0.0
      %3048 = vmatmul.mubr.f32.gmra.mrb[0].mxu0 %v2788
      %v3049 = vpop.f32.mrb[0].mxu0
      %v3050 = vadd.f32 %v2779, %v3049
      %v3051 = vpop.f32.mrb[0].mxu0
      %3052 = vmatprep.mubr.f32.mxu0 0.0
      %3053 = vmatmul.mubr.f32.gmra.mrb[0].mxu0 %v2791
      %v3054 = vpop.f32.mrb[0].mxu0
      %v3055 = vadd.f32 %v2779, %v3054
      %v3056 = vpop.f32.mrb[0].mxu0
      %3057 = vmatprep.mubr.f32.mxu0 0.0
      %3058 = vmatmul.mubr.f32.gmra.mrb[0].mxu0 %v2794
      %v3059 = vpop.f32.mrb[0].mxu0
      %v3060 = vadd.f32 %v2779, %v3059
      %v3061 = vpop.f32.mrb[0].mxu0
      %3062 = vmatprep.mubr.f32.mxu0 0.0
      %3063 = vmatmul.mubr.f32.gmra.mrb[0].mxu0 %v2797
      %v3064 = vpop.f32.mrb[0].mxu0
      %v3065 = vadd.f32 %v2779, %v3064
      %v3066 = vpop.f32.mrb[0].mxu0
      %3067 = vmatprep.mubr.f32.mxu0 0.0
      %3068 = vmatmul.mubr.f32.gmra.mrb[0].mxu0 %v2800
      %v3069 = vpop.f32.mrb[0].mxu0
      %v3070 = vadd.f32 %v2779, %v3069
      %v3071 = vpop.f32.mrb[0].mxu0
      %3072 = vmatprep.mubr.f32.mxu0 0.0
      %3073 = vmatmul.mubr.f32.gmra.mrb[0].mxu0 %v2803
      %v3074 = vpop.f32.mrb[0].mxu0
      %v3075 = vadd.f32 %v2779, %v3074
      %v3076 = vpop.f32.mrb[0].mxu0
      %3077 = vmatprep.mubr.f32.mxu0 0.0
      %3078 = vmatmul.mubr.f32.gmra.mrb[0].mxu0 %v2806
      %v3079 = vpop.f32.mrb[0].mxu0
      %v3080 = vadd.f32 %v2779, %v3079
      %v3081 = vpop.f32.mrb[0].mxu0
      %3082 = vmatprep.mubr.f32.mxu0 0.0
      %3083 = vmatmul.mubr.f32.gmra.mrb[0].mxu0 %v2809
      %v3084 = vpop.f32.mrb[0].mxu0
      %v3085 = vadd.f32 %v2779, %v3084
      %v3086 = vpop.f32.mrb[0].mxu0
      %3087 = vmatprep.mubr.f32.mxu0 0.0
      %3088 = vmatmul.mubr.f32.gmra.mrb[0].mxu0 %v2812
      %v3089 = vpop.f32.mrb[0].mxu0
      %v3090 = vadd.f32 %v2779, %v3089
      %v3091 = vpop.f32.mrb[0].mxu0
      %3092 = vmatprep.mubr.f32.mxu0 0.0
      %3093 = vmatmul.mubr.f32.gmra.mrb[0].mxu0 %v2815
      %v3094 = vpop.f32.mrb[0].mxu0
      %v3095 = vadd.f32 %v2779, %v3094
      %v3096 = vpop.f32.mrb[0].mxu0
      %3097 = vmatprep.mubr.f32.mxu0 0.0
      %3098 = vmatmul.mubr.f32.gmra.mrb[0].mxu0 %v2818
      %v3099 = vpop.f32.mrb[0].mxu0
      %v3100 = vadd.f32 %v2779, %v3099
      %v3101 = vpop.f32.mrb[0].mxu0
      %3102 = vmatprep.mubr.f32.mxu0 0.0
      %3103 = vmatmul.mubr.f32.gmra.mrb[0].mxu0 %v2821
      %v3104 = vpop.f32.mrb[0].mxu0
      %v3105 = vadd.f32 %v2779, %v3104
      %v3106 = vpop.f32.mrb[0].mxu0
      %3107 = vmatprep.mubr.f32.mxu0 0.0
      %3108 = vmatmul.mubr.f32.gmra.mrb[0].mxu0 %v2824
      %v3109 = vpop.f32.mrb[0].mxu0
      %v3110 = vadd.f32 %v2779, %v3109
      %v3111 = vpop.f32.mrb[0].mxu0
      %3112 = vmatprep.mubr.f32.mxu0 0.0
      %3113 = vmatmul.mubr.f32.gmra.mrb[0].mxu0 %v2827
      %v3114 = vpop.f32.mrb[0].mxu0
      %v3115 = vadd.f32 %v2779, %v3114
      %v3116 = vpop.f32.mrb[0].mxu0
      %3117 = vmatprep.mubr.f32.mxu0 0.0
      %3118 = vmatmul.mubr.f32.gmra.mrb[0].mxu0 %v2830
      %v3119 = vpop.f32.mrb[0].mxu0
      %v3120 = vadd.f32 %v2779, %v3119
      %v3121 = vpop.f32.mrb[0].mxu0
      %3122 = vmatprep.mubr.f32.mxu0 0.0
      %3123 = vmatmul.mubr.f32.gmra.mrb[0].mxu0 %v2833
      %v3124 = vpop.f32.mrb[0].mxu0
      %v3125 = vadd.f32 %v2779, %v3124
      %v3126 = vpop.f32.mrb[0].mxu0
      %3127 = vmatprep.mubr.f32.mxu0 0.0
      %3128 = vmatmul.mubr.f32.gmra.mrb[0].mxu0 %v2836
      %v3129 = vpop.f32.mrb[0].mxu0
      %v3130 = vadd.f32 %v2779, %v3129
      %v3131 = vpop.f32.mrb[0].mxu0
      %3132 = vmatprep.mubr.f32.mxu0 0.0
      %3133 = vmatmul.mubr.f32.gmra.mrb[0].mxu0 %v2839
      %v3134 = vpop.f32.mrb[0].mxu0
      %v3135 = vadd.f32 %v2779, %v3134
      %v3136 = vpop.f32.mrb[0].mxu0
      %3137 = vmatprep.mubr.f32.mxu0 0.0
      %3138 = vmatmul.mubr.f32.gmra.mrb[0].mxu0 %v2842
      %v3139 = vpop.f32.mrb[0].mxu0
      %v3140 = vadd.f32 %v2779, %v3139
      %v3141 = vpop.f32.mrb[0].mxu0
      %3142 = vmatprep.mubr.f32.mxu0 0.0
      %3143 = vmatmul.mubr.f32.gmra.mrb[0].mxu0 %v2845
      %v3144 = vpop.f32.mrb[0].mxu0
      %v3145 = vadd.f32 %v2779, %v3144
      %v3146 = vpop.f32.mrb[0].mxu0
      %3147 = vmatprep.mubr.f32.mxu0 0.0
      %3148 = vmatmul.mubr.f32.gmra.mrb[0].mxu0 %v2848
      %v3149 = vpop.f32.mrb[0].mxu0
      %v3150 = vadd.f32 %v2779, %v3149
      %v3151 = vpop.f32.mrb[0].mxu0
      %3152 = vmatprep.mubr.f32.mxu0 0.0
      %3153 = vmatmul.mubr.f32.gmra.mrb[0].mxu0 %v2851
      %v3154 = vpop.f32.mrb[0].mxu0
      %v3155 = vadd.f32 %v2779, %v3154
      %v3156 = vpop.f32.mrb[0].mxu0
      %3157 = vmatprep.mubr.f32.mxu0 0.0
      %3158 = vmatmul.mubr.f32.gmra.mrb[0].mxu0 %v2854
      %v3159 = vpop.f32.mrb[0].mxu0
      %v3160 = vadd.f32 %v2779, %v3159
      %v3161 = vpop.f32.mrb[0].mxu0
      %3162 = vmatprep.mubr.f32.mxu0 0.0
      %3163 = vmatmul.mubr.f32.gmra.mrb[0].mxu0 %v2857
      %v3164 = vpop.f32.mrb[0].mxu0
      %v3165 = vadd.f32 %v2779, %v3164
      %v3166 = vpop.f32.mrb[0].mxu0
      %3167 = vmatprep.mubr.f32.mxu0 0.0
      %3168 = vmatmul.mubr.f32.gmra.mrb[0].mxu0 %v2860
      %v3169 = vpop.f32.mrb[0].mxu0
      %v3170 = vadd.f32 %v2779, %v3169
      %v3171 = vpop.f32.mrb[0].mxu0
      %3172 = vmatprep.mubr.f32.mxu0 0.0
      %3173 = vmatmul.mubr.f32.gmra.mrb[0].mxu0 %v2863
      %v3174 = vpop.f32.mrb[0].mxu0
      %v3175 = vadd.f32 %v2779, %v3174
      %v3176 = vpop.f32.mrb[0].mxu0
      %3177 = vmatprep.mubr.f32.mxu0 0.0
      %3178 = vmatmul.mubr.f32.gmra.mrb[0].mxu0 %v2866
      %v3179 = vpop.f32.mrb[0].mxu0
      %v3180 = vadd.f32 %v2779, %v3179
      %v3181 = vpop.f32.mrb[0].mxu0
      %3182 = vmatprep.mubr.f32.mxu0 0.0
      %3183 = vmatmul.mubr.f32.gmra.mrb[0].mxu0 %v2869
      %v3184 = vpop.f32.mrb[0].mxu0
      %v3185 = vadd.f32 %v2779, %v3184
      %v3186 = vpop.f32.mrb[0].mxu0
      %3187 = vmatprep.mubr.f32.mxu0 0.0
      %3188 = vmatmul.mubr.f32.gmra.mrb[0].mxu0 %v2872
      %v3189 = vpop.f32.mrb[0].mxu0
      %v3190 = vadd.f32 %v2779, %v3189
      %v3191 = vpop.f32.mrb[0].mxu0
      %3192 = vmatprep.mubr.f32.mxu0 0.0
      %3193 = vmatmul.mubr.f32.gmra.mrb[0].mxu0 %v2875
      %v3194 = vpop.f32.mrb[0].mxu0
      %v3195 = vadd.f32 %v2779, %v3194
      %v3196 = vpop.f32.mrb[0].mxu0
      %3197 = vmatprep.mubr.f32.mxu0 0.0
      %3198 = vmatmul.mubr.f32.gmra.mrb[0].mxu0 %v2878
      %v3199 = vpop.f32.mrb[0].mxu0
      %v3200 = vadd.f32 %v2779, %v3199
      %v3201 = vpop.f32.mrb[0].mxu0
      %3202 = vmatprep.mubr.f32.mxu0 0.0
      %3203 = vmatmul.mubr.f32.gmra.mrb[0].mxu0 %v2881
      %v3204 = vpop.f32.mrb[0].mxu0
      %v3205 = vadd.f32 %v2779, %v3204
      %v3206 = vpop.f32.mrb[0].mxu0
      %3207 = vmatprep.mubr.f32.mxu0 0.0
      %3208 = vmatmul.mubr.f32.gmra.mrb[0].mxu0 %v2884
      %v3209 = vpop.f32.mrb[0].mxu0
      %v3210 = vadd.f32 %v2779, %v3209
      %v3211 = vpop.f32.mrb[0].mxu0
      %3212 = vmatprep.mubr.f32.mxu0 0.0
      %3213 = vmatmul.mubr.f32.gmra.mrb[0].mxu0 %v2887
      %v3214 = vpop.f32.mrb[0].mxu0
      %v3215 = vadd.f32 %v2779, %v3214
      %v3216 = vpop.f32.mrb[0].mxu0
      %3217 = vmatprep.mubr.f32.mxu0 0.0
      %3218 = vmatmul.mubr.f32.gmra.mrb[0].mxu0 %v2890
      %v3219 = vpop.f32.mrb[0].mxu0
      %v3220 = vadd.f32 %v2779, %v3219
      %v3221 = vpop.f32.mrb[0].mxu0
      %3222 = vmatprep.mubr.f32.mxu0 0.0
      %3223 = vmatmul.mubr.f32.gmra.mrb[0].mxu0 %v2893
      %v3224 = vpop.f32.mrb[0].mxu0
      %v3225 = vadd.f32 %v2779, %v3224
      %v3226 = vpop.f32.mrb[0].mxu0
      %3227 = vmatprep.mubr.f32.mxu0 0.0
      %3228 = vmatmul.mubr.f32.gmra.mrb[0].mxu0 %v2896
      %v3229 = vpop.f32.mrb[0].mxu0
      %v3230 = vadd.f32 %v2779, %v3229
      %v3231 = vpop.f32.mrb[0].mxu0
      %3232 = vmatprep.mubr.f32.mxu0 0.0
      %3233 = vmatmul.mubr.f32.gmra.mrb[0].mxu0 %v2899
      %v3234 = vpop.f32.mrb[0].mxu0
      %v3235 = vadd.f32 %v2779, %v3234
      %v3236 = vpop.f32.mrb[0].mxu0
      %3237 = vmatprep.mubr.f32.mxu0 0.0
      %3238 = vmatmul.mubr.f32.gmra.mrb[0].mxu0 %v2902
      %v3239 = vpop.f32.mrb[0].mxu0
      %v3240 = vadd.f32 %v2779, %v3239
      %v3241 = vpop.f32.mrb[0].mxu0
      %3242 = vmatprep.mubr.f32.mxu0 0.0
      %3243 = vmatmul.mubr.f32.gmra.mrb[0].mxu0 %v2905
      %v3244 = vpop.f32.mrb[0].mxu0
      %v3245 = vadd.f32 %v2779, %v3244
      %v3246 = vpop.f32.mrb[0].mxu0
      %3247 = vmatprep.mubr.f32.mxu0 0.0
      %3248 = vmatmul.mubr.f32.gmra.mrb[0].mxu0 %v2908
      %v3249 = vpop.f32.mrb[0].mxu0
      %v3250 = vadd.f32 %v2779, %v3249
      %v3251 = vpop.f32.mrb[0].mxu0
      %3252 = vmatprep.mubr.f32.mxu0 0.0
      %3253 = vmatmul.mubr.f32.gmra.mrb[0].mxu0 %v2911
      %v3254 = vpop.f32.mrb[0].mxu0
      %v3255 = vadd.f32 %v2779, %v3254
      %v3256 = vpop.f32.mrb[0].mxu0
      %3257 = vmatprep.mubr.f32.mxu0 0.0
      %3258 = vmatmul.mubr.f32.gmra.mrb[0].mxu0 %v2914
      %v3259 = vpop.f32.mrb[0].mxu0
      %v3260 = vadd.f32 %v2779, %v3259
      %v3261 = vpop.f32.mrb[0].mxu0
      %3262 = vmatprep.mubr.f32.mxu0 0.0
      %3263 = vmatmul.mubr.f32.gmra.mrb[0].mxu0 %v2917
      %v3264 = vpop.f32.mrb[0].mxu0
      %v3265 = vadd.f32 %v2779, %v3264
      %v3266 = vpop.f32.mrb[0].mxu0
      %3267 = vmatprep.mubr.f32.mxu0 0.0
      %3268 = vmatmul.mubr.f32.gmra.mrb[0].mxu0 %v2920
      %v3269 = vpop.f32.mrb[0].mxu0
      %v3270 = vadd.f32 %v2779, %v3269
      %v3271 = vpop.f32.mrb[0].mxu0
      %3272 = vmatprep.mubr.f32.mxu0 0.0
      %3273 = vmatmul.mubr.f32.gmra.mrb[0].mxu0 %v2923
      %v3274 = vpop.f32.mrb[0].mxu0
      %v3275 = vadd.f32 %v2779, %v3274
      %v3276 = vpop.f32.mrb[0].mxu0
      %3277 = vmatprep.mubr.f32.mxu0 0.0
      %3278 = vmatmul.mubr.f32.gmra.mrb[0].mxu0 %v2926
      %v3279 = vpop.f32.mrb[0].mxu0
      %v3280 = vadd.f32 %v2779, %v3279
      %v3281 = vpop.f32.mrb[0].mxu0
      %3282 = vmatprep.mubr.f32.mxu0 0.0
      %3283 = vmatmul.mubr.f32.gmra.mrb[0].mxu0 %v2929
      %v3284 = vpop.f32.mrb[0].mxu0
      %v3285 = vadd.f32 %v2779, %v3284
      %v3286 = vpop.f32.mrb[0].mxu0
      %3287 = vmatprep.mubr.f32.mxu0 0.0
      %3288 = vmatmul.mubr.f32.gmra.mrb[0].mxu0 %v2932
      %v3289 = vpop.f32.mrb[0].mxu0
      %v3290 = vadd.f32 %v2779, %v3289
      %v3291 = vpop.f32.mrb[0].mxu0
      %3292 = vmatprep.mubr.f32.mxu0 0.0
      %3293 = vmatmul.mubr.f32.gmra.mrb[0].mxu0 %v2935
      %v3294 = vpop.f32.mrb[0].mxu0
      %v3295 = vadd.f32 %v2779, %v3294
      %v3296 = vpop.f32.mrb[0].mxu0
      %3297 = vmatprep.mubr.f32.mxu0 0.0
      %3298 = vmatmul.mubr.f32.gmra.mrb[0].mxu0 %v2938
      %v3299 = vpop.f32.mrb[0].mxu0
      %v3300 = vadd.f32 %v2779, %v3299
      %v3301 = vpop.f32.mrb[0].mxu0
      %3302 = vmatprep.mubr.f32.mxu0 0.0
      %3303 = vmatmul.mubr.f32.gmra.mrb[0].mxu0 %v2941
      %v3304 = vpop.f32.mrb[0].mxu0
      %v3305 = vadd.f32 %v2779, %v3304
      %v3306 = vpop.f32.mrb[0].mxu0
      %3307 = vmatprep.mubr.f32.mxu0 0.0
      %3308 = vmatmul.mubr.f32.gmra.mrb[0].mxu0 %v2944
      %v3309 = vpop.f32.mrb[0].mxu0
      %v3310 = vadd.f32 %v2779, %v3309
      %v3311 = vpop.f32.mrb[0].mxu0
      %3312 = vmatprep.mubr.f32.mxu0 0.0
      %3313 = vmatmul.mubr.f32.gmra.mrb[0].mxu0 %v2947
      %v3314 = vpop.f32.mrb[0].mxu0
      %v3315 = vadd.f32 %v2779, %v3314
      %v3316 = vpop.f32.mrb[0].mxu0
      %3317 = vmatprep.mubr.f32.mxu0 0.0
      %3318 = vmatmul.mubr.f32.gmra.mrb[0].mxu0 %v2950
      %v3319 = vpop.f32.mrb[0].mxu0
      %v3320 = vadd.f32 %v2779, %v3319
      %v3321 = vpop.f32.mrb[0].mxu0
      %3322 = vmatprep.mubr.f32.mxu0 0.0
      %3323 = vmatmul.mubr.f32.gmra.mrb[0].mxu0 %v2953
      %v3324 = vpop.f32.mrb[0].mxu0
      %v3325 = vadd.f32 %v2779, %v3324
      %v3326 = vpop.f32.mrb[0].mxu0
      %3327 = vmatprep.mubr.f32.mxu0 0.0
      %3328 = vmatmul.mubr.f32.gmra.mrb[0].mxu0 %v2956
      %v3329 = vpop.f32.mrb[0].mxu0
      %v3330 = vadd.f32 %v2779, %v3329
      %v3331 = vpop.f32.mrb[0].mxu0
      %3332 = vmatprep.mubr.f32.mxu0 0.0
      %3333 = vmatmul.mubr.f32.gmra.mrb[0].mxu0 %v2959
      %v3334 = vpop.f32.mrb[0].mxu0
      %v3335 = vadd.f32 %v2779, %v3334
      %v3336 = vpop.f32.mrb[0].mxu0
      %3337 = vmatprep.mubr.f32.mxu0 0.0
      %3338 = vmatmul.mubr.f32.gmra.mrb[0].mxu0 %v2962
      %v3339 = vpop.f32.mrb[0].mxu0
      %v3340 = vadd.f32 %v2779, %v3339
      %v3341 = vpop.f32.mrb[0].mxu0
      %3342 = vmatprep.mubr.f32.mxu0 0.0
      %3343 = vmatmul.mubr.f32.gmra.mrb[0].mxu0 %v2965
      %v3344 = vpop.f32.mrb[0].mxu0
      %v3345 = vadd.f32 %v2779, %v3344
      %v3346 = vpop.f32.mrb[0].mxu0
      %3347 = vmatprep.mubr.f32.mxu0 0.0
      %3348 = vmatmul.mubr.f32.gmra.mrb[0].mxu0 %v2968
      %v3349 = vpop.f32.mrb[0].mxu0
      %v3350 = vadd.f32 %v2779, %v3349
      %v3351 = vpop.f32.mrb[0].mxu0
      %3352 = vmatprep.mubr.f32.mxu0 0.0
      %3353 = vmatmul.mubr.f32.gmra.mrb[0].mxu0 %v2971
      %v3354 = vpop.f32.mrb[0].mxu0
      %v3355 = vadd.f32 %v2779, %v3354
      %v3356 = vpop.f32.mrb[0].mxu0
      %3357 = vdwg.mxu0
      %v3358 = vxor.u32 %v3040, 2147483648
      %v3359 = vxor.u32 %v3045, 2147483648
      %v3360 = vxor.u32 %v3050, 2147483648
      %v3361 = vxor.u32 %v3055, 2147483648
      %v3362 = vxor.u32 %v3060, 2147483648
      %v3363 = vxor.u32 %v3065, 2147483648
      %v3364 = vxor.u32 %v3070, 2147483648
      %v3365 = vxor.u32 %v3075, 2147483648
      %v3366 = vxor.u32 %v3080, 2147483648
      %v3367 = vxor.u32 %v3085, 2147483648
      %v3368 = vxor.u32 %v3090, 2147483648
      %v3369 = vxor.u32 %v3095, 2147483648
      %v3370 = vxor.u32 %v3100, 2147483648
      %v3371 = vxor.u32 %v3105, 2147483648
      %v3372 = vxor.u32 %v3110, 2147483648
      %v3373 = vxor.u32 %v3115, 2147483648
      %v3374 = vxor.u32 %v3120, 2147483648
      %v3375 = vxor.u32 %v3125, 2147483648
      %v3376 = vxor.u32 %v3130, 2147483648
      %v3377 = vxor.u32 %v3135, 2147483648
      %v3378 = vxor.u32 %v3140, 2147483648
      %v3379 = vxor.u32 %v3145, 2147483648
      %v3380 = vxor.u32 %v3150, 2147483648
      %v3381 = vxor.u32 %v3155, 2147483648
      %v3382 = vxor.u32 %v3160, 2147483648
      %v3383 = vxor.u32 %v3165, 2147483648
      %v3384 = vxor.u32 %v3170, 2147483648
      %v3385 = vxor.u32 %v3175, 2147483648
      %v3386 = vxor.u32 %v3180, 2147483648
      %v3387 = vxor.u32 %v3185, 2147483648
      %v3388 = vxor.u32 %v3190, 2147483648
      %v3389 = vxor.u32 %v3195, 2147483648
      %v3390 = vxor.u32 %v3200, 2147483648
      %v3391 = vxor.u32 %v3205, 2147483648
      %v3392 = vxor.u32 %v3210, 2147483648
      %v3393 = vxor.u32 %v3215, 2147483648
      %v3394 = vxor.u32 %v3220, 2147483648
      %v3395 = vxor.u32 %v3225, 2147483648
      %v3396 = vxor.u32 %v3230, 2147483648
      %v3397 = vxor.u32 %v3235, 2147483648
      %v3398 = vxor.u32 %v3240, 2147483648
      %v3399 = vxor.u32 %v3245, 2147483648
      %v3400 = vxor.u32 %v3250, 2147483648
      %v3401 = vxor.u32 %v3255, 2147483648
      %v3402 = vxor.u32 %v3260, 2147483648
      %v3403 = vxor.u32 %v3265, 2147483648
      %v3404 = vxor.u32 %v3270, 2147483648
      %v3405 = vxor.u32 %v3275, 2147483648
      %v3406 = vxor.u32 %v3280, 2147483648
      %v3407 = vxor.u32 %v3285, 2147483648
      %v3408 = vxor.u32 %v3290, 2147483648
      %v3409 = vxor.u32 %v3295, 2147483648
      %v3410 = vxor.u32 %v3300, 2147483648
      %v3411 = vxor.u32 %v3305, 2147483648
      %v3412 = vxor.u32 %v3310, 2147483648
      %v3413 = vxor.u32 %v3315, 2147483648
      %v3414 = vxor.u32 %v3320, 2147483648
      %v3415 = vxor.u32 %v3325, 2147483648
      %v3416 = vxor.u32 %v3330, 2147483648
      %v3417 = vxor.u32 %v3335, 2147483648
      %v3418 = vxor.u32 %v3340, 2147483648
      %v3419 = vxor.u32 %v3345, 2147483648
      %v3420 = vxor.u32 %v3350, 2147483648
      %v3421 = vxor.u32 %v3355, 2147483648
      %v3422 = vmul.f32 %v3358, 1.442695
      %v3423 = vpow.pop %v3422
      %v3424 = vmul.f32 %v3359, 1.442695
      %v3425 = vpow.pop %v3424
      %v3426 = vmul.f32 %v3360, 1.442695
      %v3427 = vpow.pop %v3426
      %v3428 = vmul.f32 %v3361, 1.442695
      %v3429 = vpow.pop %v3428
      %v3430 = vmul.f32 %v3362, 1.442695
      %v3431 = vpow.pop %v3430
      %v3432 = vmul.f32 %v3363, 1.442695
      %v3433 = vpow.pop %v3432
      %v3434 = vmul.f32 %v3364, 1.442695
      %v3435 = vpow.pop %v3434
      %v3436 = vmul.f32 %v3365, 1.442695
      %v3437 = vpow.pop %v3436
      %v3438 = vmul.f32 %v3366, 1.442695
      %v3439 = vpow.pop %v3438
      %v3440 = vmul.f32 %v3367, 1.442695
      %v3441 = vpow.pop %v3440
      %v3442 = vmul.f32 %v3368, 1.442695
      %v3443 = vpow.pop %v3442
      %v3444 = vmul.f32 %v3369, 1.442695
      %v3445 = vpow.pop %v3444
      %v3446 = vmul.f32 %v3370, 1.442695
      %v3447 = vpow.pop %v3446
      %v3448 = vmul.f32 %v3371, 1.442695
      %v3449 = vpow.pop %v3448
      %v3450 = vmul.f32 %v3372, 1.442695
      %v3451 = vpow.pop %v3450
      %v3452 = vmul.f32 %v3373, 1.442695
      %v3453 = vpow.pop %v3452
      %v3454 = vmul.f32 %v3374, 1.442695
      %v3455 = vpow.pop %v3454
      %v3456 = vmul.f32 %v3375, 1.442695
      %v3457 = vpow.pop %v3456
      %v3458 = vmul.f32 %v3376, 1.442695
      %v3459 = vpow.pop %v3458
      %v3460 = vmul.f32 %v3377, 1.442695
      %v3461 = vpow.pop %v3460
      %v3462 = vmul.f32 %v3378, 1.442695
      %v3463 = vpow.pop %v3462
      %v3464 = vmul.f32 %v3379, 1.442695
      %v3465 = vpow.pop %v3464
      %v3466 = vmul.f32 %v3380, 1.442695
      %v3467 = vpow.pop %v3466
      %v3468 = vmul.f32 %v3381, 1.442695
      %v3469 = vpow.pop %v3468
      %v3470 = vmul.f32 %v3382, 1.442695
      %v3471 = vpow.pop %v3470
      %v3472 = vmul.f32 %v3383, 1.442695
      %v3473 = vpow.pop %v3472
      %v3474 = vmul.f32 %v3384, 1.442695
      %v3475 = vpow.pop %v3474
      %v3476 = vmul.f32 %v3385, 1.442695
      %v3477 = vpow.pop %v3476
      %v3478 = vmul.f32 %v3386, 1.442695
      %v3479 = vpow.pop %v3478
      %v3480 = vmul.f32 %v3387, 1.442695
      %v3481 = vpow.pop %v3480
      %v3482 = vmul.f32 %v3388, 1.442695
      %v3483 = vpow.pop %v3482
      %v3484 = vmul.f32 %v3389, 1.442695
      %v3485 = vpow.pop %v3484
      %v3486 = vmul.f32 %v3390, 1.442695
      %v3487 = vpow.pop %v3486
      %v3488 = vmul.f32 %v3391, 1.442695
      %v3489 = vpow.pop %v3488
      %v3490 = vmul.f32 %v3392, 1.442695
      %v3491 = vpow.pop %v3490
      %v3492 = vmul.f32 %v3393, 1.442695
      %v3493 = vpow.pop %v3492
      %v3494 = vmul.f32 %v3394, 1.442695
      %v3495 = vpow.pop %v3494
      %v3496 = vmul.f32 %v3395, 1.442695
      %v3497 = vpow.pop %v3496
      %v3498 = vmul.f32 %v3396, 1.442695
      %v3499 = vpow.pop %v3498
      %v3500 = vmul.f32 %v3397, 1.442695
      %v3501 = vpow.pop %v3500
      %v3502 = vmul.f32 %v3398, 1.442695
      %v3503 = vpow.pop %v3502
      %v3504 = vmul.f32 %v3399, 1.442695
      %v3505 = vpow.pop %v3504
      %v3506 = vmul.f32 %v3400, 1.442695
      %v3507 = vpow.pop %v3506
      %v3508 = vmul.f32 %v3401, 1.442695
      %v3509 = vpow.pop %v3508
      %v3510 = vmul.f32 %v3402, 1.442695
      %v3511 = vpow.pop %v3510
      %v3512 = vmul.f32 %v3403, 1.442695
      %v3513 = vpow.pop %v3512
      %v3514 = vmul.f32 %v3404, 1.442695
      %v3515 = vpow.pop %v3514
      %v3516 = vmul.f32 %v3405, 1.442695
      %v3517 = vpow.pop %v3516
      %v3518 = vmul.f32 %v3406, 1.442695
      %v3519 = vpow.pop %v3518
      %v3520 = vmul.f32 %v3407, 1.442695
      %v3521 = vpow.pop %v3520
      %v3522 = vmul.f32 %v3408, 1.442695
      %v3523 = vpow.pop %v3522
      %v3524 = vmul.f32 %v3409, 1.442695
      %v3525 = vpow.pop %v3524
      %v3526 = vmul.f32 %v3410, 1.442695
      %v3527 = vpow.pop %v3526
      %v3528 = vmul.f32 %v3411, 1.442695
      %v3529 = vpow.pop %v3528
      %v3530 = vmul.f32 %v3412, 1.442695
      %v3531 = vpow.pop %v3530
      %v3532 = vmul.f32 %v3413, 1.442695
      %v3533 = vpow.pop %v3532
      %v3534 = vmul.f32 %v3414, 1.442695
      %v3535 = vpow.pop %v3534
      %v3536 = vmul.f32 %v3415, 1.442695
      %v3537 = vpow.pop %v3536
      %v3538 = vmul.f32 %v3416, 1.442695
      %v3539 = vpow.pop %v3538
      %v3540 = vmul.f32 %v3417, 1.442695
      %v3541 = vpow.pop %v3540
      %v3542 = vmul.f32 %v3418, 1.442695
      %v3543 = vpow.pop %v3542
      %v3544 = vmul.f32 %v3419, 1.442695
      %v3545 = vpow.pop %v3544
      %v3546 = vmul.f32 %v3420, 1.442695
      %v3547 = vpow.pop %v3546
      %v3548 = vmul.f32 %v3421, 1.442695
      %v3549 = vpow.pop %v3548
      %v3550 = vadd.f32 %v3423, 1.0
      %v3551 = vadd.f32 %v3425, 1.0
      %v3552 = vadd.f32 %v3427, 1.0
      %v3553 = vadd.f32 %v3429, 1.0
      %v3554 = vadd.f32 %v3431, 1.0
      %v3555 = vadd.f32 %v3433, 1.0
      %v3556 = vadd.f32 %v3435, 1.0
      %v3557 = vadd.f32 %v3437, 1.0
      %v3558 = vadd.f32 %v3439, 1.0
      %v3559 = vadd.f32 %v3441, 1.0
      %v3560 = vadd.f32 %v3443, 1.0
      %v3561 = vadd.f32 %v3445, 1.0
      %v3562 = vadd.f32 %v3447, 1.0
      %v3563 = vadd.f32 %v3449, 1.0
      %v3564 = vadd.f32 %v3451, 1.0
      %v3565 = vadd.f32 %v3453, 1.0
      %v3566 = vadd.f32 %v3455, 1.0
      %v3567 = vadd.f32 %v3457, 1.0
      %v3568 = vadd.f32 %v3459, 1.0
      %v3569 = vadd.f32 %v3461, 1.0
      %v3570 = vadd.f32 %v3463, 1.0
      %v3571 = vadd.f32 %v3465, 1.0
      %v3572 = vadd.f32 %v3467, 1.0
      %v3573 = vadd.f32 %v3469, 1.0
      %v3574 = vadd.f32 %v3471, 1.0
      %v3575 = vadd.f32 %v3473, 1.0
      %v3576 = vadd.f32 %v3475, 1.0
      %v3577 = vadd.f32 %v3477, 1.0
      %v3578 = vadd.f32 %v3479, 1.0
      %v3579 = vadd.f32 %v3481, 1.0
      %v3580 = vadd.f32 %v3483, 1.0
      %v3581 = vadd.f32 %v3485, 1.0
      %v3582 = vadd.f32 %v3487, 1.0
      %v3583 = vadd.f32 %v3489, 1.0
      %v3584 = vadd.f32 %v3491, 1.0
      %v3585 = vadd.f32 %v3493, 1.0
      %v3586 = vadd.f32 %v3495, 1.0
      %v3587 = vadd.f32 %v3497, 1.0
      %v3588 = vadd.f32 %v3499, 1.0
      %v3589 = vadd.f32 %v3501, 1.0
      %v3590 = vadd.f32 %v3503, 1.0
      %v3591 = vadd.f32 %v3505, 1.0
      %v3592 = vadd.f32 %v3507, 1.0
      %v3593 = vadd.f32 %v3509, 1.0
      %v3594 = vadd.f32 %v3511, 1.0
      %v3595 = vadd.f32 %v3513, 1.0
      %v3596 = vadd.f32 %v3515, 1.0
      %v3597 = vadd.f32 %v3517, 1.0
      %v3598 = vadd.f32 %v3519, 1.0
      %v3599 = vadd.f32 %v3521, 1.0
      %v3600 = vadd.f32 %v3523, 1.0
      %v3601 = vadd.f32 %v3525, 1.0
      %v3602 = vadd.f32 %v3527, 1.0
      %v3603 = vadd.f32 %v3529, 1.0
      %v3604 = vadd.f32 %v3531, 1.0
      %v3605 = vadd.f32 %v3533, 1.0
      %v3606 = vadd.f32 %v3535, 1.0
      %v3607 = vadd.f32 %v3537, 1.0
      %v3608 = vadd.f32 %v3539, 1.0
      %v3609 = vadd.f32 %v3541, 1.0
      %v3610 = vadd.f32 %v3543, 1.0
      %v3611 = vadd.f32 %v3545, 1.0
      %v3612 = vadd.f32 %v3547, 1.0
      %v3613 = vadd.f32 %v3549, 1.0
      %v3614 = vrcp.pop %v3550
      %v3615 = vmul.f32 1.0, %v3614
      %v3616 = vrcp.pop %v3551
      %v3617 = vmul.f32 1.0, %v3616
      %v3618 = vrcp.pop %v3552
      %v3619 = vmul.f32 1.0, %v3618
      %v3620 = vrcp.pop %v3553
      %v3621 = vmul.f32 1.0, %v3620
      %v3622 = vrcp.pop %v3554
      %v3623 = vmul.f32 1.0, %v3622
      %v3624 = vrcp.pop %v3555
      %v3625 = vmul.f32 1.0, %v3624
      %v3626 = vrcp.pop %v3556
      %v3627 = vmul.f32 1.0, %v3626
      %v3628 = vrcp.pop %v3557
      %v3629 = vmul.f32 1.0, %v3628
      %v3630 = vrcp.pop %v3558
      %v3631 = vmul.f32 1.0, %v3630
      %v3632 = vrcp.pop %v3559
      %v3633 = vmul.f32 1.0, %v3632
      %v3634 = vrcp.pop %v3560
      %v3635 = vmul.f32 1.0, %v3634
      %v3636 = vrcp.pop %v3561
      %v3637 = vmul.f32 1.0, %v3636
      %v3638 = vrcp.pop %v3562
      %v3639 = vmul.f32 1.0, %v3638
      %v3640 = vrcp.pop %v3563
      %v3641 = vmul.f32 1.0, %v3640
      %v3642 = vrcp.pop %v3564
      %v3643 = vmul.f32 1.0, %v3642
      %v3644 = vrcp.pop %v3565
      %v3645 = vmul.f32 1.0, %v3644
      %v3646 = vrcp.pop %v3566
      %v3647 = vmul.f32 1.0, %v3646
      %v3648 = vrcp.pop %v3567
      %v3649 = vmul.f32 1.0, %v3648
      %v3650 = vrcp.pop %v3568
      %v3651 = vmul.f32 1.0, %v3650
      %v3652 = vrcp.pop %v3569
      %v3653 = vmul.f32 1.0, %v3652
      %v3654 = vrcp.pop %v3570
      %v3655 = vmul.f32 1.0, %v3654
      %v3656 = vrcp.pop %v3571
      %v3657 = vmul.f32 1.0, %v3656
      %v3658 = vrcp.pop %v3572
      %v3659 = vmul.f32 1.0, %v3658
      %v3660 = vrcp.pop %v3573
      %v3661 = vmul.f32 1.0, %v3660
      %v3662 = vrcp.pop %v3574
      %v3663 = vmul.f32 1.0, %v3662
      %v3664 = vrcp.pop %v3575
      %v3665 = vmul.f32 1.0, %v3664
      %v3666 = vrcp.pop %v3576
      %v3667 = vmul.f32 1.0, %v3666
      %v3668 = vrcp.pop %v3577
      %v3669 = vmul.f32 1.0, %v3668
      %v3670 = vrcp.pop %v3578
      %v3671 = vmul.f32 1.0, %v3670
      %v3672 = vrcp.pop %v3579
      %v3673 = vmul.f32 1.0, %v3672
      %v3674 = vrcp.pop %v3580
      %v3675 = vmul.f32 1.0, %v3674
      %v3676 = vrcp.pop %v3581
      %v3677 = vmul.f32 1.0, %v3676
      %v3678 = vrcp.pop %v3582
      %v3679 = vmul.f32 1.0, %v3678
      %v3680 = vrcp.pop %v3583
      %v3681 = vmul.f32 1.0, %v3680
      %v3682 = vrcp.pop %v3584
      %v3683 = vmul.f32 1.0, %v3682
      %v3684 = vrcp.pop %v3585
      %v3685 = vmul.f32 1.0, %v3684
      %v3686 = vrcp.pop %v3586
      %v3687 = vmul.f32 1.0, %v3686
      %v3688 = vrcp.pop %v3587
      %v3689 = vmul.f32 1.0, %v3688
      %v3690 = vrcp.pop %v3588
      %v3691 = vmul.f32 1.0, %v3690
      %v3692 = vrcp.pop %v3589
      %v3693 = vmul.f32 1.0, %v3692
      %v3694 = vrcp.pop %v3590
      %v3695 = vmul.f32 1.0, %v3694
      %v3696 = vrcp.pop %v3591
      %v3697 = vmul.f32 1.0, %v3696
      %v3698 = vrcp.pop %v3592
      %v3699 = vmul.f32 1.0, %v3698
      %v3700 = vrcp.pop %v3593
      %v3701 = vmul.f32 1.0, %v3700
      %v3702 = vrcp.pop %v3594
      %v3703 = vmul.f32 1.0, %v3702
      %v3704 = vrcp.pop %v3595
      %v3705 = vmul.f32 1.0, %v3704
      %v3706 = vrcp.pop %v3596
      %v3707 = vmul.f32 1.0, %v3706
      %v3708 = vrcp.pop %v3597
      %v3709 = vmul.f32 1.0, %v3708
      %v3710 = vrcp.pop %v3598
      %v3711 = vmul.f32 1.0, %v3710
      %v3712 = vrcp.pop %v3599
      %v3713 = vmul.f32 1.0, %v3712
      %v3714 = vrcp.pop %v3600
      %v3715 = vmul.f32 1.0, %v3714
      %v3716 = vrcp.pop %v3601
      %v3717 = vmul.f32 1.0, %v3716
      %v3718 = vrcp.pop %v3602
      %v3719 = vmul.f32 1.0, %v3718
      %v3720 = vrcp.pop %v3603
      %v3721 = vmul.f32 1.0, %v3720
      %v3722 = vrcp.pop %v3604
      %v3723 = vmul.f32 1.0, %v3722
      %v3724 = vrcp.pop %v3605
      %v3725 = vmul.f32 1.0, %v3724
      %v3726 = vrcp.pop %v3606
      %v3727 = vmul.f32 1.0, %v3726
      %v3728 = vrcp.pop %v3607
      %v3729 = vmul.f32 1.0, %v3728
      %v3730 = vrcp.pop %v3608
      %v3731 = vmul.f32 1.0, %v3730
      %v3732 = vrcp.pop %v3609
      %v3733 = vmul.f32 1.0, %v3732
      %v3734 = vrcp.pop %v3610
      %v3735 = vmul.f32 1.0, %v3734
      %v3736 = vrcp.pop %v3611
      %v3737 = vmul.f32 1.0, %v3736
      %v3738 = vrcp.pop %v3612
      %v3739 = vmul.f32 1.0, %v3738
      %v3740 = vrcp.pop %v3613
      %v3741 = vmul.f32 1.0, %v3740
      %3742 = vst.msk [vmem:[%s424] sm:$0xff] %vm2123, %v2708
      %3743 = vst.msk [vmem:[%s424 + $0x8] sm:$0xff] %vm2123, %v2709
      %3744 = vst.msk [vmem:[%s424 + $0x10] sm:$0xff] %vm2123, %v2710
      %3745 = vst.msk [vmem:[%s424 + $0x18] sm:$0xff] %vm2123, %v2711
      %3746 = vst.msk [vmem:[%s424 + $0x20] sm:$0xff] %vm2123, %v2712
      %3747 = vst.msk [vmem:[%s424 + $0x28] sm:$0xff] %vm2123, %v2713
      %3748 = vst.msk [vmem:[%s424 + $0x30] sm:$0xff] %vm2123, %v2714
      %3749 = vst.msk [vmem:[%s424 + $0x38] sm:$0xff] %vm2123, %v2715
      %3750 = vst.msk [vmem:[%s424 + $0x40] sm:$0xff] %vm2123, %v2716
      %3751 = vst.msk [vmem:[%s424 + $0x48] sm:$0xff] %vm2123, %v2717
      %3752 = vst.msk [vmem:[%s424 + $0x50] sm:$0xff] %vm2123, %v2718
      %3753 = vst.msk [vmem:[%s424 + $0x58] sm:$0xff] %vm2123, %v2719
      %3754 = vst.msk [vmem:[%s424 + $0x60] sm:$0xff] %vm2123, %v2720
      %3755 = vst.msk [vmem:[%s424 + $0x68] sm:$0xff] %vm2123, %v2721
      %3756 = vst.msk [vmem:[%s424 + $0x70] sm:$0xff] %vm2123, %v2722
      %3757 = vst.msk [vmem:[%s424 + $0x78] sm:$0xff] %vm2123, %v2723
      %3758 = vst.msk [vmem:[%s424 + $0x80] sm:$0xff] %vm2123, %v2724
      %3759 = vst.msk [vmem:[%s424 + $0x88] sm:$0xff] %vm2123, %v2725
      %3760 = vst.msk [vmem:[%s424 + $0x90] sm:$0xff] %vm2123, %v2726
      %3761 = vst.msk [vmem:[%s424 + $0x98] sm:$0xff] %vm2123, %v2727
      %3762 = vst.msk [vmem:[%s424 + $0xa0] sm:$0xff] %vm2123, %v2728
      %3763 = vst.msk [vmem:[%s424 + $0xa8] sm:$0xff] %vm2123, %v2729
      %3764 = vst.msk [vmem:[%s424 + $0xb0] sm:$0xff] %vm2123, %v2730
      %3765 = vst.msk [vmem:[%s424 + $0xb8] sm:$0xff] %vm2123, %v2731
      %3766 = vst.msk [vmem:[%s424 + $0xc0] sm:$0xff] %vm2123, %v2732
      %3767 = vst.msk [vmem:[%s424 + $0xc8] sm:$0xff] %vm2123, %v2733
      %3768 = vst.msk [vmem:[%s424 + $0xd0] sm:$0xff] %vm2123, %v2734
      %3769 = vst.msk [vmem:[%s424 + $0xd8] sm:$0xff] %vm2123, %v2735
      %3770 = vst.msk [vmem:[%s424 + $0xe0] sm:$0xff] %vm2123, %v2736
      %3771 = vst.msk [vmem:[%s424 + $0xe8] sm:$0xff] %vm2123, %v2737
      %3772 = vst.msk [vmem:[%s424 + $0xf0] sm:$0xff] %vm2123, %v2738
      %3773 = vst.msk [vmem:[%s424 + $0xf8] sm:$0xff] %vm2123, %v2739
      %3774 = vst.msk [vmem:[%s424 + $0x100] sm:$0xff] %vm2123, %v2740
      %3775 = vst.msk [vmem:[%s424 + $0x108] sm:$0xff] %vm2123, %v2741
      %3776 = vst.msk [vmem:[%s424 + $0x110] sm:$0xff] %vm2123, %v2742
      %3777 = vst.msk [vmem:[%s424 + $0x118] sm:$0xff] %vm2123, %v2743
      %3778 = vst.msk [vmem:[%s424 + $0x120] sm:$0xff] %vm2123, %v2744
      %3779 = vst.msk [vmem:[%s424 + $0x128] sm:$0xff] %vm2123, %v2745
      %3780 = vst.msk [vmem:[%s424 + $0x130] sm:$0xff] %vm2123, %v2746
      %3781 = vst.msk [vmem:[%s424 + $0x138] sm:$0xff] %vm2123, %v2747
      %3782 = vst.msk [vmem:[%s424 + $0x140] sm:$0xff] %vm2123, %v2748
      %3783 = vst.msk [vmem:[%s424 + $0x148] sm:$0xff] %vm2123, %v2749
      %3784 = vst.msk [vmem:[%s424 + $0x150] sm:$0xff] %vm2123, %v2750
      %3785 = vst.msk [vmem:[%s424 + $0x158] sm:$0xff] %vm2123, %v2751
      %3786 = vst.msk [vmem:[%s424 + $0x160] sm:$0xff] %vm2123, %v2752
      %3787 = vst.msk [vmem:[%s424 + $0x168] sm:$0xff] %vm2123, %v2753
      %3788 = vst.msk [vmem:[%s424 + $0x170] sm:$0xff] %vm2123, %v2754
      %3789 = vst.msk [vmem:[%s424 + $0x178] sm:$0xff] %vm2123, %v2755
      %3790 = vst.msk [vmem:[%s424 + $0x180] sm:$0xff] %vm2123, %v2756
      %3791 = vst.msk [vmem:[%s424 + $0x188] sm:$0xff] %vm2123, %v2757
      %3792 = vst.msk [vmem:[%s424 + $0x190] sm:$0xff] %vm2123, %v2758
      %3793 = vst.msk [vmem:[%s424 + $0x198] sm:$0xff] %vm2123, %v2759
      %3794 = vst.msk [vmem:[%s424 + $0x1a0] sm:$0xff] %vm2123, %v2760
      %3795 = vst.msk [vmem:[%s424 + $0x1a8] sm:$0xff] %vm2123, %v2761
      %3796 = vst.msk [vmem:[%s424 + $0x1b0] sm:$0xff] %vm2123, %v2762
      %3797 = vst.msk [vmem:[%s424 + $0x1b8] sm:$0xff] %vm2123, %v2763
      %3798 = vst.msk [vmem:[%s424 + $0x1c0] sm:$0xff] %vm2123, %v2764
      %3799 = vst.msk [vmem:[%s424 + $0x1c8] sm:$0xff] %vm2123, %v2765
      %3800 = vst.msk [vmem:[%s424 + $0x1d0] sm:$0xff] %vm2123, %v2766
      %3801 = vst.msk [vmem:[%s424 + $0x1d8] sm:$0xff] %vm2123, %v2767
      %3802 = vst.msk [vmem:[%s424 + $0x1e0] sm:$0xff] %vm2123, %v2768
      %3803 = vst.msk [vmem:[%s424 + $0x1e8] sm:$0xff] %vm2123, %v2769
      %3804 = vst.msk [vmem:[%s424 + $0x1f0] sm:$0xff] %vm2123, %v2770
      %3805 = vst.msk [vmem:[%s424 + $0x1f8] sm:$0xff] %vm2123, %v2771
      %v3806 = vld [vmem:[#allocation4] sm:$0x1]
      %v3808 = vlaneseq
      %v3809 = vshrl.u32 %v3808, 7
      %v3810 = vsub.s32 0, %v3809
      %v3811 = vrot.slane %v3806, %v3810
      %3812 = vset.pattern.permute.xlu0 0
      %3813 = vperm.xlu0 %3812, %v3811
      %v3814 = vpop.permute.xlu0 %3813
      %v3816 = vmul.f32 %v1217, %v3814
      %v3817 = vmul.f32 %v1218, %v3814
      %v3818 = vmul.f32 %v1219, %v3814
      %v3819 = vmul.f32 %v1220, %v3814
      %v3820 = vmul.f32 %v1221, %v3814
      %v3821 = vmul.f32 %v1222, %v3814
      %v3822 = vmul.f32 %v1223, %v3814
      %v3823 = vmul.f32 %v1224, %v3814
      %v3824 = vmul.f32 %v1225, %v3814
      %v3825 = vmul.f32 %v1226, %v3814
      %v3826 = vmul.f32 %v1227, %v3814
      %v3827 = vmul.f32 %v1228, %v3814
      %v3828 = vmul.f32 %v1229, %v3814
      %v3829 = vmul.f32 %v1230, %v3814
      %v3830 = vmul.f32 %v1231, %v3814
      %v3831 = vmul.f32 %v1232, %v3814
      %v3832 = vmul.f32 %v1233, %v3814
      %v3833 = vmul.f32 %v1234, %v3814
      %v3834 = vmul.f32 %v1235, %v3814
      %v3835 = vmul.f32 %v1236, %v3814
      %v3836 = vmul.f32 %v1237, %v3814
      %v3837 = vmul.f32 %v1238, %v3814
      %v3838 = vmul.f32 %v1239, %v3814
      %v3839 = vmul.f32 %v1240, %v3814
      %v3840 = vmul.f32 %v1241, %v3814
      %v3841 = vmul.f32 %v1242, %v3814
      %v3842 = vmul.f32 %v1243, %v3814
      %v3843 = vmul.f32 %v1244, %v3814
      %v3844 = vmul.f32 %v1245, %v3814
      %v3845 = vmul.f32 %v1246, %v3814
      %v3846 = vmul.f32 %v1247, %v3814
      %v3847 = vmul.f32 %v1248, %v3814
      %v3848 = vmul.f32 %v1249, %v3814
      %v3849 = vmul.f32 %v1250, %v3814
      %v3850 = vmul.f32 %v1251, %v3814
      %v3851 = vmul.f32 %v1252, %v3814
      %v3852 = vmul.f32 %v1253, %v3814
      %v3853 = vmul.f32 %v1254, %v3814
      %v3854 = vmul.f32 %v1255, %v3814
      %v3855 = vmul.f32 %v1256, %v3814
      %v3856 = vmul.f32 %v1257, %v3814
      %v3857 = vmul.f32 %v1258, %v3814
      %v3858 = vmul.f32 %v1259, %v3814
      %v3859 = vmul.f32 %v1260, %v3814
      %v3860 = vmul.f32 %v1261, %v3814
      %v3861 = vmul.f32 %v1262, %v3814
      %v3862 = vmul.f32 %v1263, %v3814
      %v3863 = vmul.f32 %v1264, %v3814
      %v3864 = vmul.f32 %v1265, %v3814
      %v3865 = vmul.f32 %v1266, %v3814
      %v3866 = vmul.f32 %v1267, %v3814
      %v3867 = vmul.f32 %v1268, %v3814
      %v3868 = vmul.f32 %v1269, %v3814
      %v3869 = vmul.f32 %v1270, %v3814
      %v3870 = vmul.f32 %v1271, %v3814
      %v3871 = vmul.f32 %v1272, %v3814
      %v3872 = vmul.f32 %v1273, %v3814
      %v3873 = vmul.f32 %v1274, %v3814
      %v3874 = vmul.f32 %v1275, %v3814
      %v3875 = vmul.f32 %v1276, %v3814
      %v3876 = vmul.f32 %v1277, %v3814
      %v3877 = vmul.f32 %v1278, %v3814
      %v3878 = vmul.f32 %v1279, %v3814
      %v3879 = vmul.f32 %v1280, %v3814
      %3881 = vset.pattern.permute.xlu0 0
      %3882 = vperm.xlu0 %3881, %v3615
      %v3883 = vpop.permute.xlu0 %3882
      %3886 = vset.pattern.permute.xlu0 0
      %3887 = vperm.xlu0 %3886, %v3617
      %v3888 = vpop.permute.xlu0 %3887
      %3891 = vset.pattern.permute.xlu0 0
      %3892 = vperm.xlu0 %3891, %v3619
      %v3893 = vpop.permute.xlu0 %3892
      %3896 = vset.pattern.permute.xlu0 0
      %3897 = vperm.xlu0 %3896, %v3621
      %v3898 = vpop.permute.xlu0 %3897
      %3901 = vset.pattern.permute.xlu0 0
      %3902 = vperm.xlu0 %3901, %v3623
      %v3903 = vpop.permute.xlu0 %3902
      %3906 = vset.pattern.permute.xlu0 0
      %3907 = vperm.xlu0 %3906, %v3625
      %v3908 = vpop.permute.xlu0 %3907
      %3911 = vset.pattern.permute.xlu0 0
      %3912 = vperm.xlu0 %3911, %v3627
      %v3913 = vpop.permute.xlu0 %3912
      %3916 = vset.pattern.permute.xlu0 0
      %3917 = vperm.xlu0 %3916, %v3629
      %v3918 = vpop.permute.xlu0 %3917
      %3921 = vset.pattern.permute.xlu0 0
      %3922 = vperm.xlu0 %3921, %v3631
      %v3923 = vpop.permute.xlu0 %3922
      %3926 = vset.pattern.permute.xlu0 0
      %3927 = vperm.xlu0 %3926, %v3633
      %v3928 = vpop.permute.xlu0 %3927
      %3931 = vset.pattern.permute.xlu0 0
      %3932 = vperm.xlu0 %3931, %v3635
      %v3933 = vpop.permute.xlu0 %3932
      %3936 = vset.pattern.permute.xlu0 0
      %3937 = vperm.xlu0 %3936, %v3637
      %v3938 = vpop.permute.xlu0 %3937
      %3941 = vset.pattern.permute.xlu0 0
      %3942 = vperm.xlu0 %3941, %v3639
      %v3943 = vpop.permute.xlu0 %3942
      %3946 = vset.pattern.permute.xlu0 0
      %3947 = vperm.xlu0 %3946, %v3641
      %v3948 = vpop.permute.xlu0 %3947
      %3951 = vset.pattern.permute.xlu0 0
      %3952 = vperm.xlu0 %3951, %v3643
      %v3953 = vpop.permute.xlu0 %3952
      %3956 = vset.pattern.permute.xlu0 0
      %3957 = vperm.xlu0 %3956, %v3645
      %v3958 = vpop.permute.xlu0 %3957
      %3961 = vset.pattern.permute.xlu0 0
      %3962 = vperm.xlu0 %3961, %v3647
      %v3963 = vpop.permute.xlu0 %3962
      %3966 = vset.pattern.permute.xlu0 0
      %3967 = vperm.xlu0 %3966, %v3649
      %v3968 = vpop.permute.xlu0 %3967
      %3971 = vset.pattern.permute.xlu0 0
      %3972 = vperm.xlu0 %3971, %v3651
      %v3973 = vpop.permute.xlu0 %3972
      %3976 = vset.pattern.permute.xlu0 0
      %3977 = vperm.xlu0 %3976, %v3653
      %v3978 = vpop.permute.xlu0 %3977
      %3981 = vset.pattern.permute.xlu0 0
      %3982 = vperm.xlu0 %3981, %v3655
      %v3983 = vpop.permute.xlu0 %3982
      %3986 = vset.pattern.permute.xlu0 0
      %3987 = vperm.xlu0 %3986, %v3657
      %v3988 = vpop.permute.xlu0 %3987
      %3991 = vset.pattern.permute.xlu0 0
      %3992 = vperm.xlu0 %3991, %v3659
      %v3993 = vpop.permute.xlu0 %3992
      %3996 = vset.pattern.permute.xlu0 0
      %3997 = vperm.xlu0 %3996, %v3661
      %v3998 = vpop.permute.xlu0 %3997
      %4001 = vset.pattern.permute.xlu0 0
      %4002 = vperm.xlu0 %4001, %v3663
      %v4003 = vpop.permute.xlu0 %4002
      %4006 = vset.pattern.permute.xlu0 0
      %4007 = vperm.xlu0 %4006, %v3665
      %v4008 = vpop.permute.xlu0 %4007
      %4011 = vset.pattern.permute.xlu0 0
      %4012 = vperm.xlu0 %4011, %v3667
      %v4013 = vpop.permute.xlu0 %4012
      %4016 = vset.pattern.permute.xlu0 0
      %4017 = vperm.xlu0 %4016, %v3669
      %v4018 = vpop.permute.xlu0 %4017
      %4021 = vset.pattern.permute.xlu0 0
      %4022 = vperm.xlu0 %4021, %v3671
      %v4023 = vpop.permute.xlu0 %4022
      %4026 = vset.pattern.permute.xlu0 0
      %4027 = vperm.xlu0 %4026, %v3673
      %v4028 = vpop.permute.xlu0 %4027
      %4031 = vset.pattern.permute.xlu0 0
      %4032 = vperm.xlu0 %4031, %v3675
      %v4033 = vpop.permute.xlu0 %4032
      %4036 = vset.pattern.permute.xlu0 0
      %4037 = vperm.xlu0 %4036, %v3677
      %v4038 = vpop.permute.xlu0 %4037
      %4041 = vset.pattern.permute.xlu0 0
      %4042 = vperm.xlu0 %4041, %v3679
      %v4043 = vpop.permute.xlu0 %4042
      %4046 = vset.pattern.permute.xlu0 0
      %4047 = vperm.xlu0 %4046, %v3681
      %v4048 = vpop.permute.xlu0 %4047
      %4051 = vset.pattern.permute.xlu0 0
      %4052 = vperm.xlu0 %4051, %v3683
      %v4053 = vpop.permute.xlu0 %4052
      %4056 = vset.pattern.permute.xlu0 0
      %4057 = vperm.xlu0 %4056, %v3685
      %v4058 = vpop.permute.xlu0 %4057
      %4061 = vset.pattern.permute.xlu0 0
      %4062 = vperm.xlu0 %4061, %v3687
      %v4063 = vpop.permute.xlu0 %4062
      %4066 = vset.pattern.permute.xlu0 0
      %4067 = vperm.xlu0 %4066, %v3689
      %v4068 = vpop.permute.xlu0 %4067
      %4071 = vset.pattern.permute.xlu0 0
      %4072 = vperm.xlu0 %4071, %v3691
      %v4073 = vpop.permute.xlu0 %4072
      %4076 = vset.pattern.permute.xlu0 0
      %4077 = vperm.xlu0 %4076, %v3693
      %v4078 = vpop.permute.xlu0 %4077
      %4081 = vset.pattern.permute.xlu0 0
      %4082 = vperm.xlu0 %4081, %v3695
      %v4083 = vpop.permute.xlu0 %4082
      %4086 = vset.pattern.permute.xlu0 0
      %4087 = vperm.xlu0 %4086, %v3697
      %v4088 = vpop.permute.xlu0 %4087
      %4091 = vset.pattern.permute.xlu0 0
      %4092 = vperm.xlu0 %4091, %v3699
      %v4093 = vpop.permute.xlu0 %4092
      %4096 = vset.pattern.permute.xlu0 0
      %4097 = vperm.xlu0 %4096, %v3701
      %v4098 = vpop.permute.xlu0 %4097
      %4101 = vset.pattern.permute.xlu0 0
      %4102 = vperm.xlu0 %4101, %v3703
      %v4103 = vpop.permute.xlu0 %4102
      %4106 = vset.pattern.permute.xlu0 0
      %4107 = vperm.xlu0 %4106, %v3705
      %v4108 = vpop.permute.xlu0 %4107
      %4111 = vset.pattern.permute.xlu0 0
      %4112 = vperm.xlu0 %4111, %v3707
      %v4113 = vpop.permute.xlu0 %4112
      %4116 = vset.pattern.permute.xlu0 0
      %4117 = vperm.xlu0 %4116, %v3709
      %v4118 = vpop.permute.xlu0 %4117
      %4121 = vset.pattern.permute.xlu0 0
      %4122 = vperm.xlu0 %4121, %v3711
      %v4123 = vpop.permute.xlu0 %4122
      %4126 = vset.pattern.permute.xlu0 0
      %4127 = vperm.xlu0 %4126, %v3713
      %v4128 = vpop.permute.xlu0 %4127
      %4131 = vset.pattern.permute.xlu0 0
      %4132 = vperm.xlu0 %4131, %v3715
      %v4133 = vpop.permute.xlu0 %4132
      %4136 = vset.pattern.permute.xlu0 0
      %4137 = vperm.xlu0 %4136, %v3717
      %v4138 = vpop.permute.xlu0 %4137
      %4141 = vset.pattern.permute.xlu0 0
      %4142 = vperm.xlu0 %4141, %v3719
      %v4143 = vpop.permute.xlu0 %4142
      %4146 = vset.pattern.permute.xlu0 0
      %4147 = vperm.xlu0 %4146, %v3721
      %v4148 = vpop.permute.xlu0 %4147
      %4151 = vset.pattern.permute.xlu0 0
      %4152 = vperm.xlu0 %4151, %v3723
      %v4153 = vpop.permute.xlu0 %4152
      %4156 = vset.pattern.permute.xlu0 0
      %4157 = vperm.xlu0 %4156, %v3725
      %v4158 = vpop.permute.xlu0 %4157
      %4161 = vset.pattern.permute.xlu0 0
      %4162 = vperm.xlu0 %4161, %v3727
      %v4163 = vpop.permute.xlu0 %4162
      %4166 = vset.pattern.permute.xlu0 0
      %4167 = vperm.xlu0 %4166, %v3729
      %v4168 = vpop.permute.xlu0 %4167
      %4171 = vset.pattern.permute.xlu0 0
      %4172 = vperm.xlu0 %4171, %v3731
      %v4173 = vpop.permute.xlu0 %4172
      %4176 = vset.pattern.permute.xlu0 0
      %4177 = vperm.xlu0 %4176, %v3733
      %v4178 = vpop.permute.xlu0 %4177
      %4181 = vset.pattern.permute.xlu0 0
      %4182 = vperm.xlu0 %4181, %v3735
      %v4183 = vpop.permute.xlu0 %4182
      %4186 = vset.pattern.permute.xlu0 0
      %4187 = vperm.xlu0 %4186, %v3737
      %v4188 = vpop.permute.xlu0 %4187
      %4191 = vset.pattern.permute.xlu0 0
      %4192 = vperm.xlu0 %4191, %v3739
      %v4193 = vpop.permute.xlu0 %4192
      %4196 = vset.pattern.permute.xlu0 0
      %4197 = vperm.xlu0 %4196, %v3741
      %v4198 = vpop.permute.xlu0 %4197
      %v4200 = vmul.f32 %v3816, %v3883
      %v4201 = vmul.f32 %v3817, %v3888
      %v4202 = vmul.f32 %v3818, %v3893
      %v4203 = vmul.f32 %v3819, %v3898
      %v4204 = vmul.f32 %v3820, %v3903
      %v4205 = vmul.f32 %v3821, %v3908
      %v4206 = vmul.f32 %v3822, %v3913
      %v4207 = vmul.f32 %v3823, %v3918
      %v4208 = vmul.f32 %v3824, %v3923
      %v4209 = vmul.f32 %v3825, %v3928
      %v4210 = vmul.f32 %v3826, %v3933
      %v4211 = vmul.f32 %v3827, %v3938
      %v4212 = vmul.f32 %v3828, %v3943
      %v4213 = vmul.f32 %v3829, %v3948
      %v4214 = vmul.f32 %v3830, %v3953
      %v4215 = vmul.f32 %v3831, %v3958
      %v4216 = vmul.f32 %v3832, %v3963
      %v4217 = vmul.f32 %v3833, %v3968
      %v4218 = vmul.f32 %v3834, %v3973
      %v4219 = vmul.f32 %v3835, %v3978
      %v4220 = vmul.f32 %v3836, %v3983
      %v4221 = vmul.f32 %v3837, %v3988
      %v4222 = vmul.f32 %v3838, %v3993
      %v4223 = vmul.f32 %v3839, %v3998
      %v4224 = vmul.f32 %v3840, %v4003
      %v4225 = vmul.f32 %v3841, %v4008
      %v4226 = vmul.f32 %v3842, %v4013
      %v4227 = vmul.f32 %v3843, %v4018
      %v4228 = vmul.f32 %v3844, %v4023
      %v4229 = vmul.f32 %v3845, %v4028
      %v4230 = vmul.f32 %v3846, %v4033
      %v4231 = vmul.f32 %v3847, %v4038
      %v4232 = vmul.f32 %v3848, %v4043
      %v4233 = vmul.f32 %v3849, %v4048
      %v4234 = vmul.f32 %v3850, %v4053
      %v4235 = vmul.f32 %v3851, %v4058
      %v4236 = vmul.f32 %v3852, %v4063
      %v4237 = vmul.f32 %v3853, %v4068
      %v4238 = vmul.f32 %v3854, %v4073
      %v4239 = vmul.f32 %v3855, %v4078
      %v4240 = vmul.f32 %v3856, %v4083
      %v4241 = vmul.f32 %v3857, %v4088
      %v4242 = vmul.f32 %v3858, %v4093
      %v4243 = vmul.f32 %v3859, %v4098
      %v4244 = vmul.f32 %v3860, %v4103
      %v4245 = vmul.f32 %v3861, %v4108
      %v4246 = vmul.f32 %v3862, %v4113
      %v4247 = vmul.f32 %v3863, %v4118
      %v4248 = vmul.f32 %v3864, %v4123
      %v4249 = vmul.f32 %v3865, %v4128
      %v4250 = vmul.f32 %v3866, %v4133
      %v4251 = vmul.f32 %v3867, %v4138
      %v4252 = vmul.f32 %v3868, %v4143
      %v4253 = vmul.f32 %v3869, %v4148
      %v4254 = vmul.f32 %v3870, %v4153
      %v4255 = vmul.f32 %v3871, %v4158
      %v4256 = vmul.f32 %v3872, %v4163
      %v4257 = vmul.f32 %v3873, %v4168
      %v4258 = vmul.f32 %v3874, %v4173
      %v4259 = vmul.f32 %v3875, %v4178
      %v4260 = vmul.f32 %v3876, %v4183
      %v4261 = vmul.f32 %v3877, %v4188
      %v4262 = vmul.f32 %v3878, %v4193
      %v4263 = vmul.f32 %v3879, %v4198
      %4264 = vst.msk [vmem:[%s430] sm:$0xff] %vm1345, %v4200
      %4265 = vst.msk [vmem:[%s430 + $0x8] sm:$0xff] %vm1345, %v4201
      %4266 = vst.msk [vmem:[%s430 + $0x10] sm:$0xff] %vm1345, %v4202
      %4267 = vst.msk [vmem:[%s430 + $0x18] sm:$0xff] %vm1345, %v4203
      %4268 = vst.msk [vmem:[%s430 + $0x20] sm:$0xff] %vm1345, %v4204
      %4269 = vst.msk [vmem:[%s430 + $0x28] sm:$0xff] %vm1345, %v4205
      %4270 = vst.msk [vmem:[%s430 + $0x30] sm:$0xff] %vm1345, %v4206
      %4271 = vst.msk [vmem:[%s430 + $0x38] sm:$0xff] %vm1345, %v4207
      %4272 = vst.msk [vmem:[%s430 + $0x40] sm:$0xff] %vm1345, %v4208
      %4273 = vst.msk [vmem:[%s430 + $0x48] sm:$0xff] %vm1345, %v4209
      %4274 = vst.msk [vmem:[%s430 + $0x50] sm:$0xff] %vm1345, %v4210
      %4275 = vst.msk [vmem:[%s430 + $0x58] sm:$0xff] %vm1345, %v4211
      %4276 = vst.msk [vmem:[%s430 + $0x60] sm:$0xff] %vm1345, %v4212
      %4277 = vst.msk [vmem:[%s430 + $0x68] sm:$0xff] %vm1345, %v4213
      %4278 = vst.msk [vmem:[%s430 + $0x70] sm:$0xff] %vm1345, %v4214
      %4279 = vst.msk [vmem:[%s430 + $0x78] sm:$0xff] %vm1345, %v4215
      %4280 = vst.msk [vmem:[%s430 + $0x80] sm:$0xff] %vm1345, %v4216
      %4281 = vst.msk [vmem:[%s430 + $0x88] sm:$0xff] %vm1345, %v4217
      %4282 = vst.msk [vmem:[%s430 + $0x90] sm:$0xff] %vm1345, %v4218
      %4283 = vst.msk [vmem:[%s430 + $0x98] sm:$0xff] %vm1345, %v4219
      %4284 = vst.msk [vmem:[%s430 + $0xa0] sm:$0xff] %vm1345, %v4220
      %4285 = vst.msk [vmem:[%s430 + $0xa8] sm:$0xff] %vm1345, %v4221
      %4286 = vst.msk [vmem:[%s430 + $0xb0] sm:$0xff] %vm1345, %v4222
      %4287 = vst.msk [vmem:[%s430 + $0xb8] sm:$0xff] %vm1345, %v4223
      %4288 = vst.msk [vmem:[%s430 + $0xc0] sm:$0xff] %vm1345, %v4224
      %4289 = vst.msk [vmem:[%s430 + $0xc8] sm:$0xff] %vm1345, %v4225
      %4290 = vst.msk [vmem:[%s430 + $0xd0] sm:$0xff] %vm1345, %v4226
      %4291 = vst.msk [vmem:[%s430 + $0xd8] sm:$0xff] %vm1345, %v4227
      %4292 = vst.msk [vmem:[%s430 + $0xe0] sm:$0xff] %vm1345, %v4228
      %4293 = vst.msk [vmem:[%s430 + $0xe8] sm:$0xff] %vm1345, %v4229
      %4294 = vst.msk [vmem:[%s430 + $0xf0] sm:$0xff] %vm1345, %v4230
      %4295 = vst.msk [vmem:[%s430 + $0xf8] sm:$0xff] %vm1345, %v4231
      %4296 = vst.msk [vmem:[%s430 + $0x100] sm:$0xff] %vm1345, %v4232
      %4297 = vst.msk [vmem:[%s430 + $0x108] sm:$0xff] %vm1345, %v4233
      %4298 = vst.msk [vmem:[%s430 + $0x110] sm:$0xff] %vm1345, %v4234
      %4299 = vst.msk [vmem:[%s430 + $0x118] sm:$0xff] %vm1345, %v4235
      %4300 = vst.msk [vmem:[%s430 + $0x120] sm:$0xff] %vm1345, %v4236
      %4301 = vst.msk [vmem:[%s430 + $0x128] sm:$0xff] %vm1345, %v4237
      %4302 = vst.msk [vmem:[%s430 + $0x130] sm:$0xff] %vm1345, %v4238
      %4303 = vst.msk [vmem:[%s430 + $0x138] sm:$0xff] %vm1345, %v4239
      %4304 = vst.msk [vmem:[%s430 + $0x140] sm:$0xff] %vm1345, %v4240
      %4305 = vst.msk [vmem:[%s430 + $0x148] sm:$0xff] %vm1345, %v4241
      %4306 = vst.msk [vmem:[%s430 + $0x150] sm:$0xff] %vm1345, %v4242
      %4307 = vst.msk [vmem:[%s430 + $0x158] sm:$0xff] %vm1345, %v4243
      %4308 = vst.msk [vmem:[%s430 + $0x160] sm:$0xff] %vm1345, %v4244
      %4309 = vst.msk [vmem:[%s430 + $0x168] sm:$0xff] %vm1345, %v4245
      %4310 = vst.msk [vmem:[%s430 + $0x170] sm:$0xff] %vm1345, %v4246
      %4311 = vst.msk [vmem:[%s430 + $0x178] sm:$0xff] %vm1345, %v4247
      %4312 = vst.msk [vmem:[%s430 + $0x180] sm:$0xff] %vm1345, %v4248
      %4313 = vst.msk [vmem:[%s430 + $0x188] sm:$0xff] %vm1345, %v4249
      %4314 = vst.msk [vmem:[%s430 + $0x190] sm:$0xff] %vm1345, %v4250
      %4315 = vst.msk [vmem:[%s430 + $0x198] sm:$0xff] %vm1345, %v4251
      %4316 = vst.msk [vmem:[%s430 + $0x1a0] sm:$0xff] %vm1345, %v4252
      %4317 = vst.msk [vmem:[%s430 + $0x1a8] sm:$0xff] %vm1345, %v4253
      %4318 = vst.msk [vmem:[%s430 + $0x1b0] sm:$0xff] %vm1345, %v4254
      %4319 = vst.msk [vmem:[%s430 + $0x1b8] sm:$0xff] %vm1345, %v4255
      %4320 = vst.msk [vmem:[%s430 + $0x1c0] sm:$0xff] %vm1345, %v4256
      %4321 = vst.msk [vmem:[%s430 + $0x1c8] sm:$0xff] %vm1345, %v4257
      %4322 = vst.msk [vmem:[%s430 + $0x1d0] sm:$0xff] %vm1345, %v4258
      %4323 = vst.msk [vmem:[%s430 + $0x1d8] sm:$0xff] %vm1345, %v4259
      %4324 = vst.msk [vmem:[%s430 + $0x1e0] sm:$0xff] %vm1345, %v4260
      %4325 = vst.msk [vmem:[%s430 + $0x1e8] sm:$0xff] %vm1345, %v4261
      %4326 = vst.msk [vmem:[%s430 + $0x1f0] sm:$0xff] %vm1345, %v4262
      %4327 = vst.msk [vmem:[%s430 + $0x1f8] sm:$0xff] %vm1345, %v4263
      %s4328 = smul.u32 64, %s29
      %p4329 = scmp.lt.s32.totalorder %s4328, 127
      %s4330 = scalar_select %p4329, %s4328, 127
      %s4331 = smul.addr %s4330, 8
      %s4332 = scalar_lea.vmem %s10, %s4331
      %s4333 = smul.u32 64, %s29
      %p4334 = scmp.lt.s32.totalorder %s4333, 127
      %s4335 = scalar_select %p4334, %s4333, 127
      %s4336 = smul.addr %s4335, 8
      %s4337 = scalar_lea.vmem %s11, %s4336
      // Predicated region
      $region61: #{tpu_custom_call.1} parent=59 // pred_check
        %p4338 = pneg %p267
      $region62: #{tpu_custom_call.1} parent=59 // pred_check_branch
        %4340 = sbr.rel (%p4338) target = $region64
      $region63: #{tpu_custom_call.1} parent=59 // pred_region
        %s4341 = smul.u32 64, %s29
      $region64: #{tpu_custom_call.1} parent=59 // pred_fallthru
        _
      // Predicated region
      $region65: #{tpu_custom_call.1} parent=59 // pred_check
        %p4342 = pneg %p293
      $region66: #{tpu_custom_call.1} parent=59 // pred_check_branch
        %4344 = sbr.rel (%p4342) target = $region68
      $region67: #{tpu_custom_call.1} parent=59 // pred_region
        %s4345 = smul.u32 64, %s29
      $region68: #{tpu_custom_call.1} parent=59 // pred_fallthru
        _
    $region60: #{tpu_custom_call.1} parent=5 // pred_fallthru
      _
    %p4346 = scmp.le.s32.totalorder 2, %s24
    // Predicated region
    $region69: #{tpu_custom_call.1} parent=5 // pred_check
      %p4347 = pneg %p4346
    $region70: #{tpu_custom_call.1} parent=5 // pred_check_branch
      %4349 = sbr.rel (%p4347) target = $region72
    $region71: #{tpu_custom_call.1} parent=5 // pred_region
      %s4350 = ssub.s32 %s24, 2
      // Predicated region
      $region73: #{tpu_custom_call.1} parent=71 // pred_check
        %p4351 = pneg %p273
      $region74: #{tpu_custom_call.1} parent=71 // pred_check_branch
        %4353 = sbr.rel (%p4351) target = $region76
      $region75: #{tpu_custom_call.1} parent=71 // pred_region
        %s4354 = smul.u32 64, %s30
        %p4355 = scmp.lt.s32.totalorder %s4354, 127
        %s4356 = scalar_select %p4355, %s4354, 127
        %s4357 = smul.addr %s4356, 8
        %s4358 = scalar_lea.vmem %s10, %s4357
      $region76: #{tpu_custom_call.1} parent=71 // pred_fallthru
        _
      // Predicated region
      $region77: #{tpu_custom_call.1} parent=71 // pred_check
        %p4359 = pneg %p299
      $region78: #{tpu_custom_call.1} parent=71 // pred_check_branch
        %4361 = sbr.rel (%p4359) target = $region80
      $region79: #{tpu_custom_call.1} parent=71 // pred_region
        %s4362 = smul.u32 64, %s30
        %p4363 = scmp.lt.s32.totalorder %s4362, 127
        %s4364 = scalar_select %p4363, %s4362, 127
        %s4365 = smul.addr %s4364, 8
        %s4366 = scalar_lea.vmem %s11, %s4365
      $region80: #{tpu_custom_call.1} parent=71 // pred_fallthru
        _
    $region72: #{tpu_custom_call.1} parent=5 // pred_fallthru
      _
  $region6: #{tpu_custom_call.1} parent=0 // loop_footer
    %s28 = sadd.s32 1, %s24
  $region7: #{tpu_custom_call.1} parent=0 // loop_footer_branch
    %23 = sbr.rel target = $region3
  $region8: #{tpu_custom_call.1} parent=0 // loop_exit
    _

</llo_original>
